<compile_context>
chip_gen: v6e
topology: v6e:2x2x1
jax: 0.10.0
libtpu: 0.0.40
codegen_flags: <defaults>
</compile_context>

<pallas_src>
import functools
import math

import jax
import jax.numpy as jnp
from jax import lax
from jax.experimental import pallas as pl
from jax.experimental.pallas import tpu as pltpu

LANE = 128


def _round_up(x, m):
    return (x + m - 1) // m * m


def _vmem_limit_bytes():
    # Explicit scoped-VMEM budget: ~75% of physical, capped at 96 MiB.
    # v7x (64 MiB physical) -> 48 MiB; v5e/v6e (128 MiB) -> 96 MiB.
    try:
        cap = int(pltpu.get_tpu_info().vmem_capacity_bytes)
    except Exception:
        cap = 64 << 20
    return int(min(cap * 3 // 4, 96 << 20))


# -----------------------------------------------------------------------------
# Fused kernel: all blocks + pos/neg scoring
# -----------------------------------------------------------------------------
def sasrec_fused_kernel(x_ref, tlm_ref, pos_ref, neg_ref,
                        ln1_g_ref, ln1_b_ref,
                        wq_ref, bq_ref, wkv_ref, bkv_ref,
                        wo_ref, bo_ref,
                        ln2_g_ref, ln2_b_ref,
                        w1_ref, b1_ref, w2_ref, b2_ref,
                        pos_out_ref, neg_out_ref,
                        *, num_heads, num_blocks, seq_len, hidden_real):
    blt, hp = x_ref.shape                      # (batch_tile * L, Hp)
    L = seq_len
    bt = blt // L
    nh = num_heads
    H = hidden_real
    dh = H // nh
    inv_h = 1.0 / H
    mxu = wq_ref.dtype                         # bf16 MXU operands, f32 accumulation

    # --- Loop-invariant constants, built ONCE (hoisted out of the block loop) ----
    # Mask of the real hidden lanes (LayerNorm stats over the real H features only).
    fmask = (lax.broadcasted_iota(jnp.int32, (1, hp), 1) < H).astype(jnp.float32)
    # Per-head lane masks: head h owns lanes [h*dh, (h+1)*dh) of the packed tile.
    lane = lax.broadcasted_iota(jnp.int32, (1, 1, hp), 2)
    head_masks = [((lane >= h * dh) & (lane < (h + 1) * dh)).astype(mxu)
                  for h in range(nh)]
    # Additive causal bias, broadcast once to (bt, L, L) (JAX does not CSE broadcasts).
    row = lax.broadcasted_iota(jnp.int32, (L, L), 0)
    col = lax.broadcasted_iota(jnp.int32, (L, L), 1)
    causal_bias = jnp.broadcast_to(
        jnp.where(col <= row, 0.0, -1e30).astype(jnp.float32)[None], (bt, L, L))

    tlm = tlm_ref[...]                         # (bt*L, 1) padding / timeline mask

    def layernorm(xf, g, b):
        # xf: (bt*L, Hp) f32 with zeros in padded lanes; g, b: (1, Hp) zero-padded.
        mu = jnp.sum(xf, axis=-1, keepdims=True) * inv_h
        d = (xf - mu) * fmask
        var = jnp.sum(d * d, axis=-1, keepdims=True) * inv_h
        return d * lax.rsqrt(var + 1e-8) * g + b

    def block_body(i, xf):
        # Re-apply the padding mask each block, as the reference does.
        xf = xf * tlm

        # query = LayerNorm(x); key = value = raw x.
        xn = layernorm(xf, ln1_g_ref[i], ln1_b_ref[i])
        # 1/sqrt(dh) attention scale is pre-folded into wq/bq at pack time.
        q = jnp.dot(xn.astype(mxu), wq_ref[i],
                    preferred_element_type=jnp.float32) + bq_ref[i]        # (bt*L, Hp)
        kv = jnp.dot(xf.astype(mxu), wkv_ref[i],
                     preferred_element_type=jnp.float32) + bkv_ref[i]      # (bt*L, 2*Hp)

        q3 = q.reshape(bt, L, hp).astype(mxu)
        k3 = kv[:, :hp].reshape(bt, L, hp).astype(mxu)
        v3 = kv[:, hp:].reshape(bt, L, hp).astype(mxu)

        # Heads stay packed in the 128-lane tile: mask Q per head for the scores and
        # mask V per head for the context, accumulating directly into the packed
        # context (no (bt*L, nh*128) intermediates, no lane-axis concat).
        ctx = jnp.zeros((bt, L, hp), jnp.float32)
        for hm in head_masks:                  # static, tiny (nh iterations)
            s = jnp.einsum('bqd,bkd->bqk', q3 * hm, k3,
                           preferred_element_type=jnp.float32)
            s = s + causal_bias
            s = s - jnp.max(s, axis=-1, keepdims=True)
            p = jnp.exp(s)
            p = p * pl.reciprocal(jnp.sum(p, axis=-1, keepdims=True), approx=True)
            ctx = ctx + jnp.einsum('bqk,bkd->bqd', p.astype(mxu), v3 * hm,
                                   preferred_element_type=jnp.float32)

        attn = jnp.dot(ctx.reshape(blt, hp).astype(mxu), wo_ref[i],
                       preferred_element_type=jnp.float32) + bo_ref[i]
        hres = attn + xf                       # residual on raw input (dropout = id)

        # Point-wise FFN (two 1x1 "convs" == dense layers + ReLU).
        hn = layernorm(hres, ln2_g_ref[i], ln2_b_ref[i])
        f = jnp.dot(hn.astype(mxu), w1_ref[i],
                    preferred_element_type=jnp.float32) + b1_ref[i]
        f = jnp.maximum(f, 0.0)
        f = jnp.dot(f.astype(mxu), w2_ref[i],
                    preferred_element_type=jnp.float32) + b2_ref[i]
        return f + hres                        # FFN residual (dropout = identity)

    x0 = x_ref[...].astype(jnp.float32)        # bf16 input, f32 residual stream
    xs = lax.fori_loop(0, num_blocks, block_body, x0, unroll=True)

    # Lane-dense scoring: (bt, L) outputs with L on lanes (padded lanes of xs are 0).
    xs3 = xs.reshape(bt, L, hp)
    pos3 = pos_ref[...].astype(jnp.float32).reshape(bt, L, hp)
    neg3 = neg_ref[...].astype(jnp.float32).reshape(bt, L, hp)
    pos_out_ref[...] = jnp.sum(xs3 * pos3, axis=-1)
    neg_out_ref[...] = jnp.sum(xs3 * neg3, axis=-1)


# -----------------------------------------------------------------------------
# Parameter init (real, unpadded) and packing (padded / fused / stacked / bf16)
# -----------------------------------------------------------------------------
def xavier(key, shape):
    fan_in, fan_out = shape[0], shape[1]
    limit = math.sqrt(6.0 / (fan_in + fan_out))
    return jax.random.uniform(key, shape, jnp.float32, -limit, limit)


def init_params(key, item_num, hidden, seq_len, num_blocks):
    keys = jax.random.split(key, 2 + num_blocks)
    H = hidden
    params = {
        "item_emb": xavier(keys[0], (item_num + 1, H)),
        "pos_emb": xavier(keys[1], (seq_len, H)),
        "blocks": [],
    }
    for i in range(num_blocks):
        bk = jax.random.split(keys[2 + i], 6)
        zeros_b = jnp.zeros((H,), jnp.float32)
        params["blocks"].append(dict(
            ln1_g=jnp.ones((H,), jnp.float32), ln1_b=zeros_b,
            wq=xavier(bk[0], (H, H)), bq=zeros_b,
            wk=xavier(bk[1], (H, H)), bk=zeros_b,
            wv=xavier(bk[2], (H, H)), bv=zeros_b,
            wo=xavier(bk[3], (H, H)), bo=zeros_b,
            ln2_g=jnp.ones((H,), jnp.float32), ln2_b=zeros_b,
            w1=xavier(bk[4], (H, H)), b1=zeros_b,
            w2=xavier(bk[5], (H, H)), b2=zeros_b,
        ))
    return params


def pack_block_params(blocks, num_heads, hp, mxu_dtype=jnp.bfloat16):
    """Pad to lane-dense (Hp) shapes, fuse K/V, fold the attention scale into Wq/bq,
    stack over blocks, cast matmul weights to bf16. Heads stay packed in Hp lanes."""
    H = blocks[0]["wq"].shape[0]
    assert H % num_heads == 0
    scale = 1.0 / math.sqrt(H // num_heads)

    def pad_vec(v):                            # (H,) -> (1, hp) zero padded
        return jnp.pad(v, (0, hp - H))[None, :]

    def pad_mat(w):                            # (H, H) -> (hp, hp) zero padded
        return jnp.pad(w, ((0, hp - H), (0, hp - H)))

    def stack(fn, name):
        return jnp.stack([fn(b[name]) for b in blocks], axis=0)

    packed = dict(
        ln1_g=stack(pad_vec, "ln1_g"), ln1_b=stack(pad_vec, "ln1_b"),
        # 1/sqrt(dh) folded into the Q projection (mathematically exact).
        wq=jnp.stack([pad_mat(b["wq"] * scale) for b in blocks], 0).astype(mxu_dtype),
        bq=jnp.stack([pad_vec(b["bq"] * scale) for b in blocks], 0),
        wkv=jnp.stack([jnp.concatenate([pad_mat(b["wk"]), pad_mat(b["wv"])], axis=-1)
                       for b in blocks], 0).astype(mxu_dtype),
        bkv=jnp.stack([jnp.concatenate([pad_vec(b["bk"]), pad_vec(b["bv"])], axis=-1)
                       for b in blocks], 0),
        wo=stack(pad_mat, "wo").astype(mxu_dtype), bo=stack(pad_vec, "bo"),
        ln2_g=stack(pad_vec, "ln2_g"), ln2_b=stack(pad_vec, "ln2_b"),
        w1=stack(pad_mat, "w1").astype(mxu_dtype), b1=stack(pad_vec, "b1"),
        w2=stack(pad_mat, "w2").astype(mxu_dtype), b2=stack(pad_vec, "b2"),
    )
    return packed


# -----------------------------------------------------------------------------
# Forward pass wrapper
# -----------------------------------------------------------------------------
def sasrec_forward(params, sequences, pos_samples, neg_samples, num_heads,
                   mxu_dtype=jnp.bfloat16, single_buffer_weights=True):
    item_tab = params["item_emb"]
    B, L = sequences.shape
    H = item_tab.shape[1]
    hp = _round_up(H, LANE)
    nb = len(params["blocks"])

    packed = pack_block_params(params["blocks"], num_heads, hp, mxu_dtype)

    # Embedding lookups (gathers) stay in plain JAX.
    seqs = jnp.take(item_tab, sequences, axis=0) + params["pos_emb"][None]
    pos_e = jnp.take(item_tab, pos_samples, axis=0)
    neg_e = jnp.take(item_tab, neg_samples, axis=0)
    tlm = (sequences != 0).astype(jnp.float32)

    # Batch tiling: prefer 8-row tiles; pad a ragged batch instead of collapsing the
    # grid to one step (keeps pipelining / v7x megacore sharding for any B).
    bt = 8 if B >= 8 else B
    n_tiles = int(pl.cdiv(B, bt))
    Bp = n_tiles * bt
    pad_b = Bp - B

    def prep_act(a):                           # (B, L, H) -> (Bp*L, Hp) bf16
        a = jnp.pad(a, ((0, pad_b), (0, 0), (0, hp - H)))
        return a.reshape(Bp * L, hp).astype(mxu_dtype)

    x = prep_act(seqs)
    pos_x = prep_act(pos_e)
    neg_x = prep_act(neg_e)
    tlm = jnp.pad(tlm, ((0, pad_b), (0, 0))).reshape(Bp * L, 1)

    def act_spec(last):
        return pl.BlockSpec((bt * L, last), lambda i: (i, 0))

    def w_spec(a):
        idx = lambda i: (0,) * a.ndim
        if single_buffer_weights and hasattr(pl, "Buffered"):
            try:
                # Constant index_map -> fetched once; one buffer halves resident VMEM.
                return pl.BlockSpec(a.shape, idx, pipeline_mode=pl.Buffered(1))
            except TypeError:
                pass
        return pl.BlockSpec(a.shape, idx)

    weight_names = ["ln1_g", "ln1_b", "wq", "bq", "wkv", "bkv",
                    "wo", "bo", "ln2_g", "ln2_b", "w1", "b1", "w2", "b2"]
    weights = [packed[n] for n in weight_names]

    kernel = functools.partial(sasrec_fused_kernel, num_heads=num_heads,
                               num_blocks=nb, seq_len=L, hidden_real=H)

    out = jax.ShapeDtypeStruct((Bp, L), jnp.float32)
    out_spec = pl.BlockSpec((bt, L), lambda i: (i, 0))

    pos_pred, neg_pred = pl.pallas_call(
        kernel,
        grid=(n_tiles,),
        out_shape=(out, out),
        in_specs=[act_spec(hp), act_spec(1), act_spec(hp), act_spec(hp)]
                 + [w_spec(w) for w in weights],
        out_specs=(out_spec, out_spec),
        compiler_params=pltpu.CompilerParams(
            dimension_semantics=("parallel",),
            vmem_limit_bytes=_vmem_limit_bytes()),
    )(x, tlm, pos_x, neg_x, *weights)

    return pos_pred[:B], neg_pred[:B]


if __name__ == "__main__":
    B, L, H = 2, 8, 32
    num_heads, num_blocks = 2, 2
    item_num = 50

    key = jax.random.PRNGKey(0)
    pkey, skey, poskey, negkey = jax.random.split(key, 4)

    params = init_params(pkey, item_num, H, L, num_blocks)
    sequences = jax.random.randint(skey, (B, L), 0, item_num + 1)      # 0 = padding id
    pos_samples = jax.random.randint(poskey, (B, L), 1, item_num + 1)
    neg_samples = jax.random.randint(negkey, (B, L), 1, item_num + 1)

    def run(single_buffer):
        fwd = jax.jit(functools.partial(sasrec_forward, num_heads=num_heads,
                                        single_buffer_weights=single_buffer))
        out = fwd(params, sequences, pos_samples, neg_samples)
        jax.block_until_ready(out)
        return out

    try:
        pos_pred, neg_pred = run(True)
    except Exception:
        # Fallback for JAX versions that reject single-buffered weight BlockSpecs.
        pos_pred, neg_pred = run(False)

    assert pos_pred.shape == (B, L) and neg_pred.shape == (B, L)
    assert pos_pred.dtype == jnp.float32 and neg_pred.dtype == jnp.float32
    assert bool(jnp.all(jnp.isfinite(pos_pred))) and bool(jnp.all(jnp.isfinite(neg_pred)))
    print("KERNEL_OK")
</pallas_src>

<mosaic_0001>
module attributes {stable_mosaic.version = 11 : i64} {
  func.func @sasrec_fused_kernel(%arg0: i32, %arg1: memref<16x128xbf16, #tpu.memory_space<vmem>>, %arg2: memref<16x1xf32, #tpu.memory_space<vmem>>, %arg3: memref<16x128xbf16, #tpu.memory_space<vmem>>, %arg4: memref<16x128xbf16, #tpu.memory_space<vmem>>, %arg5: memref<2x1x128xf32, #tpu.memory_space<vmem>>, %arg6: memref<2x1x128xf32, #tpu.memory_space<vmem>>, %arg7: memref<2x128x128xbf16, #tpu.memory_space<vmem>>, %arg8: memref<2x1x128xf32, #tpu.memory_space<vmem>>, %arg9: memref<2x128x256xbf16, #tpu.memory_space<vmem>>, %arg10: memref<2x1x256xf32, #tpu.memory_space<vmem>>, %arg11: memref<2x128x128xbf16, #tpu.memory_space<vmem>>, %arg12: memref<2x1x128xf32, #tpu.memory_space<vmem>>, %arg13: memref<2x1x128xf32, #tpu.memory_space<vmem>>, %arg14: memref<2x1x128xf32, #tpu.memory_space<vmem>>, %arg15: memref<2x128x128xbf16, #tpu.memory_space<vmem>>, %arg16: memref<2x1x128xf32, #tpu.memory_space<vmem>>, %arg17: memref<2x128x128xbf16, #tpu.memory_space<vmem>>, %arg18: memref<2x1x128xf32, #tpu.memory_space<vmem>>, %arg19: memref<2x8xf32, #tpu.memory_space<vmem>>, %arg20: memref<2x8xf32, #tpu.memory_space<vmem>>) attributes {dimension_semantics = [#tpu.dimension_semantics<parallel>], iteration_bounds = array<i64: 1>, scalar_prefetch = 0 : i64, scratch_operands = 0 : i64, tpu.core_type = #tpu.core_type<tc>, window_params = [{transform_indices = @transform_0, window_bounds = array<i64: 16, 128>}, {transform_indices = @transform_1, window_bounds = array<i64: 16, 1>}, {transform_indices = @transform_2, window_bounds = array<i64: 16, 128>}, {transform_indices = @transform_3, window_bounds = array<i64: 16, 128>}, {pipeline_mode = #tpu.pipeline_mode<synchronous>, transform_indices = @transform_4, window_bounds = array<i64: 2, 1, 128>}, {pipeline_mode = #tpu.pipeline_mode<synchronous>, transform_indices = @transform_5, window_bounds = array<i64: 2, 1, 128>}, {pipeline_mode = #tpu.pipeline_mode<synchronous>, transform_indices = @transform_6, window_bounds = array<i64: 2, 128, 128>}, {pipeline_mode = #tpu.pipeline_mode<synchronous>, transform_indices = @transform_7, window_bounds = array<i64: 2, 1, 128>}, {pipeline_mode = #tpu.pipeline_mode<synchronous>, transform_indices = @transform_8, window_bounds = array<i64: 2, 128, 256>}, {pipeline_mode = #tpu.pipeline_mode<synchronous>, transform_indices = @transform_9, window_bounds = array<i64: 2, 1, 256>}, {pipeline_mode = #tpu.pipeline_mode<synchronous>, transform_indices = @transform_10, window_bounds = array<i64: 2, 128, 128>}, {pipeline_mode = #tpu.pipeline_mode<synchronous>, transform_indices = @transform_11, window_bounds = array<i64: 2, 1, 128>}, {pipeline_mode = #tpu.pipeline_mode<synchronous>, transform_indices = @transform_12, window_bounds = array<i64: 2, 1, 128>}, {pipeline_mode = #tpu.pipeline_mode<synchronous>, transform_indices = @transform_13, window_bounds = array<i64: 2, 1, 128>}, {pipeline_mode = #tpu.pipeline_mode<synchronous>, transform_indices = @transform_14, window_bounds = array<i64: 2, 128, 128>}, {pipeline_mode = #tpu.pipeline_mode<synchronous>, transform_indices = @transform_15, window_bounds = array<i64: 2, 1, 128>}, {pipeline_mode = #tpu.pipeline_mode<synchronous>, transform_indices = @transform_16, window_bounds = array<i64: 2, 128, 128>}, {pipeline_mode = #tpu.pipeline_mode<synchronous>, transform_indices = @transform_17, window_bounds = array<i64: 2, 1, 128>}, {transform_indices = @transform_18, window_bounds = array<i64: 2, 8>}, {transform_indices = @transform_19, window_bounds = array<i64: 2, 8>}]} {
    %0 = tpu.iota {dimensions = array<i32: 1>} : vector<1x128xi32>
    %c32_i32 = arith.constant 32 : i32
    %1 = vector.broadcast %c32_i32 : i32 to vector<1x128xi32>
    %2 = arith.cmpi slt, %0, %1 : vector<1x128xi32>
    %3 = arith.extui %2 : vector<1x128xi1> to vector<1x128xi32>
    %4 = arith.sitofp %3 : vector<1x128xi32> to vector<1x128xf32>
    %5 = tpu.iota {dimensions = array<i32: 2>} : vector<1x1x128xi32>
    %c0_i32 = arith.constant 0 : i32
    %6 = vector.broadcast %c0_i32 : i32 to vector<1x1x128xi32>
    %7 = arith.cmpi sge, %5, %6 : vector<1x1x128xi32>
    %c16_i32 = arith.constant 16 : i32
    %8 = vector.broadcast %c16_i32 : i32 to vector<1x1x128xi32>
    %9 = arith.cmpi slt, %5, %8 : vector<1x1x128xi32>
    %10 = arith.andi %7, %9 : vector<1x1x128xi1>
    %11 = arith.extui %10 : vector<1x1x128xi1> to vector<1x1x128xi32>
    %12 = arith.sitofp %11 : vector<1x1x128xi32> to vector<1x1x128xf32>
    %13 = arith.truncf %12 : vector<1x1x128xf32> to vector<1x1x128xbf16>
    %c16_i32_0 = arith.constant 16 : i32
    %14 = vector.broadcast %c16_i32_0 : i32 to vector<1x1x128xi32>
    %15 = arith.cmpi sge, %5, %14 : vector<1x1x128xi32>
    %c32_i32_1 = arith.constant 32 : i32
    %16 = vector.broadcast %c32_i32_1 : i32 to vector<1x1x128xi32>
    %17 = arith.cmpi slt, %5, %16 : vector<1x1x128xi32>
    %18 = arith.andi %15, %17 : vector<1x1x128xi1>
    %19 = arith.extui %18 : vector<1x1x128xi1> to vector<1x1x128xi32>
    %20 = arith.sitofp %19 : vector<1x1x128xi32> to vector<1x1x128xf32>
    %21 = arith.truncf %20 : vector<1x1x128xf32> to vector<1x1x128xbf16>
    %22 = tpu.iota {dimensions = array<i32: 0>} : vector<8x8xi32>
    %23 = tpu.iota {dimensions = array<i32: 1>} : vector<8x8xi32>
    %24 = arith.cmpi sle, %23, %22 : vector<8x8xi32>
    %cst = arith.constant 0.000000e+00 : f32
    %cst_2 = arith.constant -1.000000e+30 : f32
    %25 = vector.broadcast %cst : f32 to vector<8x8xf32>
    %26 = vector.broadcast %cst_2 : f32 to vector<8x8xf32>
    %27 = arith.select %24, %25, %26 : vector<8x8xi1>, vector<8x8xf32>
    %28 = vector.shape_cast %27 : vector<8x8xf32> to vector<1x8x8xf32>
    %29 = vector.shape_cast %28 : vector<1x8x8xf32> to vector<1x8x8xf32>
    %30 = vector.broadcast %29 : vector<1x8x8xf32> to vector<2x8x8xf32>
    %c0 = arith.constant 0 : index
    %c0_3 = arith.constant 0 : index
    %31 = vector.load %arg2[%c0, %c0_3] : memref<16x1xf32, #tpu.memory_space<vmem>>, vector<16x1xf32>
    %c0_4 = arith.constant 0 : index
    %c0_5 = arith.constant 0 : index
    %32 = vector.load %arg1[%c0_4, %c0_5] : memref<16x128xbf16, #tpu.memory_space<vmem>>, vector<16x128xbf16>
    %33 = arith.extf %32 : vector<16x128xbf16> to vector<16x128xf32>
    %c0_i32_6 = arith.constant 0 : i32
    %34 = vector.broadcast %31 : vector<16x1xf32> to vector<16x128xf32>
    %35 = arith.mulf %33, %34 : vector<16x128xf32>
    %36 = arith.index_cast %c0_i32_6 : i32 to index
    %c0_7 = arith.constant 0 : index
    %c0_8 = arith.constant 0 : index
    %37 = vector.load %arg5[%36, %c0_7, %c0_8] : memref<2x1x128xf32, #tpu.memory_space<vmem>>, vector<1x1x128xf32>
    %38 = vector.shape_cast %37 : vector<1x1x128xf32> to vector<1x128xf32>
    %39 = arith.index_cast %c0_i32_6 : i32 to index
    %c0_9 = arith.constant 0 : index
    %c0_10 = arith.constant 0 : index
    %40 = vector.load %arg6[%39, %c0_9, %c0_10] : memref<2x1x128xf32, #tpu.memory_space<vmem>>, vector<1x1x128xf32>
    %41 = vector.shape_cast %40 : vector<1x1x128xf32> to vector<1x128xf32>
    %cst_11 = arith.constant dense<0.000000e+00> : vector<16xf32>
    %42 = vector.multi_reduction <add>, %35, %cst_11 [1] : vector<16x128xf32> to vector<16xf32>
    %43 = vector.shape_cast %42 : vector<16xf32> to vector<16x1xf32>
    %cst_12 = arith.constant 3.125000e-02 : f32
    %44 = vector.broadcast %cst_12 : f32 to vector<16x1xf32>
    %45 = arith.mulf %43, %44 : vector<16x1xf32>
    %46 = vector.broadcast %45 : vector<16x1xf32> to vector<16x128xf32>
    %47 = arith.subf %35, %46 : vector<16x128xf32>
    %48 = vector.broadcast %4 : vector<1x128xf32> to vector<16x128xf32>
    %49 = arith.mulf %47, %48 : vector<16x128xf32>
    %50 = arith.mulf %49, %49 : vector<16x128xf32>
    %cst_13 = arith.constant dense<0.000000e+00> : vector<16xf32>
    %51 = vector.multi_reduction <add>, %50, %cst_13 [1] : vector<16x128xf32> to vector<16xf32>
    %52 = vector.shape_cast %51 : vector<16xf32> to vector<16x1xf32>
    %cst_14 = arith.constant 3.125000e-02 : f32
    %53 = vector.broadcast %cst_14 : f32 to vector<16x1xf32>
    %54 = arith.mulf %52, %53 : vector<16x1xf32>
    %cst_15 = arith.constant 9.99999993E-9 : f32
    %55 = vector.broadcast %cst_15 : f32 to vector<16x1xf32>
    %56 = arith.addf %54, %55 : vector<16x1xf32>
    %57 = math.rsqrt %56 : vector<16x1xf32>
    %58 = vector.broadcast %57 : vector<16x1xf32> to vector<16x128xf32>
    %59 = arith.mulf %49, %58 : vector<16x128xf32>
    %60 = vector.broadcast %38 : vector<1x128xf32> to vector<16x128xf32>
    %61 = arith.mulf %59, %60 : vector<16x128xf32>
    %62 = vector.broadcast %41 : vector<1x128xf32> to vector<16x128xf32>
    %63 = arith.addf %61, %62 : vector<16x128xf32>
    %64 = arith.truncf %63 : vector<16x128xf32> to vector<16x128xbf16>
    %65 = arith.index_cast %c0_i32_6 : i32 to index
    %c0_16 = arith.constant 0 : index
    %c0_17 = arith.constant 0 : index
    %66 = vector.load %arg7[%65, %c0_16, %c0_17] : memref<2x128x128xbf16, #tpu.memory_space<vmem>>, vector<1x128x128xbf16>
    %67 = vector.shape_cast %66 : vector<1x128x128xbf16> to vector<128x128xbf16>
    %cst_18 = arith.constant dense<0.000000e+00> : vector<16x128xf32>
    %68 = tpu.matmul %64, %67, %cst_18 {dimension_numbers = #tpu.dot_dimension_numbers<[1], [0], [0], [1], [0, 0, 1, 1], [], []>} : vector<16x128xbf16>, vector<128x128xbf16>, vector<16x128xf32> -> vector<16x128xf32>
    %69 = arith.index_cast %c0_i32_6 : i32 to index
    %c0_19 = arith.constant 0 : index
    %c0_20 = arith.constant 0 : index
    %70 = vector.load %arg8[%69, %c0_19, %c0_20] : memref<2x1x128xf32, #tpu.memory_space<vmem>>, vector<1x1x128xf32>
    %71 = vector.shape_cast %70 : vector<1x1x128xf32> to vector<1x128xf32>
    %72 = vector.broadcast %71 : vector<1x128xf32> to vector<16x128xf32>
    %73 = arith.addf %68, %72 : vector<16x128xf32>
    %74 = arith.truncf %35 : vector<16x128xf32> to vector<16x128xbf16>
    %75 = arith.index_cast %c0_i32_6 : i32 to index
    %c0_21 = arith.constant 0 : index
    %c0_22 = arith.constant 0 : index
    %76 = vector.load %arg9[%75, %c0_21, %c0_22] : memref<2x128x256xbf16, #tpu.memory_space<vmem>>, vector<1x128x256xbf16>
    %77 = vector.shape_cast %76 : vector<1x128x256xbf16> to vector<128x256xbf16>
    %cst_23 = arith.constant dense<0.000000e+00> : vector<16x256xf32>
    %78 = tpu.matmul %74, %77, %cst_23 {dimension_numbers = #tpu.dot_dimension_numbers<[1], [0], [0], [1], [0, 0, 1, 1], [], []>} : vector<16x128xbf16>, vector<128x256xbf16>, vector<16x256xf32> -> vector<16x256xf32>
    %79 = arith.index_cast %c0_i32_6 : i32 to index
    %c0_24 = arith.constant 0 : index
    %c0_25 = arith.constant 0 : index
    %80 = vector.load %arg10[%79, %c0_24, %c0_25] : memref<2x1x256xf32, #tpu.memory_space<vmem>>, vector<1x1x256xf32>
    %81 = vector.shape_cast %80 : vector<1x1x256xf32> to vector<1x256xf32>
    %82 = vector.broadcast %81 : vector<1x256xf32> to vector<16x256xf32>
    %83 = arith.addf %78, %82 : vector<16x256xf32>
    %84 = vector.shape_cast %73 : vector<16x128xf32> to vector<2x8x128xf32>
    %85 = arith.truncf %84 : vector<2x8x128xf32> to vector<2x8x128xbf16>
    %86 = vector.extract_strided_slice %83 {offsets = [0, 0], sizes = [16, 128], strides = [1, 1]} : vector<16x256xf32> to vector<16x128xf32>
    %87 = vector.shape_cast %86 : vector<16x128xf32> to vector<2x8x128xf32>
    %88 = arith.truncf %87 : vector<2x8x128xf32> to vector<2x8x128xbf16>
    %89 = vector.extract_strided_slice %83 {offsets = [0, 128], sizes = [16, 128], strides = [1, 1]} : vector<16x256xf32> to vector<16x128xf32>
    %90 = vector.shape_cast %89 : vector<16x128xf32> to vector<2x8x128xf32>
    %91 = arith.truncf %90 : vector<2x8x128xf32> to vector<2x8x128xbf16>
    %cst_26 = arith.constant 0.000000e+00 : f32
    %92 = vector.broadcast %cst_26 : f32 to vector<2x8x128xf32>
    %93 = vector.broadcast %13 : vector<1x1x128xbf16> to vector<2x8x128xbf16>
    %94 = arith.mulf %85, %93 : vector<2x8x128xbf16>
    "tpu.trace_start"() <{level = 10 : i32, message = "bqd,bkd->bqk"}> : () -> ()
    %cst_27 = arith.constant dense<0.000000e+00> : vector<2x8x8xf32>
    %95 = tpu.matmul %94, %88, %cst_27 {dimension_numbers = #tpu.dot_dimension_numbers<[2], [2], [1], [1], [0, 0, 0, 1, 1, 1], [0], [0]>} : vector<2x8x128xbf16>, vector<2x8x128xbf16>, vector<2x8x8xf32> -> vector<2x8x8xf32>
    "tpu.trace_stop"() : () -> ()
    %96 = arith.addf %95, %30 : vector<2x8x8xf32>
    %cst_28 = arith.constant dense<0xFF800000> : vector<2x8xf32>
    %97 = vector.multi_reduction <maximumf>, %96, %cst_28 [2] : vector<2x8x8xf32> to vector<2x8xf32>
    %98 = vector.shape_cast %97 : vector<2x8xf32> to vector<2x8x1xf32>
    %99 = vector.broadcast %98 : vector<2x8x1xf32> to vector<2x8x8xf32>
    %100 = arith.subf %96, %99 : vector<2x8x8xf32>
    %101 = math.exp %100 : vector<2x8x8xf32>
    %cst_29 = arith.constant dense<0.000000e+00> : vector<2x8xf32>
    %102 = vector.multi_reduction <add>, %101, %cst_29 [2] : vector<2x8x8xf32> to vector<2x8xf32>
    %103 = vector.shape_cast %102 : vector<2x8xf32> to vector<2x8x1xf32>
    %104 = tpu.reciprocal %103 {approx = true} : vector<2x8x1xf32> -> vector<2x8x1xf32>
    %105 = vector.broadcast %104 : vector<2x8x1xf32> to vector<2x8x8xf32>
    %106 = arith.mulf %101, %105 : vector<2x8x8xf32>
    %107 = arith.truncf %106 : vector<2x8x8xf32> to vector<2x8x8xbf16>
    %108 = vector.broadcast %13 : vector<1x1x128xbf16> to vector<2x8x128xbf16>
    %109 = arith.mulf %91, %108 : vector<2x8x128xbf16>
    "tpu.trace_start"() <{level = 10 : i32, message = "bqk,bkd->bqd"}> : () -> ()
    %cst_30 = arith.constant dense<0.000000e+00> : vector<2x8x128xf32>
    %110 = tpu.matmul %107, %109, %cst_30 {dimension_numbers = #tpu.dot_dimension_numbers<[2], [1], [1], [2], [0, 0, 0, 1, 1, 2], [0], [0]>} : vector<2x8x8xbf16>, vector<2x8x128xbf16>, vector<2x8x128xf32> -> vector<2x8x128xf32>
    "tpu.trace_stop"() : () -> ()
    %111 = arith.addf %92, %110 : vector<2x8x128xf32>
    %112 = vector.broadcast %21 : vector<1x1x128xbf16> to vector<2x8x128xbf16>
    %113 = arith.mulf %85, %112 : vector<2x8x128xbf16>
    "tpu.trace_start"() <{level = 10 : i32, message = "bqd,bkd->bqk"}> : () -> ()
    %cst_31 = arith.constant dense<0.000000e+00> : vector<2x8x8xf32>
    %114 = tpu.matmul %113, %88, %cst_31 {dimension_numbers = #tpu.dot_dimension_numbers<[2], [2], [1], [1], [0, 0, 0, 1, 1, 1], [0], [0]>} : vector<2x8x128xbf16>, vector<2x8x128xbf16>, vector<2x8x8xf32> -> vector<2x8x8xf32>
    "tpu.trace_stop"() : () -> ()
    %115 = arith.addf %114, %30 : vector<2x8x8xf32>
    %cst_32 = arith.constant dense<0xFF800000> : vector<2x8xf32>
    %116 = vector.multi_reduction <maximumf>, %115, %cst_32 [2] : vector<2x8x8xf32> to vector<2x8xf32>
    %117 = vector.shape_cast %116 : vector<2x8xf32> to vector<2x8x1xf32>
    %118 = vector.broadcast %117 : vector<2x8x1xf32> to vector<2x8x8xf32>
    %119 = arith.subf %115, %118 : vector<2x8x8xf32>
    %120 = math.exp %119 : vector<2x8x8xf32>
    %cst_33 = arith.constant dense<0.000000e+00> : vector<2x8xf32>
    %121 = vector.multi_reduction <add>, %120, %cst_33 [2] : vector<2x8x8xf32> to vector<2x8xf32>
    %122 = vector.shape_cast %121 : vector<2x8xf32> to vector<2x8x1xf32>
    %123 = tpu.reciprocal %122 {approx = true} : vector<2x8x1xf32> -> vector<2x8x1xf32>
    %124 = vector.broadcast %123 : vector<2x8x1xf32> to vector<2x8x8xf32>
    %125 = arith.mulf %120, %124 : vector<2x8x8xf32>
    %126 = arith.truncf %125 : vector<2x8x8xf32> to vector<2x8x8xbf16>
    %127 = vector.broadcast %21 : vector<1x1x128xbf16> to vector<2x8x128xbf16>
    %128 = arith.mulf %91, %127 : vector<2x8x128xbf16>
    "tpu.trace_start"() <{level = 10 : i32, message = "bqk,bkd->bqd"}> : () -> ()
    %cst_34 = arith.constant dense<0.000000e+00> : vector<2x8x128xf32>
    %129 = tpu.matmul %126, %128, %cst_34 {dimension_numbers = #tpu.dot_dimension_numbers<[2], [1], [1], [2], [0, 0, 0, 1, 1, 2], [0], [0]>} : vector<2x8x8xbf16>, vector<2x8x128xbf16>, vector<2x8x128xf32> -> vector<2x8x128xf32>
    "tpu.trace_stop"() : () -> ()
    %130 = arith.addf %111, %129 : vector<2x8x128xf32>
    %131 = vector.shape_cast %130 : vector<2x8x128xf32> to vector<16x128xf32>
    %132 = arith.truncf %131 : vector<16x128xf32> to vector<16x128xbf16>
    %133 = arith.index_cast %c0_i32_6 : i32 to index
    %c0_35 = arith.constant 0 : index
    %c0_36 = arith.constant 0 : index
    %134 = vector.load %arg11[%133, %c0_35, %c0_36] : memref<2x128x128xbf16, #tpu.memory_space<vmem>>, vector<1x128x128xbf16>
    %135 = vector.shape_cast %134 : vector<1x128x128xbf16> to vector<128x128xbf16>
    %cst_37 = arith.constant dense<0.000000e+00> : vector<16x128xf32>
    %136 = tpu.matmul %132, %135, %cst_37 {dimension_numbers = #tpu.dot_dimension_numbers<[1], [0], [0], [1], [0, 0, 1, 1], [], []>} : vector<16x128xbf16>, vector<128x128xbf16>, vector<16x128xf32> -> vector<16x128xf32>
    %137 = arith.index_cast %c0_i32_6 : i32 to index
    %c0_38 = arith.constant 0 : index
    %c0_39 = arith.constant 0 : index
    %138 = vector.load %arg12[%137, %c0_38, %c0_39] : memref<2x1x128xf32, #tpu.memory_space<vmem>>, vector<1x1x128xf32>
    %139 = vector.shape_cast %138 : vector<1x1x128xf32> to vector<1x128xf32>
    %140 = vector.broadcast %139 : vector<1x128xf32> to vector<16x128xf32>
    %141 = arith.addf %136, %140 : vector<16x128xf32>
    %142 = arith.addf %141, %35 : vector<16x128xf32>
    %143 = arith.index_cast %c0_i32_6 : i32 to index
    %c0_40 = arith.constant 0 : index
    %c0_41 = arith.constant 0 : index
    %144 = vector.load %arg13[%143, %c0_40, %c0_41] : memref<2x1x128xf32, #tpu.memory_space<vmem>>, vector<1x1x128xf32>
    %145 = vector.shape_cast %144 : vector<1x1x128xf32> to vector<1x128xf32>
    %146 = arith.index_cast %c0_i32_6 : i32 to index
    %c0_42 = arith.constant 0 : index
    %c0_43 = arith.constant 0 : index
    %147 = vector.load %arg14[%146, %c0_42, %c0_43] : memref<2x1x128xf32, #tpu.memory_space<vmem>>, vector<1x1x128xf32>
    %148 = vector.shape_cast %147 : vector<1x1x128xf32> to vector<1x128xf32>
    %cst_44 = arith.constant dense<0.000000e+00> : vector<16xf32>
    %149 = vector.multi_reduction <add>, %142, %cst_44 [1] : vector<16x128xf32> to vector<16xf32>
    %150 = vector.shape_cast %149 : vector<16xf32> to vector<16x1xf32>
    %cst_45 = arith.constant 3.125000e-02 : f32
    %151 = vector.broadcast %cst_45 : f32 to vector<16x1xf32>
    %152 = arith.mulf %150, %151 : vector<16x1xf32>
    %153 = vector.broadcast %152 : vector<16x1xf32> to vector<16x128xf32>
    %154 = arith.subf %142, %153 : vector<16x128xf32>
    %155 = vector.broadcast %4 : vector<1x128xf32> to vector<16x128xf32>
    %156 = arith.mulf %154, %155 : vector<16x128xf32>
    %157 = arith.mulf %156, %156 : vector<16x128xf32>
    %cst_46 = arith.constant dense<0.000000e+00> : vector<16xf32>
    %158 = vector.multi_reduction <add>, %157, %cst_46 [1] : vector<16x128xf32> to vector<16xf32>
    %159 = vector.shape_cast %158 : vector<16xf32> to vector<16x1xf32>
    %cst_47 = arith.constant 3.125000e-02 : f32
    %160 = vector.broadcast %cst_47 : f32 to vector<16x1xf32>
    %161 = arith.mulf %159, %160 : vector<16x1xf32>
    %cst_48 = arith.constant 9.99999993E-9 : f32
    %162 = vector.broadcast %cst_48 : f32 to vector<16x1xf32>
    %163 = arith.addf %161, %162 : vector<16x1xf32>
    %164 = math.rsqrt %163 : vector<16x1xf32>
    %165 = vector.broadcast %164 : vector<16x1xf32> to vector<16x128xf32>
    %166 = arith.mulf %156, %165 : vector<16x128xf32>
    %167 = vector.broadcast %145 : vector<1x128xf32> to vector<16x128xf32>
    %168 = arith.mulf %166, %167 : vector<16x128xf32>
    %169 = vector.broadcast %148 : vector<1x128xf32> to vector<16x128xf32>
    %170 = arith.addf %168, %169 : vector<16x128xf32>
    %171 = arith.truncf %170 : vector<16x128xf32> to vector<16x128xbf16>
    %172 = arith.index_cast %c0_i32_6 : i32 to index
    %c0_49 = arith.constant 0 : index
    %c0_50 = arith.constant 0 : index
    %173 = vector.load %arg15[%172, %c0_49, %c0_50] : memref<2x128x128xbf16, #tpu.memory_space<vmem>>, vector<1x128x128xbf16>
    %174 = vector.shape_cast %173 : vector<1x128x128xbf16> to vector<128x128xbf16>
    %cst_51 = arith.constant dense<0.000000e+00> : vector<16x128xf32>
    %175 = tpu.matmul %171, %174, %cst_51 {dimension_numbers = #tpu.dot_dimension_numbers<[1], [0], [0], [1], [0, 0, 1, 1], [], []>} : vector<16x128xbf16>, vector<128x128xbf16>, vector<16x128xf32> -> vector<16x128xf32>
    %176 = arith.index_cast %c0_i32_6 : i32 to index
    %c0_52 = arith.constant 0 : index
    %c0_53 = arith.constant 0 : index
    %177 = vector.load %arg16[%176, %c0_52, %c0_53] : memref<2x1x128xf32, #tpu.memory_space<vmem>>, vector<1x1x128xf32>
    %178 = vector.shape_cast %177 : vector<1x1x128xf32> to vector<1x128xf32>
    %179 = vector.broadcast %178 : vector<1x128xf32> to vector<16x128xf32>
    %180 = arith.addf %175, %179 : vector<16x128xf32>
    %cst_54 = arith.constant 0.000000e+00 : f32
    %181 = vector.broadcast %cst_54 : f32 to vector<16x128xf32>
    %182 = arith.maximumf %180, %181 : vector<16x128xf32>
    %183 = arith.truncf %182 : vector<16x128xf32> to vector<16x128xbf16>
    %184 = arith.index_cast %c0_i32_6 : i32 to index
    %c0_55 = arith.constant 0 : index
    %c0_56 = arith.constant 0 : index
    %185 = vector.load %arg17[%184, %c0_55, %c0_56] : memref<2x128x128xbf16, #tpu.memory_space<vmem>>, vector<1x128x128xbf16>
    %186 = vector.shape_cast %185 : vector<1x128x128xbf16> to vector<128x128xbf16>
    %cst_57 = arith.constant dense<0.000000e+00> : vector<16x128xf32>
    %187 = tpu.matmul %183, %186, %cst_57 {dimension_numbers = #tpu.dot_dimension_numbers<[1], [0], [0], [1], [0, 0, 1, 1], [], []>} : vector<16x128xbf16>, vector<128x128xbf16>, vector<16x128xf32> -> vector<16x128xf32>
    %188 = arith.index_cast %c0_i32_6 : i32 to index
    %c0_58 = arith.constant 0 : index
    %c0_59 = arith.constant 0 : index
    %189 = vector.load %arg18[%188, %c0_58, %c0_59] : memref<2x1x128xf32, #tpu.memory_space<vmem>>, vector<1x1x128xf32>
    %190 = vector.shape_cast %189 : vector<1x1x128xf32> to vector<1x128xf32>
    %191 = vector.broadcast %190 : vector<1x128xf32> to vector<16x128xf32>
    %192 = arith.addf %187, %191 : vector<16x128xf32>
    %193 = arith.addf %192, %142 : vector<16x128xf32>
    %c1_i32 = arith.constant 1 : i32
    %194 = vector.broadcast %31 : vector<16x1xf32> to vector<16x128xf32>
    %195 = arith.mulf %193, %194 : vector<16x128xf32>
    %196 = arith.index_cast %c1_i32 : i32 to index
    %c0_60 = arith.constant 0 : index
    %c0_61 = arith.constant 0 : index
    %197 = vector.load %arg5[%196, %c0_60, %c0_61] : memref<2x1x128xf32, #tpu.memory_space<vmem>>, vector<1x1x128xf32>
    %198 = vector.shape_cast %197 : vector<1x1x128xf32> to vector<1x128xf32>
    %199 = arith.index_cast %c1_i32 : i32 to index
    %c0_62 = arith.constant 0 : index
    %c0_63 = arith.constant 0 : index
    %200 = vector.load %arg6[%199, %c0_62, %c0_63] : memref<2x1x128xf32, #tpu.memory_space<vmem>>, vector<1x1x128xf32>
    %201 = vector.shape_cast %200 : vector<1x1x128xf32> to vector<1x128xf32>
    %cst_64 = arith.constant dense<0.000000e+00> : vector<16xf32>
    %202 = vector.multi_reduction <add>, %195, %cst_64 [1] : vector<16x128xf32> to vector<16xf32>
    %203 = vector.shape_cast %202 : vector<16xf32> to vector<16x1xf32>
    %cst_65 = arith.constant 3.125000e-02 : f32
    %204 = vector.broadcast %cst_65 : f32 to vector<16x1xf32>
    %205 = arith.mulf %203, %204 : vector<16x1xf32>
    %206 = vector.broadcast %205 : vector<16x1xf32> to vector<16x128xf32>
    %207 = arith.subf %195, %206 : vector<16x128xf32>
    %208 = vector.broadcast %4 : vector<1x128xf32> to vector<16x128xf32>
    %209 = arith.mulf %207, %208 : vector<16x128xf32>
    %210 = arith.mulf %209, %209 : vector<16x128xf32>
    %cst_66 = arith.constant dense<0.000000e+00> : vector<16xf32>
    %211 = vector.multi_reduction <add>, %210, %cst_66 [1] : vector<16x128xf32> to vector<16xf32>
    %212 = vector.shape_cast %211 : vector<16xf32> to vector<16x1xf32>
    %cst_67 = arith.constant 3.125000e-02 : f32
    %213 = vector.broadcast %cst_67 : f32 to vector<16x1xf32>
    %214 = arith.mulf %212, %213 : vector<16x1xf32>
    %cst_68 = arith.constant 9.99999993E-9 : f32
    %215 = vector.broadcast %cst_68 : f32 to vector<16x1xf32>
    %216 = arith.addf %214, %215 : vector<16x1xf32>
    %217 = math.rsqrt %216 : vector<16x1xf32>
    %218 = vector.broadcast %217 : vector<16x1xf32> to vector<16x128xf32>
    %219 = arith.mulf %209, %218 : vector<16x128xf32>
    %220 = vector.broadcast %198 : vector<1x128xf32> to vector<16x128xf32>
    %221 = arith.mulf %219, %220 : vector<16x128xf32>
    %222 = vector.broadcast %201 : vector<1x128xf32> to vector<16x128xf32>
    %223 = arith.addf %221, %222 : vector<16x128xf32>
    %224 = arith.truncf %223 : vector<16x128xf32> to vector<16x128xbf16>
    %225 = arith.index_cast %c1_i32 : i32 to index
    %c0_69 = arith.constant 0 : index
    %c0_70 = arith.constant 0 : index
    %226 = vector.load %arg7[%225, %c0_69, %c0_70] : memref<2x128x128xbf16, #tpu.memory_space<vmem>>, vector<1x128x128xbf16>
    %227 = vector.shape_cast %226 : vector<1x128x128xbf16> to vector<128x128xbf16>
    %cst_71 = arith.constant dense<0.000000e+00> : vector<16x128xf32>
    %228 = tpu.matmul %224, %227, %cst_71 {dimension_numbers = #tpu.dot_dimension_numbers<[1], [0], [0], [1], [0, 0, 1, 1], [], []>} : vector<16x128xbf16>, vector<128x128xbf16>, vector<16x128xf32> -> vector<16x128xf32>
    %229 = arith.index_cast %c1_i32 : i32 to index
    %c0_72 = arith.constant 0 : index
    %c0_73 = arith.constant 0 : index
    %230 = vector.load %arg8[%229, %c0_72, %c0_73] : memref<2x1x128xf32, #tpu.memory_space<vmem>>, vector<1x1x128xf32>
    %231 = vector.shape_cast %230 : vector<1x1x128xf32> to vector<1x128xf32>
    %232 = vector.broadcast %231 : vector<1x128xf32> to vector<16x128xf32>
    %233 = arith.addf %228, %232 : vector<16x128xf32>
    %234 = arith.truncf %195 : vector<16x128xf32> to vector<16x128xbf16>
    %235 = arith.index_cast %c1_i32 : i32 to index
    %c0_74 = arith.constant 0 : index
    %c0_75 = arith.constant 0 : index
    %236 = vector.load %arg9[%235, %c0_74, %c0_75] : memref<2x128x256xbf16, #tpu.memory_space<vmem>>, vector<1x128x256xbf16>
    %237 = vector.shape_cast %236 : vector<1x128x256xbf16> to vector<128x256xbf16>
    %cst_76 = arith.constant dense<0.000000e+00> : vector<16x256xf32>
    %238 = tpu.matmul %234, %237, %cst_76 {dimension_numbers = #tpu.dot_dimension_numbers<[1], [0], [0], [1], [0, 0, 1, 1], [], []>} : vector<16x128xbf16>, vector<128x256xbf16>, vector<16x256xf32> -> vector<16x256xf32>
    %239 = arith.index_cast %c1_i32 : i32 to index
    %c0_77 = arith.constant 0 : index
    %c0_78 = arith.constant 0 : index
    %240 = vector.load %arg10[%239, %c0_77, %c0_78] : memref<2x1x256xf32, #tpu.memory_space<vmem>>, vector<1x1x256xf32>
    %241 = vector.shape_cast %240 : vector<1x1x256xf32> to vector<1x256xf32>
    %242 = vector.broadcast %241 : vector<1x256xf32> to vector<16x256xf32>
    %243 = arith.addf %238, %242 : vector<16x256xf32>
    %244 = vector.shape_cast %233 : vector<16x128xf32> to vector<2x8x128xf32>
    %245 = arith.truncf %244 : vector<2x8x128xf32> to vector<2x8x128xbf16>
    %246 = vector.extract_strided_slice %243 {offsets = [0, 0], sizes = [16, 128], strides = [1, 1]} : vector<16x256xf32> to vector<16x128xf32>
    %247 = vector.shape_cast %246 : vector<16x128xf32> to vector<2x8x128xf32>
    %248 = arith.truncf %247 : vector<2x8x128xf32> to vector<2x8x128xbf16>
    %249 = vector.extract_strided_slice %243 {offsets = [0, 128], sizes = [16, 128], strides = [1, 1]} : vector<16x256xf32> to vector<16x128xf32>
    %250 = vector.shape_cast %249 : vector<16x128xf32> to vector<2x8x128xf32>
    %251 = arith.truncf %250 : vector<2x8x128xf32> to vector<2x8x128xbf16>
    %cst_79 = arith.constant 0.000000e+00 : f32
    %252 = vector.broadcast %cst_79 : f32 to vector<2x8x128xf32>
    %253 = vector.broadcast %13 : vector<1x1x128xbf16> to vector<2x8x128xbf16>
    %254 = arith.mulf %245, %253 : vector<2x8x128xbf16>
    "tpu.trace_start"() <{level = 10 : i32, message = "bqd,bkd->bqk"}> : () -> ()
    %cst_80 = arith.constant dense<0.000000e+00> : vector<2x8x8xf32>
    %255 = tpu.matmul %254, %248, %cst_80 {dimension_numbers = #tpu.dot_dimension_numbers<[2], [2], [1], [1], [0, 0, 0, 1, 1, 1], [0], [0]>} : vector<2x8x128xbf16>, vector<2x8x128xbf16>, vector<2x8x8xf32> -> vector<2x8x8xf32>
    "tpu.trace_stop"() : () -> ()
    %256 = arith.addf %255, %30 : vector<2x8x8xf32>
    %cst_81 = arith.constant dense<0xFF800000> : vector<2x8xf32>
    %257 = vector.multi_reduction <maximumf>, %256, %cst_81 [2] : vector<2x8x8xf32> to vector<2x8xf32>
    %258 = vector.shape_cast %257 : vector<2x8xf32> to vector<2x8x1xf32>
    %259 = vector.broadcast %258 : vector<2x8x1xf32> to vector<2x8x8xf32>
    %260 = arith.subf %256, %259 : vector<2x8x8xf32>
    %261 = math.exp %260 : vector<2x8x8xf32>
    %cst_82 = arith.constant dense<0.000000e+00> : vector<2x8xf32>
    %262 = vector.multi_reduction <add>, %261, %cst_82 [2] : vector<2x8x8xf32> to vector<2x8xf32>
    %263 = vector.shape_cast %262 : vector<2x8xf32> to vector<2x8x1xf32>
    %264 = tpu.reciprocal %263 {approx = true} : vector<2x8x1xf32> -> vector<2x8x1xf32>
    %265 = vector.broadcast %264 : vector<2x8x1xf32> to vector<2x8x8xf32>
    %266 = arith.mulf %261, %265 : vector<2x8x8xf32>
    %267 = arith.truncf %266 : vector<2x8x8xf32> to vector<2x8x8xbf16>
    %268 = vector.broadcast %13 : vector<1x1x128xbf16> to vector<2x8x128xbf16>
    %269 = arith.mulf %251, %268 : vector<2x8x128xbf16>
    "tpu.trace_start"() <{level = 10 : i32, message = "bqk,bkd->bqd"}> : () -> ()
    %cst_83 = arith.constant dense<0.000000e+00> : vector<2x8x128xf32>
    %270 = tpu.matmul %267, %269, %cst_83 {dimension_numbers = #tpu.dot_dimension_numbers<[2], [1], [1], [2], [0, 0, 0, 1, 1, 2], [0], [0]>} : vector<2x8x8xbf16>, vector<2x8x128xbf16>, vector<2x8x128xf32> -> vector<2x8x128xf32>
    "tpu.trace_stop"() : () -> ()
    %271 = arith.addf %252, %270 : vector<2x8x128xf32>
    %272 = vector.broadcast %21 : vector<1x1x128xbf16> to vector<2x8x128xbf16>
    %273 = arith.mulf %245, %272 : vector<2x8x128xbf16>
    "tpu.trace_start"() <{level = 10 : i32, message = "bqd,bkd->bqk"}> : () -> ()
    %cst_84 = arith.constant dense<0.000000e+00> : vector<2x8x8xf32>
    %274 = tpu.matmul %273, %248, %cst_84 {dimension_numbers = #tpu.dot_dimension_numbers<[2], [2], [1], [1], [0, 0, 0, 1, 1, 1], [0], [0]>} : vector<2x8x128xbf16>, vector<2x8x128xbf16>, vector<2x8x8xf32> -> vector<2x8x8xf32>
    "tpu.trace_stop"() : () -> ()
    %275 = arith.addf %274, %30 : vector<2x8x8xf32>
    %cst_85 = arith.constant dense<0xFF800000> : vector<2x8xf32>
    %276 = vector.multi_reduction <maximumf>, %275, %cst_85 [2] : vector<2x8x8xf32> to vector<2x8xf32>
    %277 = vector.shape_cast %276 : vector<2x8xf32> to vector<2x8x1xf32>
    %278 = vector.broadcast %277 : vector<2x8x1xf32> to vector<2x8x8xf32>
    %279 = arith.subf %275, %278 : vector<2x8x8xf32>
    %280 = math.exp %279 : vector<2x8x8xf32>
    %cst_86 = arith.constant dense<0.000000e+00> : vector<2x8xf32>
    %281 = vector.multi_reduction <add>, %280, %cst_86 [2] : vector<2x8x8xf32> to vector<2x8xf32>
    %282 = vector.shape_cast %281 : vector<2x8xf32> to vector<2x8x1xf32>
    %283 = tpu.reciprocal %282 {approx = true} : vector<2x8x1xf32> -> vector<2x8x1xf32>
    %284 = vector.broadcast %283 : vector<2x8x1xf32> to vector<2x8x8xf32>
    %285 = arith.mulf %280, %284 : vector<2x8x8xf32>
    %286 = arith.truncf %285 : vector<2x8x8xf32> to vector<2x8x8xbf16>
    %287 = vector.broadcast %21 : vector<1x1x128xbf16> to vector<2x8x128xbf16>
    %288 = arith.mulf %251, %287 : vector<2x8x128xbf16>
    "tpu.trace_start"() <{level = 10 : i32, message = "bqk,bkd->bqd"}> : () -> ()
    %cst_87 = arith.constant dense<0.000000e+00> : vector<2x8x128xf32>
    %289 = tpu.matmul %286, %288, %cst_87 {dimension_numbers = #tpu.dot_dimension_numbers<[2], [1], [1], [2], [0, 0, 0, 1, 1, 2], [0], [0]>} : vector<2x8x8xbf16>, vector<2x8x128xbf16>, vector<2x8x128xf32> -> vector<2x8x128xf32>
    "tpu.trace_stop"() : () -> ()
    %290 = arith.addf %271, %289 : vector<2x8x128xf32>
    %291 = vector.shape_cast %290 : vector<2x8x128xf32> to vector<16x128xf32>
    %292 = arith.truncf %291 : vector<16x128xf32> to vector<16x128xbf16>
    %293 = arith.index_cast %c1_i32 : i32 to index
    %c0_88 = arith.constant 0 : index
    %c0_89 = arith.constant 0 : index
    %294 = vector.load %arg11[%293, %c0_88, %c0_89] : memref<2x128x128xbf16, #tpu.memory_space<vmem>>, vector<1x128x128xbf16>
    %295 = vector.shape_cast %294 : vector<1x128x128xbf16> to vector<128x128xbf16>
    %cst_90 = arith.constant dense<0.000000e+00> : vector<16x128xf32>
    %296 = tpu.matmul %292, %295, %cst_90 {dimension_numbers = #tpu.dot_dimension_numbers<[1], [0], [0], [1], [0, 0, 1, 1], [], []>} : vector<16x128xbf16>, vector<128x128xbf16>, vector<16x128xf32> -> vector<16x128xf32>
    %297 = arith.index_cast %c1_i32 : i32 to index
    %c0_91 = arith.constant 0 : index
    %c0_92 = arith.constant 0 : index
    %298 = vector.load %arg12[%297, %c0_91, %c0_92] : memref<2x1x128xf32, #tpu.memory_space<vmem>>, vector<1x1x128xf32>
    %299 = vector.shape_cast %298 : vector<1x1x128xf32> to vector<1x128xf32>
    %300 = vector.broadcast %299 : vector<1x128xf32> to vector<16x128xf32>
    %301 = arith.addf %296, %300 : vector<16x128xf32>
    %302 = arith.addf %301, %195 : vector<16x128xf32>
    %303 = arith.index_cast %c1_i32 : i32 to index
    %c0_93 = arith.constant 0 : index
    %c0_94 = arith.constant 0 : index
    %304 = vector.load %arg13[%303, %c0_93, %c0_94] : memref<2x1x128xf32, #tpu.memory_space<vmem>>, vector<1x1x128xf32>
    %305 = vector.shape_cast %304 : vector<1x1x128xf32> to vector<1x128xf32>
    %306 = arith.index_cast %c1_i32 : i32 to index
    %c0_95 = arith.constant 0 : index
    %c0_96 = arith.constant 0 : index
    %307 = vector.load %arg14[%306, %c0_95, %c0_96] : memref<2x1x128xf32, #tpu.memory_space<vmem>>, vector<1x1x128xf32>
    %308 = vector.shape_cast %307 : vector<1x1x128xf32> to vector<1x128xf32>
    %cst_97 = arith.constant dense<0.000000e+00> : vector<16xf32>
    %309 = vector.multi_reduction <add>, %302, %cst_97 [1] : vector<16x128xf32> to vector<16xf32>
    %310 = vector.shape_cast %309 : vector<16xf32> to vector<16x1xf32>
    %cst_98 = arith.constant 3.125000e-02 : f32
    %311 = vector.broadcast %cst_98 : f32 to vector<16x1xf32>
    %312 = arith.mulf %310, %311 : vector<16x1xf32>
    %313 = vector.broadcast %312 : vector<16x1xf32> to vector<16x128xf32>
    %314 = arith.subf %302, %313 : vector<16x128xf32>
    %315 = vector.broadcast %4 : vector<1x128xf32> to vector<16x128xf32>
    %316 = arith.mulf %314, %315 : vector<16x128xf32>
    %317 = arith.mulf %316, %316 : vector<16x128xf32>
    %cst_99 = arith.constant dense<0.000000e+00> : vector<16xf32>
    %318 = vector.multi_reduction <add>, %317, %cst_99 [1] : vector<16x128xf32> to vector<16xf32>
    %319 = vector.shape_cast %318 : vector<16xf32> to vector<16x1xf32>
    %cst_100 = arith.constant 3.125000e-02 : f32
    %320 = vector.broadcast %cst_100 : f32 to vector<16x1xf32>
    %321 = arith.mulf %319, %320 : vector<16x1xf32>
    %cst_101 = arith.constant 9.99999993E-9 : f32
    %322 = vector.broadcast %cst_101 : f32 to vector<16x1xf32>
    %323 = arith.addf %321, %322 : vector<16x1xf32>
    %324 = math.rsqrt %323 : vector<16x1xf32>
    %325 = vector.broadcast %324 : vector<16x1xf32> to vector<16x128xf32>
    %326 = arith.mulf %316, %325 : vector<16x128xf32>
    %327 = vector.broadcast %305 : vector<1x128xf32> to vector<16x128xf32>
    %328 = arith.mulf %326, %327 : vector<16x128xf32>
    %329 = vector.broadcast %308 : vector<1x128xf32> to vector<16x128xf32>
    %330 = arith.addf %328, %329 : vector<16x128xf32>
    %331 = arith.truncf %330 : vector<16x128xf32> to vector<16x128xbf16>
    %332 = arith.index_cast %c1_i32 : i32 to index
    %c0_102 = arith.constant 0 : index
    %c0_103 = arith.constant 0 : index
    %333 = vector.load %arg15[%332, %c0_102, %c0_103] : memref<2x128x128xbf16, #tpu.memory_space<vmem>>, vector<1x128x128xbf16>
    %334 = vector.shape_cast %333 : vector<1x128x128xbf16> to vector<128x128xbf16>
    %cst_104 = arith.constant dense<0.000000e+00> : vector<16x128xf32>
    %335 = tpu.matmul %331, %334, %cst_104 {dimension_numbers = #tpu.dot_dimension_numbers<[1], [0], [0], [1], [0, 0, 1, 1], [], []>} : vector<16x128xbf16>, vector<128x128xbf16>, vector<16x128xf32> -> vector<16x128xf32>
    %336 = arith.index_cast %c1_i32 : i32 to index
    %c0_105 = arith.constant 0 : index
    %c0_106 = arith.constant 0 : index
    %337 = vector.load %arg16[%336, %c0_105, %c0_106] : memref<2x1x128xf32, #tpu.memory_space<vmem>>, vector<1x1x128xf32>
    %338 = vector.shape_cast %337 : vector<1x1x128xf32> to vector<1x128xf32>
    %339 = vector.broadcast %338 : vector<1x128xf32> to vector<16x128xf32>
    %340 = arith.addf %335, %339 : vector<16x128xf32>
    %cst_107 = arith.constant 0.000000e+00 : f32
    %341 = vector.broadcast %cst_107 : f32 to vector<16x128xf32>
    %342 = arith.maximumf %340, %341 : vector<16x128xf32>
    %343 = arith.truncf %342 : vector<16x128xf32> to vector<16x128xbf16>
    %344 = arith.index_cast %c1_i32 : i32 to index
    %c0_108 = arith.constant 0 : index
    %c0_109 = arith.constant 0 : index
    %345 = vector.load %arg17[%344, %c0_108, %c0_109] : memref<2x128x128xbf16, #tpu.memory_space<vmem>>, vector<1x128x128xbf16>
    %346 = vector.shape_cast %345 : vector<1x128x128xbf16> to vector<128x128xbf16>
    %cst_110 = arith.constant dense<0.000000e+00> : vector<16x128xf32>
    %347 = tpu.matmul %343, %346, %cst_110 {dimension_numbers = #tpu.dot_dimension_numbers<[1], [0], [0], [1], [0, 0, 1, 1], [], []>} : vector<16x128xbf16>, vector<128x128xbf16>, vector<16x128xf32> -> vector<16x128xf32>
    %348 = arith.index_cast %c1_i32 : i32 to index
    %c0_111 = arith.constant 0 : index
    %c0_112 = arith.constant 0 : index
    %349 = vector.load %arg18[%348, %c0_111, %c0_112] : memref<2x1x128xf32, #tpu.memory_space<vmem>>, vector<1x1x128xf32>
    %350 = vector.shape_cast %349 : vector<1x1x128xf32> to vector<1x128xf32>
    %351 = vector.broadcast %350 : vector<1x128xf32> to vector<16x128xf32>
    %352 = arith.addf %347, %351 : vector<16x128xf32>
    %353 = arith.addf %352, %302 : vector<16x128xf32>
    %c2_i32 = arith.constant 2 : i32
    %354 = vector.shape_cast %353 : vector<16x128xf32> to vector<2x8x128xf32>
    %c0_113 = arith.constant 0 : index
    %c0_114 = arith.constant 0 : index
    %355 = vector.load %arg3[%c0_113, %c0_114] : memref<16x128xbf16, #tpu.memory_space<vmem>>, vector<16x128xbf16>
    %356 = arith.extf %355 : vector<16x128xbf16> to vector<16x128xf32>
    %357 = vector.shape_cast %356 : vector<16x128xf32> to vector<2x8x128xf32>
    %c0_115 = arith.constant 0 : index
    %c0_116 = arith.constant 0 : index
    %358 = vector.load %arg4[%c0_115, %c0_116] : memref<16x128xbf16, #tpu.memory_space<vmem>>, vector<16x128xbf16>
    %359 = arith.extf %358 : vector<16x128xbf16> to vector<16x128xf32>
    %360 = vector.shape_cast %359 : vector<16x128xf32> to vector<2x8x128xf32>
    %361 = arith.mulf %354, %357 : vector<2x8x128xf32>
    %cst_117 = arith.constant dense<0.000000e+00> : vector<2x8xf32>
    %362 = vector.multi_reduction <add>, %361, %cst_117 [2] : vector<2x8x128xf32> to vector<2x8xf32>
    %c0_118 = arith.constant 0 : index
    %c0_119 = arith.constant 0 : index
    %363 = vector.load %arg19[%c0_118, %c0_119] : memref<2x8xf32, #tpu.memory_space<vmem>>, vector<2x8xf32>
    tpu.vector_store %arg19[%c0_118, %c0_119], %362 {strides = array<i32>} : memref<2x8xf32, #tpu.memory_space<vmem>>, vector<2x8xf32>,
    %364 = arith.mulf %354, %360 : vector<2x8x128xf32>
    %cst_120 = arith.constant dense<0.000000e+00> : vector<2x8xf32>
    %365 = vector.multi_reduction <add>, %364, %cst_120 [2] : vector<2x8x128xf32> to vector<2x8xf32>
    %c0_121 = arith.constant 0 : index
    %c0_122 = arith.constant 0 : index
    %366 = vector.load %arg20[%c0_121, %c0_122] : memref<2x8xf32, #tpu.memory_space<vmem>>, vector<2x8xf32>
    tpu.vector_store %arg20[%c0_121, %c0_122], %365 {strides = array<i32>} : memref<2x8xf32, #tpu.memory_space<vmem>>, vector<2x8xf32>,
    return
  }
  func.func @transform_0(%arg0: i32) -> (i32, i32) {
    %c0_i32 = arith.constant 0 : i32
    %c0_i32_0 = arith.constant 0 : i32
    return %arg0, %c0_i32 : i32, i32
  }
  func.func @transform_1(%arg0: i32) -> (i32, i32) {
    %c0_i32 = arith.constant 0 : i32
    %c0_i32_0 = arith.constant 0 : i32
    return %arg0, %c0_i32 : i32, i32
  }
  func.func @transform_2(%arg0: i32) -> (i32, i32) {
    %c0_i32 = arith.constant 0 : i32
    %c0_i32_0 = arith.constant 0 : i32
    return %arg0, %c0_i32 : i32, i32
  }
  func.func @transform_3(%arg0: i32) -> (i32, i32) {
    %c0_i32 = arith.constant 0 : i32
    %c0_i32_0 = arith.constant 0 : i32
    return %arg0, %c0_i32 : i32, i32
  }
  func.func @transform_4(%arg0: i32) -> (i32, i32, i32) {
    %c0_i32 = arith.constant 0 : i32
    %c0_i32_0 = arith.constant 0 : i32
    %c0_i32_1 = arith.constant 0 : i32
    %c0_i32_2 = arith.constant 0 : i32
    return %c0_i32, %c0_i32_0, %c0_i32_1 : i32, i32, i32
  }
  func.func @transform_5(%arg0: i32) -> (i32, i32, i32) {
    %c0_i32 = arith.constant 0 : i32
    %c0_i32_0 = arith.constant 0 : i32
    %c0_i32_1 = arith.constant 0 : i32
    %c0_i32_2 = arith.constant 0 : i32
    return %c0_i32, %c0_i32_0, %c0_i32_1 : i32, i32, i32
  }
  func.func @transform_6(%arg0: i32) -> (i32, i32, i32) {
    %c0_i32 = arith.constant 0 : i32
    %c0_i32_0 = arith.constant 0 : i32
    %c0_i32_1 = arith.constant 0 : i32
    %c0_i32_2 = arith.constant 0 : i32
    return %c0_i32, %c0_i32_0, %c0_i32_1 : i32, i32, i32
  }
  func.func @transform_7(%arg0: i32) -> (i32, i32, i32) {
    %c0_i32 = arith.constant 0 : i32
    %c0_i32_0 = arith.constant 0 : i32
    %c0_i32_1 = arith.constant 0 : i32
    %c0_i32_2 = arith.constant 0 : i32
    return %c0_i32, %c0_i32_0, %c0_i32_1 : i32, i32, i32
  }
  func.func @transform_8(%arg0: i32) -> (i32, i32, i32) {
    %c0_i32 = arith.constant 0 : i32
    %c0_i32_0 = arith.constant 0 : i32
    %c0_i32_1 = arith.constant 0 : i32
    %c0_i32_2 = arith.constant 0 : i32
    return %c0_i32, %c0_i32_0, %c0_i32_1 : i32, i32, i32
  }
  func.func @transform_9(%arg0: i32) -> (i32, i32, i32) {
    %c0_i32 = arith.constant 0 : i32
    %c0_i32_0 = arith.constant 0 : i32
    %c0_i32_1 = arith.constant 0 : i32
    %c0_i32_2 = arith.constant 0 : i32
    return %c0_i32, %c0_i32_0, %c0_i32_1 : i32, i32, i32
  }
  func.func @transform_10(%arg0: i32) -> (i32, i32, i32) {
    %c0_i32 = arith.constant 0 : i32
    %c0_i32_0 = arith.constant 0 : i32
    %c0_i32_1 = arith.constant 0 : i32
    %c0_i32_2 = arith.constant 0 : i32
    return %c0_i32, %c0_i32_0, %c0_i32_1 : i32, i32, i32
  }
  func.func @transform_11(%arg0: i32) -> (i32, i32, i32) {
    %c0_i32 = arith.constant 0 : i32
    %c0_i32_0 = arith.constant 0 : i32
    %c0_i32_1 = arith.constant 0 : i32
    %c0_i32_2 = arith.constant 0 : i32
    return %c0_i32, %c0_i32_0, %c0_i32_1 : i32, i32, i32
  }
  func.func @transform_12(%arg0: i32) -> (i32, i32, i32) {
    %c0_i32 = arith.constant 0 : i32
    %c0_i32_0 = arith.constant 0 : i32
    %c0_i32_1 = arith.constant 0 : i32
    %c0_i32_2 = arith.constant 0 : i32
    return %c0_i32, %c0_i32_0, %c0_i32_1 : i32, i32, i32
  }
  func.func @transform_13(%arg0: i32) -> (i32, i32, i32) {
    %c0_i32 = arith.constant 0 : i32
    %c0_i32_0 = arith.constant 0 : i32
    %c0_i32_1 = arith.constant 0 : i32
    %c0_i32_2 = arith.constant 0 : i32
    return %c0_i32, %c0_i32_0, %c0_i32_1 : i32, i32, i32
  }
  func.func @transform_14(%arg0: i32) -> (i32, i32, i32) {
    %c0_i32 = arith.constant 0 : i32
    %c0_i32_0 = arith.constant 0 : i32
    %c0_i32_1 = arith.constant 0 : i32
    %c0_i32_2 = arith.constant 0 : i32
    return %c0_i32, %c0_i32_0, %c0_i32_1 : i32, i32, i32
  }
  func.func @transform_15(%arg0: i32) -> (i32, i32, i32) {
    %c0_i32 = arith.constant 0 : i32
    %c0_i32_0 = arith.constant 0 : i32
    %c0_i32_1 = arith.constant 0 : i32
    %c0_i32_2 = arith.constant 0 : i32
    return %c0_i32, %c0_i32_0, %c0_i32_1 : i32, i32, i32
  }
  func.func @transform_16(%arg0: i32) -> (i32, i32, i32) {
    %c0_i32 = arith.constant 0 : i32
    %c0_i32_0 = arith.constant 0 : i32
    %c0_i32_1 = arith.constant 0 : i32
    %c0_i32_2 = arith.constant 0 : i32
    return %c0_i32, %c0_i32_0, %c0_i32_1 : i32, i32, i32
  }
  func.func @transform_17(%arg0: i32) -> (i32, i32, i32) {
    %c0_i32 = arith.constant 0 : i32
    %c0_i32_0 = arith.constant 0 : i32
    %c0_i32_1 = arith.constant 0 : i32
    %c0_i32_2 = arith.constant 0 : i32
    return %c0_i32, %c0_i32_0, %c0_i32_1 : i32, i32, i32
  }
  func.func @transform_18(%arg0: i32) -> (i32, i32) {
    %c0_i32 = arith.constant 0 : i32
    %c0_i32_0 = arith.constant 0 : i32
    return %arg0, %c0_i32 : i32, i32
  }
  func.func @transform_19(%arg0: i32) -> (i32, i32) {
    %c0_i32 = arith.constant 0 : i32
    %c0_i32_0 = arith.constant 0 : i32
    return %arg0, %c0_i32 : i32, i32
  }
}

module attributes {stable_mosaic.version = 11 : i64} {
  func.func @sasrec_fused_kernel(%arg0: i32, %arg1: memref<16x128xbf16, #tpu.memory_space<vmem>>, %arg2: memref<16x1xf32, #tpu.memory_space<vmem>>, %arg3: memref<16x128xbf16, #tpu.memory_space<vmem>>, %arg4: memref<16x128xbf16, #tpu.memory_space<vmem>>, %arg5: memref<2x1x128xf32, #tpu.memory_space<vmem>>, %arg6: memref<2x1x128xf32, #tpu.memory_space<vmem>>, %arg7: memref<2x128x128xbf16, #tpu.memory_space<vmem>>, %arg8: memref<2x1x128xf32, #tpu.memory_space<vmem>>, %arg9: memref<2x128x256xbf16, #tpu.memory_space<vmem>>, %arg10: memref<2x1x256xf32, #tpu.memory_space<vmem>>, %arg11: memref<2x128x128xbf16, #tpu.memory_space<vmem>>, %arg12: memref<2x1x128xf32, #tpu.memory_space<vmem>>, %arg13: memref<2x1x128xf32, #tpu.memory_space<vmem>>, %arg14: memref<2x1x128xf32, #tpu.memory_space<vmem>>, %arg15: memref<2x128x128xbf16, #tpu.memory_space<vmem>>, %arg16: memref<2x1x128xf32, #tpu.memory_space<vmem>>, %arg17: memref<2x128x128xbf16, #tpu.memory_space<vmem>>, %arg18: memref<2x1x128xf32, #tpu.memory_space<vmem>>, %arg19: memref<2x8xf32, #tpu.memory_space<vmem>>, %arg20: memref<2x8xf32, #tpu.memory_space<vmem>>) attributes {dimension_semantics = [#tpu.dimension_semantics<parallel>], iteration_bounds = array<i64: 1>, scalar_prefetch = 0 : i64, scratch_operands = 0 : i64, tpu.core_type = #tpu.core_type<tc>, window_params = [{transform_indices = @transform_0, window_bounds = array<i64: 16, 128>}, {transform_indices = @transform_1, window_bounds = array<i64: 16, 1>}, {transform_indices = @transform_2, window_bounds = array<i64: 16, 128>}, {transform_indices = @transform_3, window_bounds = array<i64: 16, 128>}, {pipeline_mode = #tpu.pipeline_mode<synchronous>, transform_indices = @transform_4, window_bounds = array<i64: 2, 1, 128>}, {pipeline_mode = #tpu.pipeline_mode<synchronous>, transform_indices = @transform_5, window_bounds = array<i64: 2, 1, 128>}, {pipeline_mode = #tpu.pipeline_mode<synchronous>, transform_indices = @transform_6, window_bounds = array<i64: 2, 128, 128>}, {pipeline_mode = #tpu.pipeline_mode<synchronous>, transform_indices = @transform_7, window_bounds = array<i64: 2, 1, 128>}, {pipeline_mode = #tpu.pipeline_mode<synchronous>, transform_indices = @transform_8, window_bounds = array<i64: 2, 128, 256>}, {pipeline_mode = #tpu.pipeline_mode<synchronous>, transform_indices = @transform_9, window_bounds = array<i64: 2, 1, 256>}, {pipeline_mode = #tpu.pipeline_mode<synchronous>, transform_indices = @transform_10, window_bounds = array<i64: 2, 128, 128>}, {pipeline_mode = #tpu.pipeline_mode<synchronous>, transform_indices = @transform_11, window_bounds = array<i64: 2, 1, 128>}, {pipeline_mode = #tpu.pipeline_mode<synchronous>, transform_indices = @transform_12, window_bounds = array<i64: 2, 1, 128>}, {pipeline_mode = #tpu.pipeline_mode<synchronous>, transform_indices = @transform_13, window_bounds = array<i64: 2, 1, 128>}, {pipeline_mode = #tpu.pipeline_mode<synchronous>, transform_indices = @transform_14, window_bounds = array<i64: 2, 128, 128>}, {pipeline_mode = #tpu.pipeline_mode<synchronous>, transform_indices = @transform_15, window_bounds = array<i64: 2, 1, 128>}, {pipeline_mode = #tpu.pipeline_mode<synchronous>, transform_indices = @transform_16, window_bounds = array<i64: 2, 128, 128>}, {pipeline_mode = #tpu.pipeline_mode<synchronous>, transform_indices = @transform_17, window_bounds = array<i64: 2, 1, 128>}, {transform_indices = @transform_18, window_bounds = array<i64: 2, 8>}, {transform_indices = @transform_19, window_bounds = array<i64: 2, 8>}]} {
    %0 = tpu.iota {dimensions = array<i32: 1>} : vector<1x128xi32>
    %c32_i32 = arith.constant 32 : i32
    %1 = vector.broadcast %c32_i32 : i32 to vector<1x128xi32>
    %2 = arith.cmpi slt, %0, %1 : vector<1x128xi32>
    %3 = arith.extui %2 : vector<1x128xi1> to vector<1x128xi32>
    %4 = arith.sitofp %3 : vector<1x128xi32> to vector<1x128xf32>
    %5 = tpu.iota {dimensions = array<i32: 2>} : vector<1x1x128xi32>
    %c0_i32 = arith.constant 0 : i32
    %6 = vector.broadcast %c0_i32 : i32 to vector<1x1x128xi32>
    %7 = arith.cmpi sge, %5, %6 : vector<1x1x128xi32>
    %c16_i32 = arith.constant 16 : i32
    %8 = vector.broadcast %c16_i32 : i32 to vector<1x1x128xi32>
    %9 = arith.cmpi slt, %5, %8 : vector<1x1x128xi32>
    %10 = arith.andi %7, %9 : vector<1x1x128xi1>
    %11 = arith.extui %10 : vector<1x1x128xi1> to vector<1x1x128xi32>
    %12 = arith.sitofp %11 : vector<1x1x128xi32> to vector<1x1x128xf32>
    %13 = arith.truncf %12 : vector<1x1x128xf32> to vector<1x1x128xbf16>
    %c16_i32_0 = arith.constant 16 : i32
    %14 = vector.broadcast %c16_i32_0 : i32 to vector<1x1x128xi32>
    %15 = arith.cmpi sge, %5, %14 : vector<1x1x128xi32>
    %c32_i32_1 = arith.constant 32 : i32
    %16 = vector.broadcast %c32_i32_1 : i32 to vector<1x1x128xi32>
    %17 = arith.cmpi slt, %5, %16 : vector<1x1x128xi32>
    %18 = arith.andi %15, %17 : vector<1x1x128xi1>
    %19 = arith.extui %18 : vector<1x1x128xi1> to vector<1x1x128xi32>
    %20 = arith.sitofp %19 : vector<1x1x128xi32> to vector<1x1x128xf32>
    %21 = arith.truncf %20 : vector<1x1x128xf32> to vector<1x1x128xbf16>
    %22 = tpu.iota {dimensions = array<i32: 0>} : vector<8x8xi32>
    %23 = tpu.iota {dimensions = array<i32: 1>} : vector<8x8xi32>
    %24 = arith.cmpi sle, %23, %22 : vector<8x8xi32>
    %cst = arith.constant 0.000000e+00 : f32
    %cst_2 = arith.constant -1.000000e+30 : f32
    %25 = vector.broadcast %cst : f32 to vector<8x8xf32>
    %26 = vector.broadcast %cst_2 : f32 to vector<8x8xf32>
    %27 = arith.select %24, %25, %26 : vector<8x8xi1>, vector<8x8xf32>
    %28 = vector.shape_cast %27 : vector<8x8xf32> to vector<1x8x8xf32>
    %29 = vector.shape_cast %28 : vector<1x8x8xf32> to vector<1x8x8xf32>
    %30 = vector.broadcast %29 : vector<1x8x8xf32> to vector<2x8x8xf32>
    %c0 = arith.constant 0 : index
    %c0_3 = arith.constant 0 : index
    %31 = vector.load %arg2[%c0, %c0_3] : memref<16x1xf32, #tpu.memory_space<vmem>>, vector<16x1xf32>
    %c0_4 = arith.constant 0 : index
    %c0_5 = arith.constant 0 : index
    %32 = vector.load %arg1[%c0_4, %c0_5] : memref<16x128xbf16, #tpu.memory_space<vmem>>, vector<16x128xbf16>
    %33 = arith.extf %32 : vector<16x128xbf16> to vector<16x128xf32>
    %c0_i32_6 = arith.constant 0 : i32
    %34 = vector.broadcast %31 : vector<16x1xf32> to vector<16x128xf32>
    %35 = arith.mulf %33, %34 : vector<16x128xf32>
    %36 = arith.index_cast %c0_i32_6 : i32 to index
    %c0_7 = arith.constant 0 : index
    %c0_8 = arith.constant 0 : index
    %37 = vector.load %arg5[%36, %c0_7, %c0_8] : memref<2x1x128xf32, #tpu.memory_space<vmem>>, vector<1x1x128xf32>
    %38 = vector.shape_cast %37 : vector<1x1x128xf32> to vector<1x128xf32>
    %39 = arith.index_cast %c0_i32_6 : i32 to index
    %c0_9 = arith.constant 0 : index
    %c0_10 = arith.constant 0 : index
    %40 = vector.load %arg6[%39, %c0_9, %c0_10] : memref<2x1x128xf32, #tpu.memory_space<vmem>>, vector<1x1x128xf32>
    %41 = vector.shape_cast %40 : vector<1x1x128xf32> to vector<1x128xf32>
    %cst_11 = arith.constant dense<0.000000e+00> : vector<16xf32>
    %42 = vector.multi_reduction <add>, %35, %cst_11 [1] : vector<16x128xf32> to vector<16xf32>
    %43 = vector.shape_cast %42 : vector<16xf32> to vector<16x1xf32>
    %cst_12 = arith.constant 3.125000e-02 : f32
    %44 = vector.broadcast %cst_12 : f32 to vector<16x1xf32>
    %45 = arith.mulf %43, %44 : vector<16x1xf32>
    %46 = vector.broadcast %45 : vector<16x1xf32> to vector<16x128xf32>
    %47 = arith.subf %35, %46 : vector<16x128xf32>
    %48 = vector.broadcast %4 : vector<1x128xf32> to vector<16x128xf32>
    %49 = arith.mulf %47, %48 : vector<16x128xf32>
    %50 = arith.mulf %49, %49 : vector<16x128xf32>
    %cst_13 = arith.constant dense<0.000000e+00> : vector<16xf32>
    %51 = vector.multi_reduction <add>, %50, %cst_13 [1] : vector<16x128xf32> to vector<16xf32>
    %52 = vector.shape_cast %51 : vector<16xf32> to vector<16x1xf32>
    %cst_14 = arith.constant 3.125000e-02 : f32
    %53 = vector.broadcast %cst_14 : f32 to vector<16x1xf32>
    %54 = arith.mulf %52, %53 : vector<16x1xf32>
    %cst_15 = arith.constant 9.99999993E-9 : f32
    %55 = vector.broadcast %cst_15 : f32 to vector<16x1xf32>
    %56 = arith.addf %54, %55 : vector<16x1xf32>
    %57 = math.rsqrt %56 : vector<16x1xf32>
    %58 = vector.broadcast %57 : vector<16x1xf32> to vector<16x128xf32>
    %59 = arith.mulf %49, %58 : vector<16x128xf32>
    %60 = vector.broadcast %38 : vector<1x128xf32> to vector<16x128xf32>
    %61 = arith.mulf %59, %60 : vector<16x128xf32>
    %62 = vector.broadcast %41 : vector<1x128xf32> to vector<16x128xf32>
    %63 = arith.addf %61, %62 : vector<16x128xf32>
    %64 = arith.truncf %63 : vector<16x128xf32> to vector<16x128xbf16>
    %65 = arith.index_cast %c0_i32_6 : i32 to index
    %c0_16 = arith.constant 0 : index
    %c0_17 = arith.constant 0 : index
    %66 = vector.load %arg7[%65, %c0_16, %c0_17] : memref<2x128x128xbf16, #tpu.memory_space<vmem>>, vector<1x128x128xbf16>
    %67 = vector.shape_cast %66 : vector<1x128x128xbf16> to vector<128x128xbf16>
    %cst_18 = arith.constant dense<0.000000e+00> : vector<16x128xf32>
    %68 = tpu.matmul %64, %67, %cst_18 {dimension_numbers = #tpu.dot_dimension_numbers<[1], [0], [0], [1], [0, 0, 1, 1], [], []>} : vector<16x128xbf16>, vector<128x128xbf16>, vector<16x128xf32> -> vector<16x128xf32>
    %69 = arith.index_cast %c0_i32_6 : i32 to index
    %c0_19 = arith.constant 0 : index
    %c0_20 = arith.constant 0 : index
    %70 = vector.load %arg8[%69, %c0_19, %c0_20] : memref<2x1x128xf32, #tpu.memory_space<vmem>>, vector<1x1x128xf32>
    %71 = vector.shape_cast %70 : vector<1x1x128xf32> to vector<1x128xf32>
    %72 = vector.broadcast %71 : vector<1x128xf32> to vector<16x128xf32>
    %73 = arith.addf %68, %72 : vector<16x128xf32>
    %74 = arith.truncf %35 : vector<16x128xf32> to vector<16x128xbf16>
    %75 = arith.index_cast %c0_i32_6 : i32 to index
    %c0_21 = arith.constant 0 : index
    %c0_22 = arith.constant 0 : index
    %76 = vector.load %arg9[%75, %c0_21, %c0_22] : memref<2x128x256xbf16, #tpu.memory_space<vmem>>, vector<1x128x256xbf16>
    %77 = vector.shape_cast %76 : vector<1x128x256xbf16> to vector<128x256xbf16>
    %cst_23 = arith.constant dense<0.000000e+00> : vector<16x256xf32>
    %78 = tpu.matmul %74, %77, %cst_23 {dimension_numbers = #tpu.dot_dimension_numbers<[1], [0], [0], [1], [0, 0, 1, 1], [], []>} : vector<16x128xbf16>, vector<128x256xbf16>, vector<16x256xf32> -> vector<16x256xf32>
    %79 = arith.index_cast %c0_i32_6 : i32 to index
    %c0_24 = arith.constant 0 : index
    %c0_25 = arith.constant 0 : index
    %80 = vector.load %arg10[%79, %c0_24, %c0_25] : memref<2x1x256xf32, #tpu.memory_space<vmem>>, vector<1x1x256xf32>
    %81 = vector.shape_cast %80 : vector<1x1x256xf32> to vector<1x256xf32>
    %82 = vector.broadcast %81 : vector<1x256xf32> to vector<16x256xf32>
    %83 = arith.addf %78, %82 : vector<16x256xf32>
    %84 = vector.shape_cast %73 : vector<16x128xf32> to vector<2x8x128xf32>
    %85 = arith.truncf %84 : vector<2x8x128xf32> to vector<2x8x128xbf16>
    %86 = vector.extract_strided_slice %83 {offsets = [0, 0], sizes = [16, 128], strides = [1, 1]} : vector<16x256xf32> to vector<16x128xf32>
    %87 = vector.shape_cast %86 : vector<16x128xf32> to vector<2x8x128xf32>
    %88 = arith.truncf %87 : vector<2x8x128xf32> to vector<2x8x128xbf16>
    %89 = vector.extract_strided_slice %83 {offsets = [0, 128], sizes = [16, 128], strides = [1, 1]} : vector<16x256xf32> to vector<16x128xf32>
    %90 = vector.shape_cast %89 : vector<16x128xf32> to vector<2x8x128xf32>
    %91 = arith.truncf %90 : vector<2x8x128xf32> to vector<2x8x128xbf16>
    %cst_26 = arith.constant 0.000000e+00 : f32
    %92 = vector.broadcast %cst_26 : f32 to vector<2x8x128xf32>
    %93 = vector.broadcast %13 : vector<1x1x128xbf16> to vector<2x8x128xbf16>
    %94 = arith.mulf %85, %93 : vector<2x8x128xbf16>
    "tpu.trace_start"() <{level = 10 : i32, message = "bqd,bkd->bqk"}> : () -> ()
    %cst_27 = arith.constant dense<0.000000e+00> : vector<2x8x8xf32>
    %95 = tpu.matmul %94, %88, %cst_27 {dimension_numbers = #tpu.dot_dimension_numbers<[2], [2], [1], [1], [0, 0, 0, 1, 1, 1], [0], [0]>} : vector<2x8x128xbf16>, vector<2x8x128xbf16>, vector<2x8x8xf32> -> vector<2x8x8xf32>
    "tpu.trace_stop"() : () -> ()
    %96 = arith.addf %95, %30 : vector<2x8x8xf32>
    %cst_28 = arith.constant dense<0xFF800000> : vector<2x8xf32>
    %97 = vector.multi_reduction <maximumf>, %96, %cst_28 [2] : vector<2x8x8xf32> to vector<2x8xf32>
    %98 = vector.shape_cast %97 : vector<2x8xf32> to vector<2x8x1xf32>
    %99 = vector.broadcast %98 : vector<2x8x1xf32> to vector<2x8x8xf32>
    %100 = arith.subf %96, %99 : vector<2x8x8xf32>
    %101 = math.exp %100 : vector<2x8x8xf32>
    %cst_29 = arith.constant dense<0.000000e+00> : vector<2x8xf32>
    %102 = vector.multi_reduction <add>, %101, %cst_29 [2] : vector<2x8x8xf32> to vector<2x8xf32>
    %103 = vector.shape_cast %102 : vector<2x8xf32> to vector<2x8x1xf32>
    %104 = tpu.reciprocal %103 {approx = true} : vector<2x8x1xf32> -> vector<2x8x1xf32>
    %105 = vector.broadcast %104 : vector<2x8x1xf32> to vector<2x8x8xf32>
    %106 = arith.mulf %101, %105 : vector<2x8x8xf32>
    %107 = arith.truncf %106 : vector<2x8x8xf32> to vector<2x8x8xbf16>
    %108 = vector.broadcast %13 : vector<1x1x128xbf16> to vector<2x8x128xbf16>
    %109 = arith.mulf %91, %108 : vector<2x8x128xbf16>
    "tpu.trace_start"() <{level = 10 : i32, message = "bqk,bkd->bqd"}> : () -> ()
    %cst_30 = arith.constant dense<0.000000e+00> : vector<2x8x128xf32>
    %110 = tpu.matmul %107, %109, %cst_30 {dimension_numbers = #tpu.dot_dimension_numbers<[2], [1], [1], [2], [0, 0, 0, 1, 1, 2], [0], [0]>} : vector<2x8x8xbf16>, vector<2x8x128xbf16>, vector<2x8x128xf32> -> vector<2x8x128xf32>
    "tpu.trace_stop"() : () -> ()
    %111 = arith.addf %92, %110 : vector<2x8x128xf32>
    %112 = vector.broadcast %21 : vector<1x1x128xbf16> to vector<2x8x128xbf16>
    %113 = arith.mulf %85, %112 : vector<2x8x128xbf16>
    "tpu.trace_start"() <{level = 10 : i32, message = "bqd,bkd->bqk"}> : () -> ()
    %cst_31 = arith.constant dense<0.000000e+00> : vector<2x8x8xf32>
    %114 = tpu.matmul %113, %88, %cst_31 {dimension_numbers = #tpu.dot_dimension_numbers<[2], [2], [1], [1], [0, 0, 0, 1, 1, 1], [0], [0]>} : vector<2x8x128xbf16>, vector<2x8x128xbf16>, vector<2x8x8xf32> -> vector<2x8x8xf32>
    "tpu.trace_stop"() : () -> ()
    %115 = arith.addf %114, %30 : vector<2x8x8xf32>
    %cst_32 = arith.constant dense<0xFF800000> : vector<2x8xf32>
    %116 = vector.multi_reduction <maximumf>, %115, %cst_32 [2] : vector<2x8x8xf32> to vector<2x8xf32>
    %117 = vector.shape_cast %116 : vector<2x8xf32> to vector<2x8x1xf32>
    %118 = vector.broadcast %117 : vector<2x8x1xf32> to vector<2x8x8xf32>
    %119 = arith.subf %115, %118 : vector<2x8x8xf32>
    %120 = math.exp %119 : vector<2x8x8xf32>
    %cst_33 = arith.constant dense<0.000000e+00> : vector<2x8xf32>
    %121 = vector.multi_reduction <add>, %120, %cst_33 [2] : vector<2x8x8xf32> to vector<2x8xf32>
    %122 = vector.shape_cast %121 : vector<2x8xf32> to vector<2x8x1xf32>
    %123 = tpu.reciprocal %122 {approx = true} : vector<2x8x1xf32> -> vector<2x8x1xf32>
    %124 = vector.broadcast %123 : vector<2x8x1xf32> to vector<2x8x8xf32>
    %125 = arith.mulf %120, %124 : vector<2x8x8xf32>
    %126 = arith.truncf %125 : vector<2x8x8xf32> to vector<2x8x8xbf16>
    %127 = vector.broadcast %21 : vector<1x1x128xbf16> to vector<2x8x128xbf16>
    %128 = arith.mulf %91, %127 : vector<2x8x128xbf16>
    "tpu.trace_start"() <{level = 10 : i32, message = "bqk,bkd->bqd"}> : () -> ()
    %cst_34 = arith.constant dense<0.000000e+00> : vector<2x8x128xf32>
    %129 = tpu.matmul %126, %128, %cst_34 {dimension_numbers = #tpu.dot_dimension_numbers<[2], [1], [1], [2], [0, 0, 0, 1, 1, 2], [0], [0]>} : vector<2x8x8xbf16>, vector<2x8x128xbf16>, vector<2x8x128xf32> -> vector<2x8x128xf32>
    "tpu.trace_stop"() : () -> ()
    %130 = arith.addf %111, %129 : vector<2x8x128xf32>
    %131 = vector.shape_cast %130 : vector<2x8x128xf32> to vector<16x128xf32>
    %132 = arith.truncf %131 : vector<16x128xf32> to vector<16x128xbf16>
    %133 = arith.index_cast %c0_i32_6 : i32 to index
    %c0_35 = arith.constant 0 : index
    %c0_36 = arith.constant 0 : index
    %134 = vector.load %arg11[%133, %c0_35, %c0_36] : memref<2x128x128xbf16, #tpu.memory_space<vmem>>, vector<1x128x128xbf16>
    %135 = vector.shape_cast %134 : vector<1x128x128xbf16> to vector<128x128xbf16>
    %cst_37 = arith.constant dense<0.000000e+00> : vector<16x128xf32>
    %136 = tpu.matmul %132, %135, %cst_37 {dimension_numbers = #tpu.dot_dimension_numbers<[1], [0], [0], [1], [0, 0, 1, 1], [], []>} : vector<16x128xbf16>, vector<128x128xbf16>, vector<16x128xf32> -> vector<16x128xf32>
    %137 = arith.index_cast %c0_i32_6 : i32 to index
    %c0_38 = arith.constant 0 : index
    %c0_39 = arith.constant 0 : index
    %138 = vector.load %arg12[%137, %c0_38, %c0_39] : memref<2x1x128xf32, #tpu.memory_space<vmem>>, vector<1x1x128xf32>
    %139 = vector.shape_cast %138 : vector<1x1x128xf32> to vector<1x128xf32>
    %140 = vector.broadcast %139 : vector<1x128xf32> to vector<16x128xf32>
    %141 = arith.addf %136, %140 : vector<16x128xf32>
    %142 = arith.addf %141, %35 : vector<16x128xf32>
    %143 = arith.index_cast %c0_i32_6 : i32 to index
    %c0_40 = arith.constant 0 : index
    %c0_41 = arith.constant 0 : index
    %144 = vector.load %arg13[%143, %c0_40, %c0_41] : memref<2x1x128xf32, #tpu.memory_space<vmem>>, vector<1x1x128xf32>
    %145 = vector.shape_cast %144 : vector<1x1x128xf32> to vector<1x128xf32>
    %146 = arith.index_cast %c0_i32_6 : i32 to index
    %c0_42 = arith.constant 0 : index
    %c0_43 = arith.constant 0 : index
    %147 = vector.load %arg14[%146, %c0_42, %c0_43] : memref<2x1x128xf32, #tpu.memory_space<vmem>>, vector<1x1x128xf32>
    %148 = vector.shape_cast %147 : vector<1x1x128xf32> to vector<1x128xf32>
    %cst_44 = arith.constant dense<0.000000e+00> : vector<16xf32>
    %149 = vector.multi_reduction <add>, %142, %cst_44 [1] : vector<16x128xf32> to vector<16xf32>
    %150 = vector.shape_cast %149 : vector<16xf32> to vector<16x1xf32>
    %cst_45 = arith.constant 3.125000e-02 : f32
    %151 = vector.broadcast %cst_45 : f32 to vector<16x1xf32>
    %152 = arith.mulf %150, %151 : vector<16x1xf32>
    %153 = vector.broadcast %152 : vector<16x1xf32> to vector<16x128xf32>
    %154 = arith.subf %142, %153 : vector<16x128xf32>
    %155 = vector.broadcast %4 : vector<1x128xf32> to vector<16x128xf32>
    %156 = arith.mulf %154, %155 : vector<16x128xf32>
    %157 = arith.mulf %156, %156 : vector<16x128xf32>
    %cst_46 = arith.constant dense<0.000000e+00> : vector<16xf32>
    %158 = vector.multi_reduction <add>, %157, %cst_46 [1] : vector<16x128xf32> to vector<16xf32>
    %159 = vector.shape_cast %158 : vector<16xf32> to vector<16x1xf32>
    %cst_47 = arith.constant 3.125000e-02 : f32
    %160 = vector.broadcast %cst_47 : f32 to vector<16x1xf32>
    %161 = arith.mulf %159, %160 : vector<16x1xf32>
    %cst_48 = arith.constant 9.99999993E-9 : f32
    %162 = vector.broadcast %cst_48 : f32 to vector<16x1xf32>
    %163 = arith.addf %161, %162 : vector<16x1xf32>
    %164 = math.rsqrt %163 : vector<16x1xf32>
    %165 = vector.broadcast %164 : vector<16x1xf32> to vector<16x128xf32>
    %166 = arith.mulf %156, %165 : vector<16x128xf32>
    %167 = vector.broadcast %145 : vector<1x128xf32> to vector<16x128xf32>
    %168 = arith.mulf %166, %167 : vector<16x128xf32>
    %169 = vector.broadcast %148 : vector<1x128xf32> to vector<16x128xf32>
    %170 = arith.addf %168, %169 : vector<16x128xf32>
    %171 = arith.truncf %170 : vector<16x128xf32> to vector<16x128xbf16>
    %172 = arith.index_cast %c0_i32_6 : i32 to index
    %c0_49 = arith.constant 0 : index
    %c0_50 = arith.constant 0 : index
    %173 = vector.load %arg15[%172, %c0_49, %c0_50] : memref<2x128x128xbf16, #tpu.memory_space<vmem>>, vector<1x128x128xbf16>
    %174 = vector.shape_cast %173 : vector<1x128x128xbf16> to vector<128x128xbf16>
    %cst_51 = arith.constant dense<0.000000e+00> : vector<16x128xf32>
    %175 = tpu.matmul %171, %174, %cst_51 {dimension_numbers = #tpu.dot_dimension_numbers<[1], [0], [0], [1], [0, 0, 1, 1], [], []>} : vector<16x128xbf16>, vector<128x128xbf16>, vector<16x128xf32> -> vector<16x128xf32>
    %176 = arith.index_cast %c0_i32_6 : i32 to index
    %c0_52 = arith.constant 0 : index
    %c0_53 = arith.constant 0 : index
    %177 = vector.load %arg16[%176, %c0_52, %c0_53] : memref<2x1x128xf32, #tpu.memory_space<vmem>>, vector<1x1x128xf32>
    %178 = vector.shape_cast %177 : vector<1x1x128xf32> to vector<1x128xf32>
    %179 = vector.broadcast %178 : vector<1x128xf32> to vector<16x128xf32>
    %180 = arith.addf %175, %179 : vector<16x128xf32>
    %cst_54 = arith.constant 0.000000e+00 : f32
    %181 = vector.broadcast %cst_54 : f32 to vector<16x128xf32>
    %182 = arith.maximumf %180, %181 : vector<16x128xf32>
    %183 = arith.truncf %182 : vector<16x128xf32> to vector<16x128xbf16>
    %184 = arith.index_cast %c0_i32_6 : i32 to index
    %c0_55 = arith.constant 0 : index
    %c0_56 = arith.constant 0 : index
    %185 = vector.load %arg17[%184, %c0_55, %c0_56] : memref<2x128x128xbf16, #tpu.memory_space<vmem>>, vector<1x128x128xbf16>
    %186 = vector.shape_cast %185 : vector<1x128x128xbf16> to vector<128x128xbf16>
    %cst_57 = arith.constant dense<0.000000e+00> : vector<16x128xf32>
    %187 = tpu.matmul %183, %186, %cst_57 {dimension_numbers = #tpu.dot_dimension_numbers<[1], [0], [0], [1], [0, 0, 1, 1], [], []>} : vector<16x128xbf16>, vector<128x128xbf16>, vector<16x128xf32> -> vector<16x128xf32>
    %188 = arith.index_cast %c0_i32_6 : i32 to index
    %c0_58 = arith.constant 0 : index
    %c0_59 = arith.constant 0 : index
    %189 = vector.load %arg18[%188, %c0_58, %c0_59] : memref<2x1x128xf32, #tpu.memory_space<vmem>>, vector<1x1x128xf32>
    %190 = vector.shape_cast %189 : vector<1x1x128xf32> to vector<1x128xf32>
    %191 = vector.broadcast %190 : vector<1x128xf32> to vector<16x128xf32>
    %192 = arith.addf %187, %191 : vector<16x128xf32>
    %193 = arith.addf %192, %142 : vector<16x128xf32>
    %c1_i32 = arith.constant 1 : i32
    %194 = vector.broadcast %31 : vector<16x1xf32> to vector<16x128xf32>
    %195 = arith.mulf %193, %194 : vector<16x128xf32>
    %196 = arith.index_cast %c1_i32 : i32 to index
    %c0_60 = arith.constant 0 : index
    %c0_61 = arith.constant 0 : index
    %197 = vector.load %arg5[%196, %c0_60, %c0_61] : memref<2x1x128xf32, #tpu.memory_space<vmem>>, vector<1x1x128xf32>
    %198 = vector.shape_cast %197 : vector<1x1x128xf32> to vector<1x128xf32>
    %199 = arith.index_cast %c1_i32 : i32 to index
    %c0_62 = arith.constant 0 : index
    %c0_63 = arith.constant 0 : index
    %200 = vector.load %arg6[%199, %c0_62, %c0_63] : memref<2x1x128xf32, #tpu.memory_space<vmem>>, vector<1x1x128xf32>
    %201 = vector.shape_cast %200 : vector<1x1x128xf32> to vector<1x128xf32>
    %cst_64 = arith.constant dense<0.000000e+00> : vector<16xf32>
    %202 = vector.multi_reduction <add>, %195, %cst_64 [1] : vector<16x128xf32> to vector<16xf32>
    %203 = vector.shape_cast %202 : vector<16xf32> to vector<16x1xf32>
    %cst_65 = arith.constant 3.125000e-02 : f32
    %204 = vector.broadcast %cst_65 : f32 to vector<16x1xf32>
    %205 = arith.mulf %203, %204 : vector<16x1xf32>
    %206 = vector.broadcast %205 : vector<16x1xf32> to vector<16x128xf32>
    %207 = arith.subf %195, %206 : vector<16x128xf32>
    %208 = vector.broadcast %4 : vector<1x128xf32> to vector<16x128xf32>
    %209 = arith.mulf %207, %208 : vector<16x128xf32>
    %210 = arith.mulf %209, %209 : vector<16x128xf32>
    %cst_66 = arith.constant dense<0.000000e+00> : vector<16xf32>
    %211 = vector.multi_reduction <add>, %210, %cst_66 [1] : vector<16x128xf32> to vector<16xf32>
    %212 = vector.shape_cast %211 : vector<16xf32> to vector<16x1xf32>
    %cst_67 = arith.constant 3.125000e-02 : f32
    %213 = vector.broadcast %cst_67 : f32 to vector<16x1xf32>
    %214 = arith.mulf %212, %213 : vector<16x1xf32>
    %cst_68 = arith.constant 9.99999993E-9 : f32
    %215 = vector.broadcast %cst_68 : f32 to vector<16x1xf32>
    %216 = arith.addf %214, %215 : vector<16x1xf32>
    %217 = math.rsqrt %216 : vector<16x1xf32>
    %218 = vector.broadcast %217 : vector<16x1xf32> to vector<16x128xf32>
    %219 = arith.mulf %209, %218 : vector<16x128xf32>
    %220 = vector.broadcast %198 : vector<1x128xf32> to vector<16x128xf32>
    %221 = arith.mulf %219, %220 : vector<16x128xf32>
    %222 = vector.broadcast %201 : vector<1x128xf32> to vector<16x128xf32>
    %223 = arith.addf %221, %222 : vector<16x128xf32>
    %224 = arith.truncf %223 : vector<16x128xf32> to vector<16x128xbf16>
    %225 = arith.index_cast %c1_i32 : i32 to index
    %c0_69 = arith.constant 0 : index
    %c0_70 = arith.constant 0 : index
    %226 = vector.load %arg7[%225, %c0_69, %c0_70] : memref<2x128x128xbf16, #tpu.memory_space<vmem>>, vector<1x128x128xbf16>
    %227 = vector.shape_cast %226 : vector<1x128x128xbf16> to vector<128x128xbf16>
    %cst_71 = arith.constant dense<0.000000e+00> : vector<16x128xf32>
    %228 = tpu.matmul %224, %227, %cst_71 {dimension_numbers = #tpu.dot_dimension_numbers<[1], [0], [0], [1], [0, 0, 1, 1], [], []>} : vector<16x128xbf16>, vector<128x128xbf16>, vector<16x128xf32> -> vector<16x128xf32>
    %229 = arith.index_cast %c1_i32 : i32 to index
    %c0_72 = arith.constant 0 : index
    %c0_73 = arith.constant 0 : index
    %230 = vector.load %arg8[%229, %c0_72, %c0_73] : memref<2x1x128xf32, #tpu.memory_space<vmem>>, vector<1x1x128xf32>
    %231 = vector.shape_cast %230 : vector<1x1x128xf32> to vector<1x128xf32>
    %232 = vector.broadcast %231 : vector<1x128xf32> to vector<16x128xf32>
    %233 = arith.addf %228, %232 : vector<16x128xf32>
    %234 = arith.truncf %195 : vector<16x128xf32> to vector<16x128xbf16>
    %235 = arith.index_cast %c1_i32 : i32 to index
    %c0_74 = arith.constant 0 : index
    %c0_75 = arith.constant 0 : index
    %236 = vector.load %arg9[%235, %c0_74, %c0_75] : memref<2x128x256xbf16, #tpu.memory_space<vmem>>, vector<1x128x256xbf16>
    %237 = vector.shape_cast %236 : vector<1x128x256xbf16> to vector<128x256xbf16>
    %cst_76 = arith.constant dense<0.000000e+00> : vector<16x256xf32>
    %238 = tpu.matmul %234, %237, %cst_76 {dimension_numbers = #tpu.dot_dimension_numbers<[1], [0], [0], [1], [0, 0, 1, 1], [], []>} : vector<16x128xbf16>, vector<128x256xbf16>, vector<16x256xf32> -> vector<16x256xf32>
    %239 = arith.index_cast %c1_i32 : i32 to index
    %c0_77 = arith.constant 0 : index
    %c0_78 = arith.constant 0 : index
    %240 = vector.load %arg10[%239, %c0_77, %c0_78] : memref<2x1x256xf32, #tpu.memory_space<vmem>>, vector<1x1x256xf32>
    %241 = vector.shape_cast %240 : vector<1x1x256xf32> to vector<1x256xf32>
    %242 = vector.broadcast %241 : vector<1x256xf32> to vector<16x256xf32>
    %243 = arith.addf %238, %242 : vector<16x256xf32>
    %244 = vector.shape_cast %233 : vector<16x128xf32> to vector<2x8x128xf32>
    %245 = arith.truncf %244 : vector<2x8x128xf32> to vector<2x8x128xbf16>
    %246 = vector.extract_strided_slice %243 {offsets = [0, 0], sizes = [16, 128], strides = [1, 1]} : vector<16x256xf32> to vector<16x128xf32>
    %247 = vector.shape_cast %246 : vector<16x128xf32> to vector<2x8x128xf32>
    %248 = arith.truncf %247 : vector<2x8x128xf32> to vector<2x8x128xbf16>
    %249 = vector.extract_strided_slice %243 {offsets = [0, 128], sizes = [16, 128], strides = [1, 1]} : vector<16x256xf32> to vector<16x128xf32>
    %250 = vector.shape_cast %249 : vector<16x128xf32> to vector<2x8x128xf32>
    %251 = arith.truncf %250 : vector<2x8x128xf32> to vector<2x8x128xbf16>
    %cst_79 = arith.constant 0.000000e+00 : f32
    %252 = vector.broadcast %cst_79 : f32 to vector<2x8x128xf32>
    %253 = vector.broadcast %13 : vector<1x1x128xbf16> to vector<2x8x128xbf16>
    %254 = arith.mulf %245, %253 : vector<2x8x128xbf16>
    "tpu.trace_start"() <{level = 10 : i32, message = "bqd,bkd->bqk"}> : () -> ()
    %cst_80 = arith.constant dense<0.000000e+00> : vector<2x8x8xf32>
    %255 = tpu.matmul %254, %248, %cst_80 {dimension_numbers = #tpu.dot_dimension_numbers<[2], [2], [1], [1], [0, 0, 0, 1, 1, 1], [0], [0]>} : vector<2x8x128xbf16>, vector<2x8x128xbf16>, vector<2x8x8xf32> -> vector<2x8x8xf32>
    "tpu.trace_stop"() : () -> ()
    %256 = arith.addf %255, %30 : vector<2x8x8xf32>
    %cst_81 = arith.constant dense<0xFF800000> : vector<2x8xf32>
    %257 = vector.multi_reduction <maximumf>, %256, %cst_81 [2] : vector<2x8x8xf32> to vector<2x8xf32>
    %258 = vector.shape_cast %257 : vector<2x8xf32> to vector<2x8x1xf32>
    %259 = vector.broadcast %258 : vector<2x8x1xf32> to vector<2x8x8xf32>
    %260 = arith.subf %256, %259 : vector<2x8x8xf32>
    %261 = math.exp %260 : vector<2x8x8xf32>
    %cst_82 = arith.constant dense<0.000000e+00> : vector<2x8xf32>
    %262 = vector.multi_reduction <add>, %261, %cst_82 [2] : vector<2x8x8xf32> to vector<2x8xf32>
    %263 = vector.shape_cast %262 : vector<2x8xf32> to vector<2x8x1xf32>
    %264 = tpu.reciprocal %263 {approx = true} : vector<2x8x1xf32> -> vector<2x8x1xf32>
    %265 = vector.broadcast %264 : vector<2x8x1xf32> to vector<2x8x8xf32>
    %266 = arith.mulf %261, %265 : vector<2x8x8xf32>
    %267 = arith.truncf %266 : vector<2x8x8xf32> to vector<2x8x8xbf16>
    %268 = vector.broadcast %13 : vector<1x1x128xbf16> to vector<2x8x128xbf16>
    %269 = arith.mulf %251, %268 : vector<2x8x128xbf16>
    "tpu.trace_start"() <{level = 10 : i32, message = "bqk,bkd->bqd"}> : () -> ()
    %cst_83 = arith.constant dense<0.000000e+00> : vector<2x8x128xf32>
    %270 = tpu.matmul %267, %269, %cst_83 {dimension_numbers = #tpu.dot_dimension_numbers<[2], [1], [1], [2], [0, 0, 0, 1, 1, 2], [0], [0]>} : vector<2x8x8xbf16>, vector<2x8x128xbf16>, vector<2x8x128xf32> -> vector<2x8x128xf32>
    "tpu.trace_stop"() : () -> ()
    %271 = arith.addf %252, %270 : vector<2x8x128xf32>
    %272 = vector.broadcast %21 : vector<1x1x128xbf16> to vector<2x8x128xbf16>
    %273 = arith.mulf %245, %272 : vector<2x8x128xbf16>
    "tpu.trace_start"() <{level = 10 : i32, message = "bqd,bkd->bqk"}> : () -> ()
    %cst_84 = arith.constant dense<0.000000e+00> : vector<2x8x8xf32>
    %274 = tpu.matmul %273, %248, %cst_84 {dimension_numbers = #tpu.dot_dimension_numbers<[2], [2], [1], [1], [0, 0, 0, 1, 1, 1], [0], [0]>} : vector<2x8x128xbf16>, vector<2x8x128xbf16>, vector<2x8x8xf32> -> vector<2x8x8xf32>
    "tpu.trace_stop"() : () -> ()
    %275 = arith.addf %274, %30 : vector<2x8x8xf32>
    %cst_85 = arith.constant dense<0xFF800000> : vector<2x8xf32>
    %276 = vector.multi_reduction <maximumf>, %275, %cst_85 [2] : vector<2x8x8xf32> to vector<2x8xf32>
    %277 = vector.shape_cast %276 : vector<2x8xf32> to vector<2x8x1xf32>
    %278 = vector.broadcast %277 : vector<2x8x1xf32> to vector<2x8x8xf32>
    %279 = arith.subf %275, %278 : vector<2x8x8xf32>
    %280 = math.exp %279 : vector<2x8x8xf32>
    %cst_86 = arith.constant dense<0.000000e+00> : vector<2x8xf32>
    %281 = vector.multi_reduction <add>, %280, %cst_86 [2] : vector<2x8x8xf32> to vector<2x8xf32>
    %282 = vector.shape_cast %281 : vector<2x8xf32> to vector<2x8x1xf32>
    %283 = tpu.reciprocal %282 {approx = true} : vector<2x8x1xf32> -> vector<2x8x1xf32>
    %284 = vector.broadcast %283 : vector<2x8x1xf32> to vector<2x8x8xf32>
    %285 = arith.mulf %280, %284 : vector<2x8x8xf32>
    %286 = arith.truncf %285 : vector<2x8x8xf32> to vector<2x8x8xbf16>
    %287 = vector.broadcast %21 : vector<1x1x128xbf16> to vector<2x8x128xbf16>
    %288 = arith.mulf %251, %287 : vector<2x8x128xbf16>
    "tpu.trace_start"() <{level = 10 : i32, message = "bqk,bkd->bqd"}> : () -> ()
    %cst_87 = arith.constant dense<0.000000e+00> : vector<2x8x128xf32>
    %289 = tpu.matmul %286, %288, %cst_87 {dimension_numbers = #tpu.dot_dimension_numbers<[2], [1], [1], [2], [0, 0, 0, 1, 1, 2], [0], [0]>} : vector<2x8x8xbf16>, vector<2x8x128xbf16>, vector<2x8x128xf32> -> vector<2x8x128xf32>
    "tpu.trace_stop"() : () -> ()
    %290 = arith.addf %271, %289 : vector<2x8x128xf32>
    %291 = vector.shape_cast %290 : vector<2x8x128xf32> to vector<16x128xf32>
    %292 = arith.truncf %291 : vector<16x128xf32> to vector<16x128xbf16>
    %293 = arith.index_cast %c1_i32 : i32 to index
    %c0_88 = arith.constant 0 : index
    %c0_89 = arith.constant 0 : index
    %294 = vector.load %arg11[%293, %c0_88, %c0_89] : memref<2x128x128xbf16, #tpu.memory_space<vmem>>, vector<1x128x128xbf16>
    %295 = vector.shape_cast %294 : vector<1x128x128xbf16> to vector<128x128xbf16>
    %cst_90 = arith.constant dense<0.000000e+00> : vector<16x128xf32>
    %296 = tpu.matmul %292, %295, %cst_90 {dimension_numbers = #tpu.dot_dimension_numbers<[1], [0], [0], [1], [0, 0, 1, 1], [], []>} : vector<16x128xbf16>, vector<128x128xbf16>, vector<16x128xf32> -> vector<16x128xf32>
    %297 = arith.index_cast %c1_i32 : i32 to index
    %c0_91 = arith.constant 0 : index
    %c0_92 = arith.constant 0 : index
    %298 = vector.load %arg12[%297, %c0_91, %c0_92] : memref<2x1x128xf32, #tpu.memory_space<vmem>>, vector<1x1x128xf32>
    %299 = vector.shape_cast %298 : vector<1x1x128xf32> to vector<1x128xf32>
    %300 = vector.broadcast %299 : vector<1x128xf32> to vector<16x128xf32>
    %301 = arith.addf %296, %300 : vector<16x128xf32>
    %302 = arith.addf %301, %195 : vector<16x128xf32>
    %303 = arith.index_cast %c1_i32 : i32 to index
    %c0_93 = arith.constant 0 : index
    %c0_94 = arith.constant 0 : index
    %304 = vector.load %arg13[%303, %c0_93, %c0_94] : memref<2x1x128xf32, #tpu.memory_space<vmem>>, vector<1x1x128xf32>
    %305 = vector.shape_cast %304 : vector<1x1x128xf32> to vector<1x128xf32>
    %306 = arith.index_cast %c1_i32 : i32 to index
    %c0_95 = arith.constant 0 : index
    %c0_96 = arith.constant 0 : index
    %307 = vector.load %arg14[%306, %c0_95, %c0_96] : memref<2x1x128xf32, #tpu.memory_space<vmem>>, vector<1x1x128xf32>
    %308 = vector.shape_cast %307 : vector<1x1x128xf32> to vector<1x128xf32>
    %cst_97 = arith.constant dense<0.000000e+00> : vector<16xf32>
    %309 = vector.multi_reduction <add>, %302, %cst_97 [1] : vector<16x128xf32> to vector<16xf32>
    %310 = vector.shape_cast %309 : vector<16xf32> to vector<16x1xf32>
    %cst_98 = arith.constant 3.125000e-02 : f32
    %311 = vector.broadcast %cst_98 : f32 to vector<16x1xf32>
    %312 = arith.mulf %310, %311 : vector<16x1xf32>
    %313 = vector.broadcast %312 : vector<16x1xf32> to vector<16x128xf32>
    %314 = arith.subf %302, %313 : vector<16x128xf32>
    %315 = vector.broadcast %4 : vector<1x128xf32> to vector<16x128xf32>
    %316 = arith.mulf %314, %315 : vector<16x128xf32>
    %317 = arith.mulf %316, %316 : vector<16x128xf32>
    %cst_99 = arith.constant dense<0.000000e+00> : vector<16xf32>
    %318 = vector.multi_reduction <add>, %317, %cst_99 [1] : vector<16x128xf32> to vector<16xf32>
    %319 = vector.shape_cast %318 : vector<16xf32> to vector<16x1xf32>
    %cst_100 = arith.constant 3.125000e-02 : f32
    %320 = vector.broadcast %cst_100 : f32 to vector<16x1xf32>
    %321 = arith.mulf %319, %320 : vector<16x1xf32>
    %cst_101 = arith.constant 9.99999993E-9 : f32
    %322 = vector.broadcast %cst_101 : f32 to vector<16x1xf32>
    %323 = arith.addf %321, %322 : vector<16x1xf32>
    %324 = math.rsqrt %323 : vector<16x1xf32>
    %325 = vector.broadcast %324 : vector<16x1xf32> to vector<16x128xf32>
    %326 = arith.mulf %316, %325 : vector<16x128xf32>
    %327 = vector.broadcast %305 : vector<1x128xf32> to vector<16x128xf32>
    %328 = arith.mulf %326, %327 : vector<16x128xf32>
    %329 = vector.broadcast %308 : vector<1x128xf32> to vector<16x128xf32>
    %330 = arith.addf %328, %329 : vector<16x128xf32>
    %331 = arith.truncf %330 : vector<16x128xf32> to vector<16x128xbf16>
    %332 = arith.index_cast %c1_i32 : i32 to index
    %c0_102 = arith.constant 0 : index
    %c0_103 = arith.constant 0 : index
    %333 = vector.load %arg15[%332, %c0_102, %c0_103] : memref<2x128x128xbf16, #tpu.memory_space<vmem>>, vector<1x128x128xbf16>
    %334 = vector.shape_cast %333 : vector<1x128x128xbf16> to vector<128x128xbf16>
    %cst_104 = arith.constant dense<0.000000e+00> : vector<16x128xf32>
    %335 = tpu.matmul %331, %334, %cst_104 {dimension_numbers = #tpu.dot_dimension_numbers<[1], [0], [0], [1], [0, 0, 1, 1], [], []>} : vector<16x128xbf16>, vector<128x128xbf16>, vector<16x128xf32> -> vector<16x128xf32>
    %336 = arith.index_cast %c1_i32 : i32 to index
    %c0_105 = arith.constant 0 : index
    %c0_106 = arith.constant 0 : index
    %337 = vector.load %arg16[%336, %c0_105, %c0_106] : memref<2x1x128xf32, #tpu.memory_space<vmem>>, vector<1x1x128xf32>
    %338 = vector.shape_cast %337 : vector<1x1x128xf32> to vector<1x128xf32>
    %339 = vector.broadcast %338 : vector<1x128xf32> to vector<16x128xf32>
    %340 = arith.addf %335, %339 : vector<16x128xf32>
    %cst_107 = arith.constant 0.000000e+00 : f32
    %341 = vector.broadcast %cst_107 : f32 to vector<16x128xf32>
    %342 = arith.maximumf %340, %341 : vector<16x128xf32>
    %343 = arith.truncf %342 : vector<16x128xf32> to vector<16x128xbf16>
    %344 = arith.index_cast %c1_i32 : i32 to index
    %c0_108 = arith.constant 0 : index
    %c0_109 = arith.constant 0 : index
    %345 = vector.load %arg17[%344, %c0_108, %c0_109] : memref<2x128x128xbf16, #tpu.memory_space<vmem>>, vector<1x128x128xbf16>
    %346 = vector.shape_cast %345 : vector<1x128x128xbf16> to vector<128x128xbf16>
    %cst_110 = arith.constant dense<0.000000e+00> : vector<16x128xf32>
    %347 = tpu.matmul %343, %346, %cst_110 {dimension_numbers = #tpu.dot_dimension_numbers<[1], [0], [0], [1], [0, 0, 1, 1], [], []>} : vector<16x128xbf16>, vector<128x128xbf16>, vector<16x128xf32> -> vector<16x128xf32>
    %348 = arith.index_cast %c1_i32 : i32 to index
    %c0_111 = arith.constant 0 : index
    %c0_112 = arith.constant 0 : index
    %349 = vector.load %arg18[%348, %c0_111, %c0_112] : memref<2x1x128xf32, #tpu.memory_space<vmem>>, vector<1x1x128xf32>
    %350 = vector.shape_cast %349 : vector<1x1x128xf32> to vector<1x128xf32>
    %351 = vector.broadcast %350 : vector<1x128xf32> to vector<16x128xf32>
    %352 = arith.addf %347, %351 : vector<16x128xf32>
    %353 = arith.addf %352, %302 : vector<16x128xf32>
    %c2_i32 = arith.constant 2 : i32
    %354 = vector.shape_cast %353 : vector<16x128xf32> to vector<2x8x128xf32>
    %c0_113 = arith.constant 0 : index
    %c0_114 = arith.constant 0 : index
    %355 = vector.load %arg3[%c0_113, %c0_114] : memref<16x128xbf16, #tpu.memory_space<vmem>>, vector<16x128xbf16>
    %356 = arith.extf %355 : vector<16x128xbf16> to vector<16x128xf32>
    %357 = vector.shape_cast %356 : vector<16x128xf32> to vector<2x8x128xf32>
    %c0_115 = arith.constant 0 : index
    %c0_116 = arith.constant 0 : index
    %358 = vector.load %arg4[%c0_115, %c0_116] : memref<16x128xbf16, #tpu.memory_space<vmem>>, vector<16x128xbf16>
    %359 = arith.extf %358 : vector<16x128xbf16> to vector<16x128xf32>
    %360 = vector.shape_cast %359 : vector<16x128xf32> to vector<2x8x128xf32>
    %361 = arith.mulf %354, %357 : vector<2x8x128xf32>
    %cst_117 = arith.constant dense<0.000000e+00> : vector<2x8xf32>
    %362 = vector.multi_reduction <add>, %361, %cst_117 [2] : vector<2x8x128xf32> to vector<2x8xf32>
    %c0_118 = arith.constant 0 : index
    %c0_119 = arith.constant 0 : index
    %363 = vector.load %arg19[%c0_118, %c0_119] : memref<2x8xf32, #tpu.memory_space<vmem>>, vector<2x8xf32>
    tpu.vector_store %arg19[%c0_118, %c0_119], %362 {strides = array<i32>} : memref<2x8xf32, #tpu.memory_space<vmem>>, vector<2x8xf32>,
    %364 = arith.mulf %354, %360 : vector<2x8x128xf32>
    %cst_120 = arith.constant dense<0.000000e+00> : vector<2x8xf32>
    %365 = vector.multi_reduction <add>, %364, %cst_120 [2] : vector<2x8x128xf32> to vector<2x8xf32>
    %c0_121 = arith.constant 0 : index
    %c0_122 = arith.constant 0 : index
    %366 = vector.load %arg20[%c0_121, %c0_122] : memref<2x8xf32, #tpu.memory_space<vmem>>, vector<2x8xf32>
    tpu.vector_store %arg20[%c0_121, %c0_122], %365 {strides = array<i32>} : memref<2x8xf32, #tpu.memory_space<vmem>>, vector<2x8xf32>,
    return
  }
  func.func @transform_0(%arg0: i32) -> (i32, i32) {
    %c0_i32 = arith.constant 0 : i32
    %c0_i32_0 = arith.constant 0 : i32
    return %arg0, %c0_i32 : i32, i32
  }
  func.func @transform_1(%arg0: i32) -> (i32, i32) {
    %c0_i32 = arith.constant 0 : i32
    %c0_i32_0 = arith.constant 0 : i32
    return %arg0, %c0_i32 : i32, i32
  }
  func.func @transform_2(%arg0: i32) -> (i32, i32) {
    %c0_i32 = arith.constant 0 : i32
    %c0_i32_0 = arith.constant 0 : i32
    return %arg0, %c0_i32 : i32, i32
  }
  func.func @transform_3(%arg0: i32) -> (i32, i32) {
    %c0_i32 = arith.constant 0 : i32
    %c0_i32_0 = arith.constant 0 : i32
    return %arg0, %c0_i32 : i32, i32
  }
  func.func @transform_4(%arg0: i32) -> (i32, i32, i32) {
    %c0_i32 = arith.constant 0 : i32
    %c0_i32_0 = arith.constant 0 : i32
    %c0_i32_1 = arith.constant 0 : i32
    %c0_i32_2 = arith.constant 0 : i32
    return %c0_i32, %c0_i32_0, %c0_i32_1 : i32, i32, i32
  }
  func.func @transform_5(%arg0: i32) -> (i32, i32, i32) {
    %c0_i32 = arith.constant 0 : i32
    %c0_i32_0 = arith.constant 0 : i32
    %c0_i32_1 = arith.constant 0 : i32
    %c0_i32_2 = arith.constant 0 : i32
    return %c0_i32, %c0_i32_0, %c0_i32_1 : i32, i32, i32
  }
  func.func @transform_6(%arg0: i32) -> (i32, i32, i32) {
    %c0_i32 = arith.constant 0 : i32
    %c0_i32_0 = arith.constant 0 : i32
    %c0_i32_1 = arith.constant 0 : i32
    %c0_i32_2 = arith.constant 0 : i32
    return %c0_i32, %c0_i32_0, %c0_i32_1 : i32, i32, i32
  }
  func.func @transform_7(%arg0: i32) -> (i32, i32, i32) {
    %c0_i32 = arith.constant 0 : i32
    %c0_i32_0 = arith.constant 0 : i32
    %c0_i32_1 = arith.constant 0 : i32
    %c0_i32_2 = arith.constant 0 : i32
    return %c0_i32, %c0_i32_0, %c0_i32_1 : i32, i32, i32
  }
  func.func @transform_8(%arg0: i32) -> (i32, i32, i32) {
    %c0_i32 = arith.constant 0 : i32
    %c0_i32_0 = arith.constant 0 : i32
    %c0_i32_1 = arith.constant 0 : i32
    %c0_i32_2 = arith.constant 0 : i32
    return %c0_i32, %c0_i32_0, %c0_i32_1 : i32, i32, i32
  }
  func.func @transform_9(%arg0: i32) -> (i32, i32, i32) {
    %c0_i32 = arith.constant 0 : i32
    %c0_i32_0 = arith.constant 0 : i32
    %c0_i32_1 = arith.constant 0 : i32
    %c0_i32_2 = arith.constant 0 : i32
    return %c0_i32, %c0_i32_0, %c0_i32_1 : i32, i32, i32
  }
  func.func @transform_10(%arg0: i32) -> (i32, i32, i32) {
    %c0_i32 = arith.constant 0 : i32
    %c0_i32_0 = arith.constant 0 : i32
    %c0_i32_1 = arith.constant 0 : i32
    %c0_i32_2 = arith.constant 0 : i32
    return %c0_i32, %c0_i32_0, %c0_i32_1 : i32, i32, i32
  }
  func.func @transform_11(%arg0: i32) -> (i32, i32, i32) {
    %c0_i32 = arith.constant 0 : i32
    %c0_i32_0 = arith.constant 0 : i32
    %c0_i32_1 = arith.constant 0 : i32
    %c0_i32_2 = arith.constant 0 : i32
    return %c0_i32, %c0_i32_0, %c0_i32_1 : i32, i32, i32
  }
  func.func @transform_12(%arg0: i32) -> (i32, i32, i32) {
    %c0_i32 = arith.constant 0 : i32
    %c0_i32_0 = arith.constant 0 : i32
    %c0_i32_1 = arith.constant 0 : i32
    %c0_i32_2 = arith.constant 0 : i32
    return %c0_i32, %c0_i32_0, %c0_i32_1 : i32, i32, i32
  }
  func.func @transform_13(%arg0: i32) -> (i32, i32, i32) {
    %c0_i32 = arith.constant 0 : i32
    %c0_i32_0 = arith.constant 0 : i32
    %c0_i32_1 = arith.constant 0 : i32
    %c0_i32_2 = arith.constant 0 : i32
    return %c0_i32, %c0_i32_0, %c0_i32_1 : i32, i32, i32
  }
  func.func @transform_14(%arg0: i32) -> (i32, i32, i32) {
    %c0_i32 = arith.constant 0 : i32
    %c0_i32_0 = arith.constant 0 : i32
    %c0_i32_1 = arith.constant 0 : i32
    %c0_i32_2 = arith.constant 0 : i32
    return %c0_i32, %c0_i32_0, %c0_i32_1 : i32, i32, i32
  }
  func.func @transform_15(%arg0: i32) -> (i32, i32, i32) {
    %c0_i32 = arith.constant 0 : i32
    %c0_i32_0 = arith.constant 0 : i32
    %c0_i32_1 = arith.constant 0 : i32
    %c0_i32_2 = arith.constant 0 : i32
    return %c0_i32, %c0_i32_0, %c0_i32_1 : i32, i32, i32
  }
  func.func @transform_16(%arg0: i32) -> (i32, i32, i32) {
    %c0_i32 = arith.constant 0 : i32
    %c0_i32_0 = arith.constant 0 : i32
    %c0_i32_1 = arith.constant 0 : i32
    %c0_i32_2 = arith.constant 0 : i32
    return %c0_i32, %c0_i32_0, %c0_i32_1 : i32, i32, i32
  }
  func.func @transform_17(%arg0: i32) -> (i32, i32, i32) {
    %c0_i32 = arith.constant 0 : i32
    %c0_i32_0 = arith.constant 0 : i32
    %c0_i32_1 = arith.constant 0 : i32
    %c0_i32_2 = arith.constant 0 : i32
    return %c0_i32, %c0_i32_0, %c0_i32_1 : i32, i32, i32
  }
  func.func @transform_18(%arg0: i32) -> (i32, i32) {
    %c0_i32 = arith.constant 0 : i32
    %c0_i32_0 = arith.constant 0 : i32
    return %arg0, %c0_i32 : i32, i32
  }
  func.func @transform_19(%arg0: i32) -> (i32, i32) {
    %c0_i32 = arith.constant 0 : i32
    %c0_i32_0 = arith.constant 0 : i32
    return %arg0, %c0_i32 : i32, i32
  }
}

</mosaic_0001>

<llo_original>
// kernel: sasrec_forward.1
$region0: #{sasrec_forward.1}
  #allocation0 [shape = 'u32[]', space=smem, size = 0x4, offset = 0x4, fixed_abs, tag = 'smem constant byte address 0x4 - core index']
  #allocation1 [shape = 'u32[144,128]{1,0:T(1,128)}', space=vmem, size = 0x12000, scoped, tag = 'internal scratch']
  %s0 = inlined_call_operand.vmem [shape: bf16[16,128], index: 0, kind: input, shape index: {}]
  %s1 = inlined_call_operand.vmem [shape: f32[16,1], index: 1, kind: input, shape index: {}]
  %s2 = inlined_call_operand.vmem [shape: bf16[16,128], index: 2, kind: input, shape index: {}]
  %s3 = inlined_call_operand.vmem [shape: bf16[16,128], index: 3, kind: input, shape index: {}]
  %s4 = inlined_call_operand.vmem [shape: f32[2,1,128], index: 4, kind: input, shape index: {}]
  %s5 = inlined_call_operand.vmem [shape: f32[2,1,128], index: 5, kind: input, shape index: {}]
  %s6 = inlined_call_operand.vmem [shape: bf16[2,128,128], index: 6, kind: input, shape index: {}]
  %s7 = inlined_call_operand.vmem [shape: f32[2,1,128], index: 7, kind: input, shape index: {}]
  %s8 = inlined_call_operand.vmem [shape: bf16[2,128,256], index: 8, kind: input, shape index: {}]
  %s9 = inlined_call_operand.vmem [shape: f32[2,1,256], index: 9, kind: input, shape index: {}]
  %s10 = inlined_call_operand.vmem [shape: bf16[2,128,128], index: 10, kind: input, shape index: {}]
  %s11 = inlined_call_operand.vmem [shape: f32[2,1,128], index: 11, kind: input, shape index: {}]
  %s12 = inlined_call_operand.vmem [shape: f32[2,1,128], index: 12, kind: input, shape index: {}]
  %s13 = inlined_call_operand.vmem [shape: f32[2,1,128], index: 13, kind: input, shape index: {}]
  %s14 = inlined_call_operand.vmem [shape: bf16[2,128,128], index: 14, kind: input, shape index: {}]
  %s15 = inlined_call_operand.vmem [shape: f32[2,1,128], index: 15, kind: input, shape index: {}]
  %s16 = inlined_call_operand.vmem [shape: bf16[2,128,128], index: 16, kind: input, shape index: {}]
  %s17 = inlined_call_operand.vmem [shape: f32[2,1,128], index: 17, kind: input, shape index: {}]
  %s18 = inlined_call_operand.hbm [shape: f32[2,8], index: 18, kind: output, shape index: {0}]
  %s19 = inlined_call_operand.hbm [shape: f32[2,8], index: 19, kind: output, shape index: {1}]
  %20 = xla_tuple %s18, %s19
  %s21 = sld [smem:[#allocation0]]
  $region90: #{sasrec_forward.1} parent=0
    _
  %s23 = ssub.s32 1, %s21
  %s24 = scalar_select 0, %s23, %s21
  $region1: #{sasrec_forward.1} parent=0
    #allocation2 [shape = 'u8[1024]{0}', space=vmem, size = 0x400, scoped, tag = 'output window, operand 0, single buffered']
    #allocation3 [shape = 's32[1]{0}', space=sflag, size = 0x4, scoped, tag = 'scoped memory for sasrec_forward.1']
    #allocation4 [shape = 'u8[1024]{0}', space=vmem, size = 0x400, scoped, tag = 'output window, operand 1, single buffered']
    #allocation5 [shape = 's32[1]{0}', space=sflag, size = 0x4, scoped, tag = 'scoped memory for sasrec_forward.1']
    %25 = vsyncpa [#allocation3], 0
    %26 = vsyncpa [#allocation5], 0
    // Predicated region
    $region2: #{sasrec_forward.1} parent=1 // pred_check
      _
    $region3: #{sasrec_forward.1} parent=1 // pred_check_branch
      %28 = sbr.rel (0) target = $region5
    $region4: #{sasrec_forward.1} parent=1 // pred_region
      _
    $region5: #{sasrec_forward.1} parent=1 // pred_fallthru
      _
    // Predicated region
    $region6: #{sasrec_forward.1} parent=1 // pred_check
      _
    $region7: #{sasrec_forward.1} parent=1 // pred_check_branch
      %30 = sbr.rel (0) target = $region9
    $region8: #{sasrec_forward.1} parent=1 // pred_region
      _
    $region9: #{sasrec_forward.1} parent=1 // pred_fallthru
      _
    // Predicated region
    $region10: #{sasrec_forward.1} parent=1 // pred_check
      _
    $region11: #{sasrec_forward.1} parent=1 // pred_check_branch
      %32 = sbr.rel (0) target = $region13
    $region12: #{sasrec_forward.1} parent=1 // pred_region
      _
    $region13: #{sasrec_forward.1} parent=1 // pred_fallthru
      _
    // Predicated region
    $region14: #{sasrec_forward.1} parent=1 // pred_check
      _
    $region15: #{sasrec_forward.1} parent=1 // pred_check_branch
      %34 = sbr.rel (0) target = $region17
    $region16: #{sasrec_forward.1} parent=1 // pred_region
      _
    $region17: #{sasrec_forward.1} parent=1 // pred_fallthru
      _
    // Predicated region
    $region18: #{sasrec_forward.1} parent=1 // pred_check
      _
    $region19: #{sasrec_forward.1} parent=1 // pred_check_branch
      %36 = sbr.rel (0) target = $region21
    $region20: #{sasrec_forward.1} parent=1 // pred_region
      _
    $region21: #{sasrec_forward.1} parent=1 // pred_fallthru
      _
    // Predicated region
    $region22: #{sasrec_forward.1} parent=1 // pred_check
      _
    $region23: #{sasrec_forward.1} parent=1 // pred_check_branch
      %38 = sbr.rel (0) target = $region25
    $region24: #{sasrec_forward.1} parent=1 // pred_region
      _
    $region25: #{sasrec_forward.1} parent=1 // pred_fallthru
      _
    // Predicated region
    $region26: #{sasrec_forward.1} parent=1 // pred_check
      _
    $region27: #{sasrec_forward.1} parent=1 // pred_check_branch
      %40 = sbr.rel (0) target = $region29
    $region28: #{sasrec_forward.1} parent=1 // pred_region
      _
    $region29: #{sasrec_forward.1} parent=1 // pred_fallthru
      _
    // Predicated region
    $region30: #{sasrec_forward.1} parent=1 // pred_check
      _
    $region31: #{sasrec_forward.1} parent=1 // pred_check_branch
      %42 = sbr.rel (0) target = $region33
    $region32: #{sasrec_forward.1} parent=1 // pred_region
      _
    $region33: #{sasrec_forward.1} parent=1 // pred_fallthru
      _
    // Predicated region
    $region34: #{sasrec_forward.1} parent=1 // pred_check
      _
    $region35: #{sasrec_forward.1} parent=1 // pred_check_branch
      %44 = sbr.rel (0) target = $region37
    $region36: #{sasrec_forward.1} parent=1 // pred_region
      _
    $region37: #{sasrec_forward.1} parent=1 // pred_fallthru
      _
    // Predicated region
    $region38: #{sasrec_forward.1} parent=1 // pred_check
      _
    $region39: #{sasrec_forward.1} parent=1 // pred_check_branch
      %46 = sbr.rel (0) target = $region41
    $region40: #{sasrec_forward.1} parent=1 // pred_region
      _
    $region41: #{sasrec_forward.1} parent=1 // pred_fallthru
      _
    // Predicated region
    $region42: #{sasrec_forward.1} parent=1 // pred_check
      _
    $region43: #{sasrec_forward.1} parent=1 // pred_check_branch
      %48 = sbr.rel (0) target = $region45
    $region44: #{sasrec_forward.1} parent=1 // pred_region
      _
    $region45: #{sasrec_forward.1} parent=1 // pred_fallthru
      _
    // Predicated region
    $region46: #{sasrec_forward.1} parent=1 // pred_check
      _
    $region47: #{sasrec_forward.1} parent=1 // pred_check_branch
      %50 = sbr.rel (0) target = $region49
    $region48: #{sasrec_forward.1} parent=1 // pred_region
      _
    $region49: #{sasrec_forward.1} parent=1 // pred_fallthru
      _
    // Predicated region
    $region50: #{sasrec_forward.1} parent=1 // pred_check
      _
    $region51: #{sasrec_forward.1} parent=1 // pred_check_branch
      %52 = sbr.rel (0) target = $region53
    $region52: #{sasrec_forward.1} parent=1 // pred_region
      _
    $region53: #{sasrec_forward.1} parent=1 // pred_fallthru
      _
    // Predicated region
    $region54: #{sasrec_forward.1} parent=1 // pred_check
      _
    $region55: #{sasrec_forward.1} parent=1 // pred_check_branch
      %54 = sbr.rel (0) target = $region57
    $region56: #{sasrec_forward.1} parent=1 // pred_region
      _
    $region57: #{sasrec_forward.1} parent=1 // pred_fallthru
      _
    // Predicated region
    $region58: #{sasrec_forward.1} parent=1 // pred_check
      _
    $region59: #{sasrec_forward.1} parent=1 // pred_check_branch
      %56 = sbr.rel (0) target = $region61
    $region60: #{sasrec_forward.1} parent=1 // pred_region
      _
    $region61: #{sasrec_forward.1} parent=1 // pred_fallthru
      _
    // Predicated region
    $region62: #{sasrec_forward.1} parent=1 // pred_check
      _
    $region63: #{sasrec_forward.1} parent=1 // pred_check_branch
      %58 = sbr.rel (0) target = $region65
    $region64: #{sasrec_forward.1} parent=1 // pred_region
      _
    $region65: #{sasrec_forward.1} parent=1 // pred_fallthru
      _
    // Predicated region
    $region66: #{sasrec_forward.1} parent=1 // pred_check
      _
    $region67: #{sasrec_forward.1} parent=1 // pred_check_branch
      %60 = sbr.rel (0) target = $region69
    $region68: #{sasrec_forward.1} parent=1 // pred_region
      _
    $region69: #{sasrec_forward.1} parent=1 // pred_fallthru
      _
    // Predicated region
    $region70: #{sasrec_forward.1} parent=1 // pred_check
      _
    $region71: #{sasrec_forward.1} parent=1 // pred_check_branch
      %62 = sbr.rel (0) target = $region73
    $region72: #{sasrec_forward.1} parent=1 // pred_region
      _
    $region73: #{sasrec_forward.1} parent=1 // pred_fallthru
      _
    %v64 = vlaneseq
    %v65 = vand.u32 %v64, 127
    %vm66 = vcmp.lt.s32.totalorder %v65, 32
    %v67 = vsel %vm66, 1, 0
    %v68 = vcvt.s32.f32 %v67
    %vm69 = vcmp.ge.s32.totalorder %v65, 0
    %vm70 = vcmp.lt.s32.totalorder %v65, 16
    %vm71 = vmand %vm69, %vm70
    %v72 = vsel %vm71, 1, 0
    %v73 = vcvt.s32.f32 %v72
    %v74 = vpack.c.bf16 %v73, %v73
    %vm75 = vcmp.ge.s32.totalorder %v65, 16
    %vm76 = vmand %vm75, %vm66
    %v77 = vsel %vm76, 1, 0
    %v78 = vcvt.s32.f32 %v77
    %v79 = vpack.c.bf16 %v78, %v78
    %v80 = vlaneseq
    %v81 = vshrl.u32 %v80, 7
    %vm82 = vcmp.le.s32.totalorder %v65, %v81
    %v83 = vsel %vm82, 0.0, -1e+30
    %v84 = vld [vmem:[%s1] sm:$0xff]
    %v85 = vld [vmem:[%s1 + $0x8] sm:$0xff]
    %v86 = vld [vmem:[%s0] sm:$0xf]
    %v87 = vld [vmem:[%s0 + $0x4] sm:$0xf]
    %v88 = vunpack.c.l.bf16 %v86
    %v89 = vunpack.c.l.bf16 %v87
    %91 = vset.pattern.permute.xlu0 0
    %92 = vperm.xlu0 %91, %v84
    %v93 = vpop.permute.xlu0 %92
    %96 = vset.pattern.permute.xlu0 0
    %97 = vperm.xlu0 %96, %v85
    %v98 = vpop.permute.xlu0 %97
    %v100 = vmul.f32 %v88, %v93
    %v101 = vmul.f32 %v89, %v98
    %v102 = vld [vmem:[%s4] sm:$0x1]
    %v103 = vld [vmem:[%s5] sm:$0x1]
    %104 = vadd.xlane.f32.xlu0 %v100
    %v105 = vpop.xlane.xlu0 %104
    %106 = vadd.xlane.f32.xlu0 %v101
    %v107 = vpop.xlane.xlu0 %106
    %v108 = vmul.f32 %v105, 0.03125
    %v109 = vmul.f32 %v107, 0.03125
    %v110 = vsub.f32 %v100, %v108
    %v111 = vsub.f32 %v101, %v109
    %v112 = vmul.f32 %v110, %v68
    %v113 = vmul.f32 %v111, %v68
    %v114 = vmul.f32 %v112, %v112
    %v115 = vmul.f32 %v113, %v113
    %116 = vadd.xlane.f32.xlu0 %v114
    %v117 = vpop.xlane.xlu0 %116
    %118 = vadd.xlane.f32.xlu0 %v115
    %v119 = vpop.xlane.xlu0 %118
    %v120 = vmul.f32 %v117, 0.03125
    %v121 = vmul.f32 %v119, 0.03125
    %v122 = vadd.f32 %v120, 1e-08
    %v123 = vadd.f32 %v121, 1e-08
    %v124 = vrsqrt.pop %v122
    %v125 = vrsqrt.pop %v123
    %v126 = vmul.f32 %v112, %v124
    %v127 = vmul.f32 %v113, %v125
    %v129 = vlaneseq
    %v130 = vshrl.u32 %v129, 7
    %v131 = vsub.s32 0, %v130
    %v132 = vrot.slane %v102, %v131
    %v134 = vmul.f32 %v126, %v132
    %v135 = vmul.f32 %v127, %v132
    %v137 = vlaneseq
    %v138 = vshrl.u32 %v137, 7
    %v139 = vsub.s32 0, %v138
    %v140 = vrot.slane %v103, %v139
    %v142 = vadd.f32 %v134, %v140
    %v143 = vadd.f32 %v135, %v140
    %v144 = vpack.c.bf16 %v143, %v142
    %v145 = vld [vmem:[%s6] sm:$0xf]
    %v146 = vld [vmem:[%s6 + $0x4] sm:$0xf]
    %v147 = vld [vmem:[%s6 + $0x8] sm:$0xf]
    %v148 = vld [vmem:[%s6 + $0xc] sm:$0xf]
    %v149 = vld [vmem:[%s6 + $0x10] sm:$0xf]
    %v150 = vld [vmem:[%s6 + $0x14] sm:$0xf]
    %v151 = vld [vmem:[%s6 + $0x18] sm:$0xf]
    %v152 = vld [vmem:[%s6 + $0x1c] sm:$0xf]
    %v153 = vld [vmem:[%s6 + $0x20] sm:$0xf]
    %v154 = vld [vmem:[%s6 + $0x24] sm:$0xf]
    %v155 = vld [vmem:[%s6 + $0x28] sm:$0xf]
    %v156 = vld [vmem:[%s6 + $0x2c] sm:$0xf]
    %v157 = vld [vmem:[%s6 + $0x30] sm:$0xf]
    %v158 = vld [vmem:[%s6 + $0x34] sm:$0xf]
    %v159 = vld [vmem:[%s6 + $0x38] sm:$0xf]
    %v160 = vld [vmem:[%s6 + $0x3c] sm:$0xf]
    %v161 = vld [vmem:[%s7] sm:$0x1]
    %v163 = vlaneseq
    %v164 = vshrl.u32 %v163, 7
    %v165 = vsub.s32 0, %v164
    %v166 = vrot.slane %v161, %v165
    %v184 = vunpack.c.l.b16 %v145
    %v185 = vunpack.c.l.b16 %v146
    %v186 = vunpack.c.l.b16 %v147
    %v187 = vunpack.c.l.b16 %v148
    %v188 = vunpack.c.l.b16 %v149
    %v189 = vunpack.c.l.b16 %v150
    %v190 = vunpack.c.l.b16 %v151
    %v191 = vunpack.c.l.b16 %v152
    %v192 = vunpack.c.l.b16 %v153
    %v193 = vunpack.c.l.b16 %v154
    %v194 = vunpack.c.l.b16 %v155
    %v195 = vunpack.c.l.b16 %v156
    %v196 = vunpack.c.l.b16 %v157
    %v197 = vunpack.c.l.b16 %v158
    %v198 = vunpack.c.l.b16 %v159
    %v199 = vunpack.c.l.b16 %v160
    %v200 = vpack.c.b16 %v185, %v184
    %v201 = vpack.c.b16 %v187, %v186
    %v202 = vpack.c.b16 %v189, %v188
    %v203 = vpack.c.b16 %v191, %v190
    %v204 = vpack.c.b16 %v193, %v192
    %v205 = vpack.c.b16 %v195, %v194
    %v206 = vpack.c.b16 %v197, %v196
    %v207 = vpack.c.b16 %v199, %v198
    %216 = vmatprep.subr.bf16.mxu0 0
    %217 = vmatpush1.bf16.msra.mxu0 %v207
    %218 = vmatprep.subr.bf16.mxu0 0
    %219 = vmatpush1.bf16.msra.mxu0 %v206
    %220 = vmatprep.subr.bf16.mxu0 0
    %221 = vmatpush1.bf16.msra.mxu0 %v205
    %222 = vmatprep.subr.bf16.mxu0 0
    %223 = vmatpush1.bf16.msra.mxu0 %v204
    %224 = vmatprep.subr.bf16.mxu0 0
    %225 = vmatpush1.bf16.msra.mxu0 %v203
    %226 = vmatprep.subr.bf16.mxu0 0
    %227 = vmatpush1.bf16.msra.mxu0 %v202
    %228 = vmatprep.subr.bf16.mxu0 0
    %229 = vmatpush1.bf16.msra.mxu0 %v201
    %230 = vmatprep.subr.bf16.mxu0 0
    %231 = vmatpush1.bf16.msra.mxu0 %v200
    %232 = vmatprep.subr.bf16.mxu0 0
    %233 = vmatpush2.bf16.msra.mxu0 0
    %234 = vmatprep.subr.bf16.mxu0 0
    %235 = vmatpush2.bf16.msra.mxu0 0
    %236 = vmatprep.subr.bf16.mxu0 0
    %237 = vmatpush2.bf16.msra.mxu0 0
    %238 = vmatprep.subr.bf16.mxu0 0
    %239 = vmatpush2.bf16.msra.mxu0 0
    %240 = vmatprep.subr.bf16.mxu0 0
    %241 = vmatpush2.bf16.msra.mxu0 0
    %242 = vmatprep.subr.bf16.mxu0 0
    %243 = vmatpush2.bf16.msra.mxu0 0
    %244 = vmatprep.subr.bf16.mxu0 0
    %245 = vmatpush2.bf16.msra.mxu0 0
    %246 = vmatprep.subr.bf16.mxu0 0
    %247 = vmatpush2.bf16.msra.mxu0 0
    %248 = vmatprep.mubr.bf16.mxu0 0
    %249 = vmatmul.mubr.bf16.gmra.mxu0 %v144
    %v250 = vpop.f32.mrf.mxu0
    %v251 = vadd.f32 %v166, %v250
    %v252 = vpop.f32.mrf.mxu0
    %v253 = vpop.f32.mrf.mxu0
    %v254 = vadd.f32 %v166, %v253
    %v255 = vpop.f32.mrf.mxu0
    %256 = vdwg.mxu0
    %v257 = vpack.c.bf16 %v101, %v100
    %v258 = vld [vmem:[%s8] sm:$0xff]
    %v259 = vld [vmem:[%s8 + $0x8] sm:$0xff]
    %v260 = vld [vmem:[%s8 + $0x10] sm:$0xff]
    %v261 = vld [vmem:[%s8 + $0x18] sm:$0xff]
    %v262 = vld [vmem:[%s8 + $0x20] sm:$0xff]
    %v263 = vld [vmem:[%s8 + $0x28] sm:$0xff]
    %v264 = vld [vmem:[%s8 + $0x30] sm:$0xff]
    %v265 = vld [vmem:[%s8 + $0x38] sm:$0xff]
    %v266 = vld [vmem:[%s8 + $0x40] sm:$0xff]
    %v267 = vld [vmem:[%s8 + $0x48] sm:$0xff]
    %v268 = vld [vmem:[%s8 + $0x50] sm:$0xff]
    %v269 = vld [vmem:[%s8 + $0x58] sm:$0xff]
    %v270 = vld [vmem:[%s8 + $0x60] sm:$0xff]
    %v271 = vld [vmem:[%s8 + $0x68] sm:$0xff]
    %v272 = vld [vmem:[%s8 + $0x70] sm:$0xff]
    %v273 = vld [vmem:[%s8 + $0x78] sm:$0xff]
    %v274 = vld [vmem:[%s9] sm:$0x3]
    %v276 = vlaneseq
    %v277 = vshrl.u32 %v276, 7
    %v278 = vsub.s32 0, %v277
    %v279 = vrot.slane %v274, %v278
    %v280 = vlaneseq
    %v281 = vshrl.u32 %v280, 7
    %v282 = vsub.s32 1, %v281
    %v283 = vrot.slane %v274, %v282
    %v302 = vunpack.c.l.b16 %v258
    %v303 = vunpack.c.h.b16 %v258
    %v304 = vunpack.c.l.b16 %v259
    %v305 = vunpack.c.h.b16 %v259
    %v306 = vunpack.c.l.b16 %v260
    %v307 = vunpack.c.h.b16 %v260
    %v308 = vunpack.c.l.b16 %v261
    %v309 = vunpack.c.h.b16 %v261
    %v310 = vunpack.c.l.b16 %v262
    %v311 = vunpack.c.h.b16 %v262
    %v312 = vunpack.c.l.b16 %v263
    %v313 = vunpack.c.h.b16 %v263
    %v314 = vunpack.c.l.b16 %v264
    %v315 = vunpack.c.h.b16 %v264
    %v316 = vunpack.c.l.b16 %v265
    %v317 = vunpack.c.h.b16 %v265
    %v318 = vunpack.c.l.b16 %v266
    %v319 = vunpack.c.h.b16 %v266
    %v320 = vunpack.c.l.b16 %v267
    %v321 = vunpack.c.h.b16 %v267
    %v322 = vunpack.c.l.b16 %v268
    %v323 = vunpack.c.h.b16 %v268
    %v324 = vunpack.c.l.b16 %v269
    %v325 = vunpack.c.h.b16 %v269
    %v326 = vunpack.c.l.b16 %v270
    %v327 = vunpack.c.h.b16 %v270
    %v328 = vunpack.c.l.b16 %v271
    %v329 = vunpack.c.h.b16 %v271
    %v330 = vunpack.c.l.b16 %v272
    %v331 = vunpack.c.h.b16 %v272
    %v332 = vunpack.c.l.b16 %v273
    %v333 = vunpack.c.h.b16 %v273
    %v334 = vpack.c.b16 %v304, %v302
    %v335 = vpack.c.b16 %v305, %v303
    %v336 = vpack.c.b16 %v308, %v306
    %v337 = vpack.c.b16 %v309, %v307
    %v338 = vpack.c.b16 %v312, %v310
    %v339 = vpack.c.b16 %v313, %v311
    %v340 = vpack.c.b16 %v316, %v314
    %v341 = vpack.c.b16 %v317, %v315
    %v342 = vpack.c.b16 %v320, %v318
    %v343 = vpack.c.b16 %v321, %v319
    %v344 = vpack.c.b16 %v324, %v322
    %v345 = vpack.c.b16 %v325, %v323
    %v346 = vpack.c.b16 %v328, %v326
    %v347 = vpack.c.b16 %v329, %v327
    %v348 = vpack.c.b16 %v332, %v330
    %v349 = vpack.c.b16 %v333, %v331
    %366 = vmatprep.subr.bf16.mxu0 %v349
    %367 = vmatpush1.bf16.msra.mxu0 %v348
    %368 = vmatprep.subr.bf16.mxu0 %v347
    %369 = vmatpush1.bf16.msra.mxu0 %v346
    %370 = vmatprep.subr.bf16.mxu0 %v345
    %371 = vmatpush1.bf16.msra.mxu0 %v344
    %372 = vmatprep.subr.bf16.mxu0 %v343
    %373 = vmatpush1.bf16.msra.mxu0 %v342
    %374 = vmatprep.subr.bf16.mxu0 %v341
    %375 = vmatpush1.bf16.msra.mxu0 %v340
    %376 = vmatprep.subr.bf16.mxu0 %v339
    %377 = vmatpush1.bf16.msra.mxu0 %v338
    %378 = vmatprep.subr.bf16.mxu0 %v337
    %379 = vmatpush1.bf16.msra.mxu0 %v336
    %380 = vmatprep.subr.bf16.mxu0 %v335
    %381 = vmatpush1.bf16.msra.mxu0 %v334
    %382 = vmatprep.subr.bf16.mxu0 0
    %383 = vmatpush2.bf16.msra.mxu0 0
    %384 = vmatprep.subr.bf16.mxu0 0
    %385 = vmatpush2.bf16.msra.mxu0 0
    %386 = vmatprep.subr.bf16.mxu0 0
    %387 = vmatpush2.bf16.msra.mxu0 0
    %388 = vmatprep.subr.bf16.mxu0 0
    %389 = vmatpush2.bf16.msra.mxu0 0
    %390 = vmatprep.subr.bf16.mxu0 0
    %391 = vmatpush2.bf16.msra.mxu0 0
    %392 = vmatprep.subr.bf16.mxu0 0
    %393 = vmatpush2.bf16.msra.mxu0 0
    %394 = vmatprep.subr.bf16.mxu0 0
    %395 = vmatpush2.bf16.msra.mxu0 0
    %396 = vmatprep.subr.bf16.mxu0 0
    %397 = vmatpush2.bf16.msra.mxu0 0
    %398 = vmatprep.mubr.bf16.mxu0 0
    %399 = vmatmul.mubr.bf16.gmra.mxu0 %v257
    %v400 = vpop.f32.mrf.mxu0
    %v401 = vadd.f32 %v279, %v400
    %v402 = vpop.f32.mrf.mxu0
    %v403 = vadd.f32 %v283, %v402
    %v404 = vpop.f32.mrf.mxu0
    %v405 = vadd.f32 %v279, %v404
    %v406 = vpop.f32.mrf.mxu0
    %v407 = vadd.f32 %v283, %v406
    %408 = vdwg.mxu0
    %v409 = vpack.c.bf16 %v251, %v251
    %v410 = vpack.c.bf16 %v254, %v254
    %v411 = vpack.c.bf16 %v401, %v401
    %v412 = vpack.c.bf16 %v405, %v405
    %v413 = vpack.c.bf16 %v403, %v403
    %v414 = vpack.c.bf16 %v407, %v407
    %v415 = vmul.bf16 %v409, %v74
    %v416 = vmul.bf16 %v410, %v74
    %417 = vmatprep.subr.bf16.mxu0 0
    %418 = vmatpush1.bf16.xpose.msra.mxu0 0
    %419 = vmatprep.subr.bf16.mxu0 0
    %420 = vmatpush1.bf16.xpose.msra.mxu0 0
    %421 = vmatprep.subr.bf16.mxu0 0
    %422 = vmatpush1.bf16.xpose.msra.mxu0 0
    %423 = vmatprep.subr.bf16.mxu0 0
    %424 = vmatpush1.bf16.xpose.msra.mxu0 0
    %425 = vmatprep.subr.bf16.mxu0 0
    %426 = vmatpush1.bf16.xpose.msra.mxu0 0
    %427 = vmatprep.subr.bf16.mxu0 0
    %428 = vmatpush1.bf16.xpose.msra.mxu0 0
    %429 = vmatprep.subr.bf16.mxu0 0
    %430 = vmatpush1.bf16.xpose.msra.mxu0 0
    %431 = vmatprep.subr.bf16.mxu0 0
    %432 = vmatpush1.bf16.xpose.msra.mxu0 %v411
    %433 = vmatprep.subr.bf16.mxu0 0
    %434 = vmatpush2.bf16.xpose.msra.mxu0 0
    %435 = vmatprep.subr.bf16.mxu0 0
    %436 = vmatpush2.bf16.xpose.msra.mxu0 0
    %437 = vmatprep.subr.bf16.mxu0 0
    %438 = vmatpush2.bf16.xpose.msra.mxu0 0
    %439 = vmatprep.subr.bf16.mxu0 0
    %440 = vmatpush2.bf16.xpose.msra.mxu0 0
    %441 = vmatprep.subr.bf16.mxu0 0
    %442 = vmatpush2.bf16.xpose.msra.mxu0 0
    %443 = vmatprep.subr.bf16.mxu0 0
    %444 = vmatpush2.bf16.xpose.msra.mxu0 0
    %445 = vmatprep.subr.bf16.mxu0 0
    %446 = vmatpush2.bf16.xpose.msra.mxu0 0
    %447 = vmatprep.subr.bf16.mxu0 0
    %448 = vmatpush2.bf16.xpose.msra.mxu0 0
    %449 = vmatprep.mubr.bf16.mxu0 0
    %450 = vmatmul.mubr.bf16.gmra.mxu0 %v415
    %v451 = vpop.f32.mrf.mxu0
    %v452 = vadd.f32 %v83, %v451
    %v453 = vpop.f32.mrf.mxu0
    %v454 = vpop.f32.mrf.mxu0
    %v455 = vpop.f32.mrf.mxu0
    %456 = vdwg.mxu0
    %457 = vmatprep.subr.bf16.mxu0 0
    %458 = vmatpush1.bf16.xpose.msra.mxu0 0
    %459 = vmatprep.subr.bf16.mxu0 0
    %460 = vmatpush1.bf16.xpose.msra.mxu0 0
    %461 = vmatprep.subr.bf16.mxu0 0
    %462 = vmatpush1.bf16.xpose.msra.mxu0 0
    %463 = vmatprep.subr.bf16.mxu0 0
    %464 = vmatpush1.bf16.xpose.msra.mxu0 0
    %465 = vmatprep.subr.bf16.mxu0 0
    %466 = vmatpush1.bf16.xpose.msra.mxu0 0
    %467 = vmatprep.subr.bf16.mxu0 0
    %468 = vmatpush1.bf16.xpose.msra.mxu0 0
    %469 = vmatprep.subr.bf16.mxu0 0
    %470 = vmatpush1.bf16.xpose.msra.mxu0 0
    %471 = vmatprep.subr.bf16.mxu0 0
    %472 = vmatpush1.bf16.xpose.msra.mxu0 %v412
    %473 = vmatprep.subr.bf16.mxu0 0
    %474 = vmatpush2.bf16.xpose.msra.mxu0 0
    %475 = vmatprep.subr.bf16.mxu0 0
    %476 = vmatpush2.bf16.xpose.msra.mxu0 0
    %477 = vmatprep.subr.bf16.mxu0 0
    %478 = vmatpush2.bf16.xpose.msra.mxu0 0
    %479 = vmatprep.subr.bf16.mxu0 0
    %480 = vmatpush2.bf16.xpose.msra.mxu0 0
    %481 = vmatprep.subr.bf16.mxu0 0
    %482 = vmatpush2.bf16.xpose.msra.mxu0 0
    %483 = vmatprep.subr.bf16.mxu0 0
    %484 = vmatpush2.bf16.xpose.msra.mxu0 0
    %485 = vmatprep.subr.bf16.mxu0 0
    %486 = vmatpush2.bf16.xpose.msra.mxu0 0
    %487 = vmatprep.subr.bf16.mxu0 0
    %488 = vmatpush2.bf16.xpose.msra.mxu0 0
    %489 = vmatprep.mubr.bf16.mxu0 0
    %490 = vmatmul.mubr.bf16.gmra.mxu0 %v416
    %v491 = vpop.f32.mrf.mxu0
    %v492 = vadd.f32 %v83, %v491
    %v493 = vpop.f32.mrf.mxu0
    %v494 = vpop.f32.mrf.mxu0
    %v495 = vpop.f32.mrf.mxu0
    %496 = vdwg.mxu0
    %vm497 = vcmask 64512
    %v498 = vsel %vm497, %v452, -inf
    %499 = vmax.xlane.f32.xlu0 %v498
    %v500 = vpop.xlane.xlu0 %499
    %v501 = vsel %vm497, %v492, -inf
    %502 = vmax.xlane.f32.xlu0 %v501
    %v503 = vpop.xlane.xlu0 %502
    %v504 = vsub.f32 %v452, %v500
    %v505 = vsub.f32 %v492, %v503
    %v506 = vmul.f32 %v504, 1.442695
    %v507 = vpow.pop %v506
    %v508 = vmul.f32 %v505, 1.442695
    %v509 = vpow.pop %v508
    %v510 = vsel %vm497, %v507, 0.0
    %511 = vadd.xlane.f32.xlu0 %v510
    %v512 = vpop.xlane.xlu0 %511
    %v513 = vsel %vm497, %v509, 0.0
    %514 = vadd.xlane.f32.xlu0 %v513
    %v515 = vpop.xlane.xlu0 %514
    %v516 = vrcp.pop %v512
    %v517 = vrcp.pop %v515
    %v518 = vmul.f32 %v507, %v516
    %v519 = vmul.f32 %v509, %v517
    %v520 = vpack.c.bf16 %v518, %v518
    %v521 = vpack.c.bf16 %v519, %v519
    %v522 = vmul.bf16 %v413, %v74
    %v523 = vmul.bf16 %v414, %v74
    %v524 = vmul.bf16 %v409, %v79
    %v525 = vmul.bf16 %v410, %v79
    %526 = vmatprep.subr.bf16.mxu0 0
    %527 = vmatpush1.bf16.xpose.msra.mxu0 0
    %528 = vmatprep.subr.bf16.mxu0 0
    %529 = vmatpush1.bf16.xpose.msra.mxu0 0
    %530 = vmatprep.subr.bf16.mxu0 0
    %531 = vmatpush1.bf16.xpose.msra.mxu0 0
    %532 = vmatprep.subr.bf16.mxu0 0
    %533 = vmatpush1.bf16.xpose.msra.mxu0 0
    %534 = vmatprep.subr.bf16.mxu0 0
    %535 = vmatpush1.bf16.xpose.msra.mxu0 0
    %536 = vmatprep.subr.bf16.mxu0 0
    %537 = vmatpush1.bf16.xpose.msra.mxu0 0
    %538 = vmatprep.subr.bf16.mxu0 0
    %539 = vmatpush1.bf16.xpose.msra.mxu0 0
    %540 = vmatprep.subr.bf16.mxu0 0
    %541 = vmatpush1.bf16.xpose.msra.mxu0 %v411
    %542 = vmatprep.subr.bf16.mxu0 0
    %543 = vmatpush2.bf16.xpose.msra.mxu0 0
    %544 = vmatprep.subr.bf16.mxu0 0
    %545 = vmatpush2.bf16.xpose.msra.mxu0 0
    %546 = vmatprep.subr.bf16.mxu0 0
    %547 = vmatpush2.bf16.xpose.msra.mxu0 0
    %548 = vmatprep.subr.bf16.mxu0 0
    %549 = vmatpush2.bf16.xpose.msra.mxu0 0
    %550 = vmatprep.subr.bf16.mxu0 0
    %551 = vmatpush2.bf16.xpose.msra.mxu0 0
    %552 = vmatprep.subr.bf16.mxu0 0
    %553 = vmatpush2.bf16.xpose.msra.mxu0 0
    %554 = vmatprep.subr.bf16.mxu0 0
    %555 = vmatpush2.bf16.xpose.msra.mxu0 0
    %556 = vmatprep.subr.bf16.mxu0 0
    %557 = vmatpush2.bf16.xpose.msra.mxu0 0
    %558 = vmatprep.mubr.bf16.mxu0 0
    %559 = vmatmul.mubr.bf16.gmra.mxu0 %v524
    %v560 = vpop.f32.mrf.mxu0
    %v561 = vadd.f32 %v83, %v560
    %v562 = vpop.f32.mrf.mxu0
    %v563 = vpop.f32.mrf.mxu0
    %v564 = vpop.f32.mrf.mxu0
    %565 = vdwg.mxu0
    %566 = vmatprep.subr.bf16.mxu0 0
    %567 = vmatpush1.bf16.xpose.msra.mxu0 0
    %568 = vmatprep.subr.bf16.mxu0 0
    %569 = vmatpush1.bf16.xpose.msra.mxu0 0
    %570 = vmatprep.subr.bf16.mxu0 0
    %571 = vmatpush1.bf16.xpose.msra.mxu0 0
    %572 = vmatprep.subr.bf16.mxu0 0
    %573 = vmatpush1.bf16.xpose.msra.mxu0 0
    %574 = vmatprep.subr.bf16.mxu0 0
    %575 = vmatpush1.bf16.xpose.msra.mxu0 0
    %576 = vmatprep.subr.bf16.mxu0 0
    %577 = vmatpush1.bf16.xpose.msra.mxu0 0
    %578 = vmatprep.subr.bf16.mxu0 0
    %579 = vmatpush1.bf16.xpose.msra.mxu0 0
    %580 = vmatprep.subr.bf16.mxu0 0
    %581 = vmatpush1.bf16.xpose.msra.mxu0 %v412
    %582 = vmatprep.subr.bf16.mxu0 0
    %583 = vmatpush2.bf16.xpose.msra.mxu0 0
    %584 = vmatprep.subr.bf16.mxu0 0
    %585 = vmatpush2.bf16.xpose.msra.mxu0 0
    %586 = vmatprep.subr.bf16.mxu0 0
    %587 = vmatpush2.bf16.xpose.msra.mxu0 0
    %588 = vmatprep.subr.bf16.mxu0 0
    %589 = vmatpush2.bf16.xpose.msra.mxu0 0
    %590 = vmatprep.subr.bf16.mxu0 0
    %591 = vmatpush2.bf16.xpose.msra.mxu0 0
    %592 = vmatprep.subr.bf16.mxu0 0
    %593 = vmatpush2.bf16.xpose.msra.mxu0 0
    %594 = vmatprep.subr.bf16.mxu0 0
    %595 = vmatpush2.bf16.xpose.msra.mxu0 0
    %596 = vmatprep.subr.bf16.mxu0 0
    %597 = vmatpush2.bf16.xpose.msra.mxu0 0
    %598 = vmatprep.mubr.bf16.mxu0 0
    %599 = vmatmul.mubr.bf16.gmra.mxu0 %v525
    %v600 = vpop.f32.mrf.mxu0
    %v601 = vadd.f32 %v83, %v600
    %v602 = vpop.f32.mrf.mxu0
    %v603 = vpop.f32.mrf.mxu0
    %v604 = vpop.f32.mrf.mxu0
    %605 = vdwg.mxu0
    %v606 = vsel %vm497, %v561, -inf
    %607 = vmax.xlane.f32.xlu0 %v606
    %v608 = vpop.xlane.xlu0 %607
    %v609 = vsel %vm497, %v601, -inf
    %610 = vmax.xlane.f32.xlu0 %v609
    %v611 = vpop.xlane.xlu0 %610
    %v612 = vsub.f32 %v561, %v608
    %v613 = vsub.f32 %v601, %v611
    %v614 = vmul.f32 %v612, 1.442695
    %v615 = vpow.pop %v614
    %v616 = vmul.f32 %v613, 1.442695
    %v617 = vpow.pop %v616
    %v618 = vsel %vm497, %v615, 0.0
    %619 = vadd.xlane.f32.xlu0 %v618
    %v620 = vpop.xlane.xlu0 %619
    %v621 = vsel %vm497, %v617, 0.0
    %622 = vadd.xlane.f32.xlu0 %v621
    %v623 = vpop.xlane.xlu0 %622
    %v624 = vrcp.pop %v620
    %v625 = vrcp.pop %v623
    %v626 = vmul.f32 %v615, %v624
    %v627 = vmul.f32 %v617, %v625
    %v628 = vpack.c.bf16 %v626, %v626
    %v629 = vpack.c.bf16 %v627, %v627
    %v630 = vmul.bf16 %v413, %v79
    %v631 = vmul.bf16 %v414, %v79
    %v633 = vsel %vm497, %v628, 0
    %vm635 = vcmask 1043456
    %v637 = vsel %vm635, %v630, 0
    %639 = vmatprep.subr.bf16.mxu0 0
    %640 = vmatpush1.bf16.msra.mxu0 0
    %641 = vmatprep.subr.bf16.mxu0 0
    %642 = vmatpush1.bf16.msra.mxu0 0
    %643 = vmatprep.subr.bf16.mxu0 0
    %644 = vmatpush1.bf16.msra.mxu0 0
    %645 = vmatprep.subr.bf16.mxu0 0
    %646 = vmatpush1.bf16.msra.mxu0 0
    %647 = vmatprep.subr.bf16.mxu0 0
    %648 = vmatpush1.bf16.msra.mxu0 0
    %649 = vmatprep.subr.bf16.mxu0 0
    %650 = vmatpush1.bf16.msra.mxu0 0
    %651 = vmatprep.subr.bf16.mxu0 0
    %652 = vmatpush1.bf16.msra.mxu0 0
    %653 = vmatprep.subr.bf16.mxu0 0
    %654 = vmatpush1.bf16.msra.mxu0 %v637
    %655 = vmatprep.subr.bf16.mxu0 0
    %656 = vmatpush2.bf16.msra.mxu0 0
    %657 = vmatprep.subr.bf16.mxu0 0
    %658 = vmatpush2.bf16.msra.mxu0 0
    %659 = vmatprep.subr.bf16.mxu0 0
    %660 = vmatpush2.bf16.msra.mxu0 0
    %661 = vmatprep.subr.bf16.mxu0 0
    %662 = vmatpush2.bf16.msra.mxu0 0
    %663 = vmatprep.subr.bf16.mxu0 0
    %664 = vmatpush2.bf16.msra.mxu0 0
    %665 = vmatprep.subr.bf16.mxu0 0
    %666 = vmatpush2.bf16.msra.mxu0 0
    %667 = vmatprep.subr.bf16.mxu0 0
    %668 = vmatpush2.bf16.msra.mxu0 0
    %669 = vmatprep.subr.bf16.mxu0 0
    %670 = vmatpush2.bf16.msra.mxu0 0
    %671 = vmatprep.mubr.bf16.mxu0 0
    %672 = vmatmul.mubr.bf16.gmra.mxu0 %v633
    %v673 = vpop.f32.mrf.mxu0
    %v674 = vadd.f32 0.0, %v673
    %v675 = vpop.f32.mrf.mxu0
    %v676 = vpop.f32.mrf.mxu0
    %v677 = vpop.f32.mrf.mxu0
    %678 = vdwg.mxu0
    %v680 = vsel %vm497, %v629, 0
    %v683 = vsel %vm635, %v631, 0
    %685 = vmatprep.subr.bf16.mxu0 0
    %686 = vmatpush1.bf16.msra.mxu0 0
    %687 = vmatprep.subr.bf16.mxu0 0
    %688 = vmatpush1.bf16.msra.mxu0 0
    %689 = vmatprep.subr.bf16.mxu0 0
    %690 = vmatpush1.bf16.msra.mxu0 0
    %691 = vmatprep.subr.bf16.mxu0 0
    %692 = vmatpush1.bf16.msra.mxu0 0
    %693 = vmatprep.subr.bf16.mxu0 0
    %694 = vmatpush1.bf16.msra.mxu0 0
    %695 = vmatprep.subr.bf16.mxu0 0
    %696 = vmatpush1.bf16.msra.mxu0 0
    %697 = vmatprep.subr.bf16.mxu0 0
    %698 = vmatpush1.bf16.msra.mxu0 0
    %699 = vmatprep.subr.bf16.mxu0 0
    %700 = vmatpush1.bf16.msra.mxu0 %v683
    %701 = vmatprep.subr.bf16.mxu0 0
    %702 = vmatpush2.bf16.msra.mxu0 0
    %703 = vmatprep.subr.bf16.mxu0 0
    %704 = vmatpush2.bf16.msra.mxu0 0
    %705 = vmatprep.subr.bf16.mxu0 0
    %706 = vmatpush2.bf16.msra.mxu0 0
    %707 = vmatprep.subr.bf16.mxu0 0
    %708 = vmatpush2.bf16.msra.mxu0 0
    %709 = vmatprep.subr.bf16.mxu0 0
    %710 = vmatpush2.bf16.msra.mxu0 0
    %711 = vmatprep.subr.bf16.mxu0 0
    %712 = vmatpush2.bf16.msra.mxu0 0
    %713 = vmatprep.subr.bf16.mxu0 0
    %714 = vmatpush2.bf16.msra.mxu0 0
    %715 = vmatprep.subr.bf16.mxu0 0
    %716 = vmatpush2.bf16.msra.mxu0 0
    %717 = vmatprep.mubr.bf16.mxu0 0
    %718 = vmatmul.mubr.bf16.gmra.mxu0 %v680
    %v719 = vpop.f32.mrf.mxu0
    %v720 = vadd.f32 0.0, %v719
    %v721 = vpop.f32.mrf.mxu0
    %v722 = vpop.f32.mrf.mxu0
    %v723 = vpop.f32.mrf.mxu0
    %724 = vdwg.mxu0
    %v726 = vsel %vm497, %v520, 0
    %v729 = vsel %vm635, %v522, 0
    %731 = vmatprep.subr.bf16.mxu0 0
    %732 = vmatpush1.bf16.msra.mxu0 0
    %733 = vmatprep.subr.bf16.mxu0 0
    %734 = vmatpush1.bf16.msra.mxu0 0
    %735 = vmatprep.subr.bf16.mxu0 0
    %736 = vmatpush1.bf16.msra.mxu0 0
    %737 = vmatprep.subr.bf16.mxu0 0
    %738 = vmatpush1.bf16.msra.mxu0 0
    %739 = vmatprep.subr.bf16.mxu0 0
    %740 = vmatpush1.bf16.msra.mxu0 0
    %741 = vmatprep.subr.bf16.mxu0 0
    %742 = vmatpush1.bf16.msra.mxu0 0
    %743 = vmatprep.subr.bf16.mxu0 0
    %744 = vmatpush1.bf16.msra.mxu0 0
    %745 = vmatprep.subr.bf16.mxu0 0
    %746 = vmatpush1.bf16.msra.mxu0 %v729
    %747 = vmatprep.subr.bf16.mxu0 0
    %748 = vmatpush2.bf16.msra.mxu0 0
    %749 = vmatprep.subr.bf16.mxu0 0
    %750 = vmatpush2.bf16.msra.mxu0 0
    %751 = vmatprep.subr.bf16.mxu0 0
    %752 = vmatpush2.bf16.msra.mxu0 0
    %753 = vmatprep.subr.bf16.mxu0 0
    %754 = vmatpush2.bf16.msra.mxu0 0
    %755 = vmatprep.subr.bf16.mxu0 0
    %756 = vmatpush2.bf16.msra.mxu0 0
    %757 = vmatprep.subr.bf16.mxu0 0
    %758 = vmatpush2.bf16.msra.mxu0 0
    %759 = vmatprep.subr.bf16.mxu0 0
    %760 = vmatpush2.bf16.msra.mxu0 0
    %761 = vmatprep.subr.bf16.mxu0 0
    %762 = vmatpush2.bf16.msra.mxu0 0
    %763 = vmatprep.mubr.bf16.mxu0 0
    %764 = vmatmul.mubr.bf16.gmra.mxu0 %v726
    %v765 = vpop.f32.mrf.mxu0
    %v766 = vadd.f32 %v674, %v765
    %v767 = vpop.f32.mrf.mxu0
    %v768 = vpop.f32.mrf.mxu0
    %v769 = vpop.f32.mrf.mxu0
    %770 = vdwg.mxu0
    %v772 = vsel %vm497, %v521, 0
    %v775 = vsel %vm635, %v523, 0
    %777 = vmatprep.subr.bf16.mxu0 0
    %778 = vmatpush1.bf16.msra.mxu0 0
    %779 = vmatprep.subr.bf16.mxu0 0
    %780 = vmatpush1.bf16.msra.mxu0 0
    %781 = vmatprep.subr.bf16.mxu0 0
    %782 = vmatpush1.bf16.msra.mxu0 0
    %783 = vmatprep.subr.bf16.mxu0 0
    %784 = vmatpush1.bf16.msra.mxu0 0
    %785 = vmatprep.subr.bf16.mxu0 0
    %786 = vmatpush1.bf16.msra.mxu0 0
    %787 = vmatprep.subr.bf16.mxu0 0
    %788 = vmatpush1.bf16.msra.mxu0 0
    %789 = vmatprep.subr.bf16.mxu0 0
    %790 = vmatpush1.bf16.msra.mxu0 0
    %791 = vmatprep.subr.bf16.mxu0 0
    %792 = vmatpush1.bf16.msra.mxu0 %v775
    %793 = vmatprep.subr.bf16.mxu0 0
    %794 = vmatpush2.bf16.msra.mxu0 0
    %795 = vmatprep.subr.bf16.mxu0 0
    %796 = vmatpush2.bf16.msra.mxu0 0
    %797 = vmatprep.subr.bf16.mxu0 0
    %798 = vmatpush2.bf16.msra.mxu0 0
    %799 = vmatprep.subr.bf16.mxu0 0
    %800 = vmatpush2.bf16.msra.mxu0 0
    %801 = vmatprep.subr.bf16.mxu0 0
    %802 = vmatpush2.bf16.msra.mxu0 0
    %803 = vmatprep.subr.bf16.mxu0 0
    %804 = vmatpush2.bf16.msra.mxu0 0
    %805 = vmatprep.subr.bf16.mxu0 0
    %806 = vmatpush2.bf16.msra.mxu0 0
    %807 = vmatprep.subr.bf16.mxu0 0
    %808 = vmatpush2.bf16.msra.mxu0 0
    %809 = vmatprep.mubr.bf16.mxu0 0
    %810 = vmatmul.mubr.bf16.gmra.mxu0 %v772
    %v811 = vpop.f32.mrf.mxu0
    %v812 = vadd.f32 %v720, %v811
    %v813 = vpop.f32.mrf.mxu0
    %v814 = vpop.f32.mrf.mxu0
    %v815 = vpop.f32.mrf.mxu0
    %816 = vdwg.mxu0
    %v817 = vpack.c.bf16 %v812, %v766
    %v818 = vld [vmem:[%s10] sm:$0xf]
    %v819 = vld [vmem:[%s10 + $0x4] sm:$0xf]
    %v820 = vld [vmem:[%s10 + $0x8] sm:$0xf]
    %v821 = vld [vmem:[%s10 + $0xc] sm:$0xf]
    %v822 = vld [vmem:[%s10 + $0x10] sm:$0xf]
    %v823 = vld [vmem:[%s10 + $0x14] sm:$0xf]
    %v824 = vld [vmem:[%s10 + $0x18] sm:$0xf]
    %v825 = vld [vmem:[%s10 + $0x1c] sm:$0xf]
    %v826 = vld [vmem:[%s10 + $0x20] sm:$0xf]
    %v827 = vld [vmem:[%s10 + $0x24] sm:$0xf]
    %v828 = vld [vmem:[%s10 + $0x28] sm:$0xf]
    %v829 = vld [vmem:[%s10 + $0x2c] sm:$0xf]
    %v830 = vld [vmem:[%s10 + $0x30] sm:$0xf]
    %v831 = vld [vmem:[%s10 + $0x34] sm:$0xf]
    %v832 = vld [vmem:[%s10 + $0x38] sm:$0xf]
    %v833 = vld [vmem:[%s10 + $0x3c] sm:$0xf]
    %v834 = vld [vmem:[%s11] sm:$0x1]
    %v836 = vlaneseq
    %v837 = vshrl.u32 %v836, 7
    %v838 = vsub.s32 0, %v837
    %v839 = vrot.slane %v834, %v838
    %v857 = vunpack.c.l.b16 %v818
    %v858 = vunpack.c.l.b16 %v819
    %v859 = vunpack.c.l.b16 %v820
    %v860 = vunpack.c.l.b16 %v821
    %v861 = vunpack.c.l.b16 %v822
    %v862 = vunpack.c.l.b16 %v823
    %v863 = vunpack.c.l.b16 %v824
    %v864 = vunpack.c.l.b16 %v825
    %v865 = vunpack.c.l.b16 %v826
    %v866 = vunpack.c.l.b16 %v827
    %v867 = vunpack.c.l.b16 %v828
    %v868 = vunpack.c.l.b16 %v829
    %v869 = vunpack.c.l.b16 %v830
    %v870 = vunpack.c.l.b16 %v831
    %v871 = vunpack.c.l.b16 %v832
    %v872 = vunpack.c.l.b16 %v833
    %v873 = vpack.c.b16 %v858, %v857
    %v874 = vpack.c.b16 %v860, %v859
    %v875 = vpack.c.b16 %v862, %v861
    %v876 = vpack.c.b16 %v864, %v863
    %v877 = vpack.c.b16 %v866, %v865
    %v878 = vpack.c.b16 %v868, %v867
    %v879 = vpack.c.b16 %v870, %v869
    %v880 = vpack.c.b16 %v872, %v871
    %889 = vmatprep.subr.bf16.mxu0 0
    %890 = vmatpush1.bf16.msra.mxu0 %v880
    %891 = vmatprep.subr.bf16.mxu0 0
    %892 = vmatpush1.bf16.msra.mxu0 %v879
    %893 = vmatprep.subr.bf16.mxu0 0
    %894 = vmatpush1.bf16.msra.mxu0 %v878
    %895 = vmatprep.subr.bf16.mxu0 0
    %896 = vmatpush1.bf16.msra.mxu0 %v877
    %897 = vmatprep.subr.bf16.mxu0 0
    %898 = vmatpush1.bf16.msra.mxu0 %v876
    %899 = vmatprep.subr.bf16.mxu0 0
    %900 = vmatpush1.bf16.msra.mxu0 %v875
    %901 = vmatprep.subr.bf16.mxu0 0
    %902 = vmatpush1.bf16.msra.mxu0 %v874
    %903 = vmatprep.subr.bf16.mxu0 0
    %904 = vmatpush1.bf16.msra.mxu0 %v873
    %905 = vmatprep.subr.bf16.mxu0 0
    %906 = vmatpush2.bf16.msra.mxu0 0
    %907 = vmatprep.subr.bf16.mxu0 0
    %908 = vmatpush2.bf16.msra.mxu0 0
    %909 = vmatprep.subr.bf16.mxu0 0
    %910 = vmatpush2.bf16.msra.mxu0 0
    %911 = vmatprep.subr.bf16.mxu0 0
    %912 = vmatpush2.bf16.msra.mxu0 0
    %913 = vmatprep.subr.bf16.mxu0 0
    %914 = vmatpush2.bf16.msra.mxu0 0
    %915 = vmatprep.subr.bf16.mxu0 0
    %916 = vmatpush2.bf16.msra.mxu0 0
    %917 = vmatprep.subr.bf16.mxu0 0
    %918 = vmatpush2.bf16.msra.mxu0 0
    %919 = vmatprep.subr.bf16.mxu0 0
    %920 = vmatpush2.bf16.msra.mxu0 0
    %921 = vmatprep.mubr.bf16.mxu0 0
    %922 = vmatmul.mubr.bf16.gmra.mxu0 %v817
    %v923 = vpop.f32.mrf.mxu0
    %v924 = vadd.f32 %v839, %v923
    %v925 = vpop.f32.mrf.mxu0
    %v926 = vpop.f32.mrf.mxu0
    %v927 = vadd.f32 %v839, %v926
    %v928 = vpop.f32.mrf.mxu0
    %929 = vdwg.mxu0
    %v930 = vadd.f32 %v924, %v100
    %v931 = vadd.f32 %v927, %v101
    %v932 = vld [vmem:[%s12] sm:$0x1]
    %v933 = vld [vmem:[%s13] sm:$0x1]
    %934 = vadd.xlane.f32.xlu0 %v930
    %v935 = vpop.xlane.xlu0 %934
    %936 = vadd.xlane.f32.xlu0 %v931
    %v937 = vpop.xlane.xlu0 %936
    %v938 = vmul.f32 %v935, 0.03125
    %v939 = vmul.f32 %v937, 0.03125
    %v940 = vsub.f32 %v930, %v938
    %v941 = vsub.f32 %v931, %v939
    %v942 = vmul.f32 %v940, %v68
    %v943 = vmul.f32 %v941, %v68
    %v944 = vmul.f32 %v942, %v942
    %v945 = vmul.f32 %v943, %v943
    %946 = vadd.xlane.f32.xlu0 %v944
    %v947 = vpop.xlane.xlu0 %946
    %948 = vadd.xlane.f32.xlu0 %v945
    %v949 = vpop.xlane.xlu0 %948
    %v950 = vmul.f32 %v947, 0.03125
    %v951 = vmul.f32 %v949, 0.03125
    %v952 = vadd.f32 %v950, 1e-08
    %v953 = vadd.f32 %v951, 1e-08
    %v954 = vrsqrt.pop %v952
    %v955 = vrsqrt.pop %v953
    %v956 = vmul.f32 %v942, %v954
    %v957 = vmul.f32 %v943, %v955
    %v959 = vlaneseq
    %v960 = vshrl.u32 %v959, 7
    %v961 = vsub.s32 0, %v960
    %v962 = vrot.slane %v932, %v961
    %v964 = vmul.f32 %v956, %v962
    %v965 = vmul.f32 %v957, %v962
    %v967 = vlaneseq
    %v968 = vshrl.u32 %v967, 7
    %v969 = vsub.s32 0, %v968
    %v970 = vrot.slane %v933, %v969
    %v972 = vadd.f32 %v964, %v970
    %v973 = vadd.f32 %v965, %v970
    %v974 = vpack.c.bf16 %v973, %v972
    %v975 = vld [vmem:[%s14] sm:$0xf]
    %v976 = vld [vmem:[%s14 + $0x4] sm:$0xf]
    %v977 = vld [vmem:[%s14 + $0x8] sm:$0xf]
    %v978 = vld [vmem:[%s14 + $0xc] sm:$0xf]
    %v979 = vld [vmem:[%s14 + $0x10] sm:$0xf]
    %v980 = vld [vmem:[%s14 + $0x14] sm:$0xf]
    %v981 = vld [vmem:[%s14 + $0x18] sm:$0xf]
    %v982 = vld [vmem:[%s14 + $0x1c] sm:$0xf]
    %v983 = vld [vmem:[%s14 + $0x20] sm:$0xf]
    %v984 = vld [vmem:[%s14 + $0x24] sm:$0xf]
    %v985 = vld [vmem:[%s14 + $0x28] sm:$0xf]
    %v986 = vld [vmem:[%s14 + $0x2c] sm:$0xf]
    %v987 = vld [vmem:[%s14 + $0x30] sm:$0xf]
    %v988 = vld [vmem:[%s14 + $0x34] sm:$0xf]
    %v989 = vld [vmem:[%s14 + $0x38] sm:$0xf]
    %v990 = vld [vmem:[%s14 + $0x3c] sm:$0xf]
    %v991 = vld [vmem:[%s15] sm:$0x1]
    %v993 = vlaneseq
    %v994 = vshrl.u32 %v993, 7
    %v995 = vsub.s32 0, %v994
    %v996 = vrot.slane %v991, %v995
    %v1014 = vunpack.c.l.b16 %v975
    %v1015 = vunpack.c.l.b16 %v976
    %v1016 = vunpack.c.l.b16 %v977
    %v1017 = vunpack.c.l.b16 %v978
    %v1018 = vunpack.c.l.b16 %v979
    %v1019 = vunpack.c.l.b16 %v980
    %v1020 = vunpack.c.l.b16 %v981
    %v1021 = vunpack.c.l.b16 %v982
    %v1022 = vunpack.c.l.b16 %v983
    %v1023 = vunpack.c.l.b16 %v984
    %v1024 = vunpack.c.l.b16 %v985
    %v1025 = vunpack.c.l.b16 %v986
    %v1026 = vunpack.c.l.b16 %v987
    %v1027 = vunpack.c.l.b16 %v988
    %v1028 = vunpack.c.l.b16 %v989
    %v1029 = vunpack.c.l.b16 %v990
    %v1030 = vpack.c.b16 %v1015, %v1014
    %v1031 = vpack.c.b16 %v1017, %v1016
    %v1032 = vpack.c.b16 %v1019, %v1018
    %v1033 = vpack.c.b16 %v1021, %v1020
    %v1034 = vpack.c.b16 %v1023, %v1022
    %v1035 = vpack.c.b16 %v1025, %v1024
    %v1036 = vpack.c.b16 %v1027, %v1026
    %v1037 = vpack.c.b16 %v1029, %v1028
    %1046 = vmatprep.subr.bf16.mxu0 0
    %1047 = vmatpush1.bf16.msra.mxu0 %v1037
    %1048 = vmatprep.subr.bf16.mxu0 0
    %1049 = vmatpush1.bf16.msra.mxu0 %v1036
    %1050 = vmatprep.subr.bf16.mxu0 0
    %1051 = vmatpush1.bf16.msra.mxu0 %v1035
    %1052 = vmatprep.subr.bf16.mxu0 0
    %1053 = vmatpush1.bf16.msra.mxu0 %v1034
    %1054 = vmatprep.subr.bf16.mxu0 0
    %1055 = vmatpush1.bf16.msra.mxu0 %v1033
    %1056 = vmatprep.subr.bf16.mxu0 0
    %1057 = vmatpush1.bf16.msra.mxu0 %v1032
    %1058 = vmatprep.subr.bf16.mxu0 0
    %1059 = vmatpush1.bf16.msra.mxu0 %v1031
    %1060 = vmatprep.subr.bf16.mxu0 0
    %1061 = vmatpush1.bf16.msra.mxu0 %v1030
    %1062 = vmatprep.subr.bf16.mxu0 0
    %1063 = vmatpush2.bf16.msra.mxu0 0
    %1064 = vmatprep.subr.bf16.mxu0 0
    %1065 = vmatpush2.bf16.msra.mxu0 0
    %1066 = vmatprep.subr.bf16.mxu0 0
    %1067 = vmatpush2.bf16.msra.mxu0 0
    %1068 = vmatprep.subr.bf16.mxu0 0
    %1069 = vmatpush2.bf16.msra.mxu0 0
    %1070 = vmatprep.subr.bf16.mxu0 0
    %1071 = vmatpush2.bf16.msra.mxu0 0
    %1072 = vmatprep.subr.bf16.mxu0 0
    %1073 = vmatpush2.bf16.msra.mxu0 0
    %1074 = vmatprep.subr.bf16.mxu0 0
    %1075 = vmatpush2.bf16.msra.mxu0 0
    %1076 = vmatprep.subr.bf16.mxu0 0
    %1077 = vmatpush2.bf16.msra.mxu0 0
    %1078 = vmatprep.mubr.bf16.mxu0 0
    %1079 = vmatmul.mubr.bf16.gmra.mxu0 %v974
    %v1080 = vpop.f32.mrf.mxu0
    %v1081 = vadd.f32 %v996, %v1080
    %v1082 = vpop.f32.mrf.mxu0
    %v1083 = vpop.f32.mrf.mxu0
    %v1084 = vadd.f32 %v996, %v1083
    %v1085 = vpop.f32.mrf.mxu0
    %1086 = vdwg.mxu0
    %v1087 = vmax.f32 %v1081, 0.0
    %v1088 = vmax.f32 %v1084, 0.0
    %v1089 = vpack.c.bf16 %v1088, %v1087
    %v1090 = vld [vmem:[%s16] sm:$0xf]
    %v1091 = vld [vmem:[%s16 + $0x4] sm:$0xf]
    %v1092 = vld [vmem:[%s16 + $0x8] sm:$0xf]
    %v1093 = vld [vmem:[%s16 + $0xc] sm:$0xf]
    %v1094 = vld [vmem:[%s16 + $0x10] sm:$0xf]
    %v1095 = vld [vmem:[%s16 + $0x14] sm:$0xf]
    %v1096 = vld [vmem:[%s16 + $0x18] sm:$0xf]
    %v1097 = vld [vmem:[%s16 + $0x1c] sm:$0xf]
    %v1098 = vld [vmem:[%s16 + $0x20] sm:$0xf]
    %v1099 = vld [vmem:[%s16 + $0x24] sm:$0xf]
    %v1100 = vld [vmem:[%s16 + $0x28] sm:$0xf]
    %v1101 = vld [vmem:[%s16 + $0x2c] sm:$0xf]
    %v1102 = vld [vmem:[%s16 + $0x30] sm:$0xf]
    %v1103 = vld [vmem:[%s16 + $0x34] sm:$0xf]
    %v1104 = vld [vmem:[%s16 + $0x38] sm:$0xf]
    %v1105 = vld [vmem:[%s16 + $0x3c] sm:$0xf]
    %v1106 = vld [vmem:[%s17] sm:$0x1]
    %v1108 = vlaneseq
    %v1109 = vshrl.u32 %v1108, 7
    %v1110 = vsub.s32 0, %v1109
    %v1111 = vrot.slane %v1106, %v1110
    %v1129 = vunpack.c.l.b16 %v1090
    %v1130 = vunpack.c.l.b16 %v1091
    %v1131 = vunpack.c.l.b16 %v1092
    %v1132 = vunpack.c.l.b16 %v1093
    %v1133 = vunpack.c.l.b16 %v1094
    %v1134 = vunpack.c.l.b16 %v1095
    %v1135 = vunpack.c.l.b16 %v1096
    %v1136 = vunpack.c.l.b16 %v1097
    %v1137 = vunpack.c.l.b16 %v1098
    %v1138 = vunpack.c.l.b16 %v1099
    %v1139 = vunpack.c.l.b16 %v1100
    %v1140 = vunpack.c.l.b16 %v1101
    %v1141 = vunpack.c.l.b16 %v1102
    %v1142 = vunpack.c.l.b16 %v1103
    %v1143 = vunpack.c.l.b16 %v1104
    %v1144 = vunpack.c.l.b16 %v1105
    %v1145 = vpack.c.b16 %v1130, %v1129
    %v1146 = vpack.c.b16 %v1132, %v1131
    %v1147 = vpack.c.b16 %v1134, %v1133
    %v1148 = vpack.c.b16 %v1136, %v1135
    %v1149 = vpack.c.b16 %v1138, %v1137
    %v1150 = vpack.c.b16 %v1140, %v1139
    %v1151 = vpack.c.b16 %v1142, %v1141
    %v1152 = vpack.c.b16 %v1144, %v1143
    %1161 = vmatprep.subr.bf16.mxu0 0
    %1162 = vmatpush1.bf16.msra.mxu0 %v1152
    %1163 = vmatprep.subr.bf16.mxu0 0
    %1164 = vmatpush1.bf16.msra.mxu0 %v1151
    %1165 = vmatprep.subr.bf16.mxu0 0
    %1166 = vmatpush1.bf16.msra.mxu0 %v1150
    %1167 = vmatprep.subr.bf16.mxu0 0
    %1168 = vmatpush1.bf16.msra.mxu0 %v1149
    %1169 = vmatprep.subr.bf16.mxu0 0
    %1170 = vmatpush1.bf16.msra.mxu0 %v1148
    %1171 = vmatprep.subr.bf16.mxu0 0
    %1172 = vmatpush1.bf16.msra.mxu0 %v1147
    %1173 = vmatprep.subr.bf16.mxu0 0
    %1174 = vmatpush1.bf16.msra.mxu0 %v1146
    %1175 = vmatprep.subr.bf16.mxu0 0
    %1176 = vmatpush1.bf16.msra.mxu0 %v1145
    %1177 = vmatprep.subr.bf16.mxu0 0
    %1178 = vmatpush2.bf16.msra.mxu0 0
    %1179 = vmatprep.subr.bf16.mxu0 0
    %1180 = vmatpush2.bf16.msra.mxu0 0
    %1181 = vmatprep.subr.bf16.mxu0 0
    %1182 = vmatpush2.bf16.msra.mxu0 0
    %1183 = vmatprep.subr.bf16.mxu0 0
    %1184 = vmatpush2.bf16.msra.mxu0 0
    %1185 = vmatprep.subr.bf16.mxu0 0
    %1186 = vmatpush2.bf16.msra.mxu0 0
    %1187 = vmatprep.subr.bf16.mxu0 0
    %1188 = vmatpush2.bf16.msra.mxu0 0
    %1189 = vmatprep.subr.bf16.mxu0 0
    %1190 = vmatpush2.bf16.msra.mxu0 0
    %1191 = vmatprep.subr.bf16.mxu0 0
    %1192 = vmatpush2.bf16.msra.mxu0 0
    %1193 = vmatprep.mubr.bf16.mxu0 0
    %1194 = vmatmul.mubr.bf16.gmra.mxu0 %v1089
    %v1195 = vpop.f32.mrf.mxu0
    %v1196 = vadd.f32 %v1111, %v1195
    %v1197 = vpop.f32.mrf.mxu0
    %v1198 = vpop.f32.mrf.mxu0
    %v1199 = vadd.f32 %v1111, %v1198
    %v1200 = vpop.f32.mrf.mxu0
    %1201 = vdwg.mxu0
    %v1202 = vadd.f32 %v1196, %v930
    %v1203 = vadd.f32 %v1199, %v931
    %v1204 = vmul.f32 %v1202, %v93
    %v1205 = vmul.f32 %v1203, %v98
    %s1206 = scalar_lea.vmem %s4, 1
    %v1207 = vld [vmem:[%s1206] sm:$0x1]
    %s1208 = scalar_lea.vmem %s5, 1
    %v1209 = vld [vmem:[%s1208] sm:$0x1]
    %1210 = vadd.xlane.f32.xlu0 %v1204
    %v1211 = vpop.xlane.xlu0 %1210
    %1212 = vadd.xlane.f32.xlu0 %v1205
    %v1213 = vpop.xlane.xlu0 %1212
    %v1214 = vmul.f32 %v1211, 0.03125
    %v1215 = vmul.f32 %v1213, 0.03125
    %v1216 = vsub.f32 %v1204, %v1214
    %v1217 = vsub.f32 %v1205, %v1215
    %v1218 = vmul.f32 %v1216, %v68
    %v1219 = vmul.f32 %v1217, %v68
    %v1220 = vmul.f32 %v1218, %v1218
    %v1221 = vmul.f32 %v1219, %v1219
    %1222 = vadd.xlane.f32.xlu0 %v1220
    %v1223 = vpop.xlane.xlu0 %1222
    %1224 = vadd.xlane.f32.xlu0 %v1221
    %v1225 = vpop.xlane.xlu0 %1224
    %v1226 = vmul.f32 %v1223, 0.03125
    %v1227 = vmul.f32 %v1225, 0.03125
    %v1228 = vadd.f32 %v1226, 1e-08
    %v1229 = vadd.f32 %v1227, 1e-08
    %v1230 = vrsqrt.pop %v1228
    %v1231 = vrsqrt.pop %v1229
    %v1232 = vmul.f32 %v1218, %v1230
    %v1233 = vmul.f32 %v1219, %v1231
    %v1235 = vlaneseq
    %v1236 = vshrl.u32 %v1235, 7
    %v1237 = vsub.s32 0, %v1236
    %v1238 = vrot.slane %v1207, %v1237
    %v1240 = vmul.f32 %v1232, %v1238
    %v1241 = vmul.f32 %v1233, %v1238
    %v1243 = vlaneseq
    %v1244 = vshrl.u32 %v1243, 7
    %v1245 = vsub.s32 0, %v1244
    %v1246 = vrot.slane %v1209, %v1245
    %v1248 = vadd.f32 %v1240, %v1246
    %v1249 = vadd.f32 %v1241, %v1246
    %v1250 = vpack.c.bf16 %v1249, %v1248
    %s1251 = scalar_lea.vmem %s6, 64
    %v1252 = vld [vmem:[%s1251] sm:$0xf]
    %v1253 = vld [vmem:[%s1251 + $0x4] sm:$0xf]
    %v1254 = vld [vmem:[%s1251 + $0x8] sm:$0xf]
    %v1255 = vld [vmem:[%s1251 + $0xc] sm:$0xf]
    %v1256 = vld [vmem:[%s1251 + $0x10] sm:$0xf]
    %v1257 = vld [vmem:[%s1251 + $0x14] sm:$0xf]
    %v1258 = vld [vmem:[%s1251 + $0x18] sm:$0xf]
    %v1259 = vld [vmem:[%s1251 + $0x1c] sm:$0xf]
    %v1260 = vld [vmem:[%s1251 + $0x20] sm:$0xf]
    %v1261 = vld [vmem:[%s1251 + $0x24] sm:$0xf]
    %v1262 = vld [vmem:[%s1251 + $0x28] sm:$0xf]
    %v1263 = vld [vmem:[%s1251 + $0x2c] sm:$0xf]
    %v1264 = vld [vmem:[%s1251 + $0x30] sm:$0xf]
    %v1265 = vld [vmem:[%s1251 + $0x34] sm:$0xf]
    %v1266 = vld [vmem:[%s1251 + $0x38] sm:$0xf]
    %v1267 = vld [vmem:[%s1251 + $0x3c] sm:$0xf]
    %s1268 = scalar_lea.vmem %s7, 1
    %v1269 = vld [vmem:[%s1268] sm:$0x1]
    %v1271 = vlaneseq
    %v1272 = vshrl.u32 %v1271, 7
    %v1273 = vsub.s32 0, %v1272
    %v1274 = vrot.slane %v1269, %v1273
    %v1292 = vunpack.c.l.b16 %v1252
    %v1293 = vunpack.c.l.b16 %v1253
    %v1294 = vunpack.c.l.b16 %v1254
    %v1295 = vunpack.c.l.b16 %v1255
    %v1296 = vunpack.c.l.b16 %v1256
    %v1297 = vunpack.c.l.b16 %v1257
    %v1298 = vunpack.c.l.b16 %v1258
    %v1299 = vunpack.c.l.b16 %v1259
    %v1300 = vunpack.c.l.b16 %v1260
    %v1301 = vunpack.c.l.b16 %v1261
    %v1302 = vunpack.c.l.b16 %v1262
    %v1303 = vunpack.c.l.b16 %v1263
    %v1304 = vunpack.c.l.b16 %v1264
    %v1305 = vunpack.c.l.b16 %v1265
    %v1306 = vunpack.c.l.b16 %v1266
    %v1307 = vunpack.c.l.b16 %v1267
    %v1308 = vpack.c.b16 %v1293, %v1292
    %v1309 = vpack.c.b16 %v1295, %v1294
    %v1310 = vpack.c.b16 %v1297, %v1296
    %v1311 = vpack.c.b16 %v1299, %v1298
    %v1312 = vpack.c.b16 %v1301, %v1300
    %v1313 = vpack.c.b16 %v1303, %v1302
    %v1314 = vpack.c.b16 %v1305, %v1304
    %v1315 = vpack.c.b16 %v1307, %v1306
    %1324 = vmatprep.subr.bf16.mxu0 0
    %1325 = vmatpush1.bf16.msra.mxu0 %v1315
    %1326 = vmatprep.subr.bf16.mxu0 0
    %1327 = vmatpush1.bf16.msra.mxu0 %v1314
    %1328 = vmatprep.subr.bf16.mxu0 0
    %1329 = vmatpush1.bf16.msra.mxu0 %v1313
    %1330 = vmatprep.subr.bf16.mxu0 0
    %1331 = vmatpush1.bf16.msra.mxu0 %v1312
    %1332 = vmatprep.subr.bf16.mxu0 0
    %1333 = vmatpush1.bf16.msra.mxu0 %v1311
    %1334 = vmatprep.subr.bf16.mxu0 0
    %1335 = vmatpush1.bf16.msra.mxu0 %v1310
    %1336 = vmatprep.subr.bf16.mxu0 0
    %1337 = vmatpush1.bf16.msra.mxu0 %v1309
    %1338 = vmatprep.subr.bf16.mxu0 0
    %1339 = vmatpush1.bf16.msra.mxu0 %v1308
    %1340 = vmatprep.subr.bf16.mxu0 0
    %1341 = vmatpush2.bf16.msra.mxu0 0
    %1342 = vmatprep.subr.bf16.mxu0 0
    %1343 = vmatpush2.bf16.msra.mxu0 0
    %1344 = vmatprep.subr.bf16.mxu0 0
    %1345 = vmatpush2.bf16.msra.mxu0 0
    %1346 = vmatprep.subr.bf16.mxu0 0
    %1347 = vmatpush2.bf16.msra.mxu0 0
    %1348 = vmatprep.subr.bf16.mxu0 0
    %1349 = vmatpush2.bf16.msra.mxu0 0
    %1350 = vmatprep.subr.bf16.mxu0 0
    %1351 = vmatpush2.bf16.msra.mxu0 0
    %1352 = vmatprep.subr.bf16.mxu0 0
    %1353 = vmatpush2.bf16.msra.mxu0 0
    %1354 = vmatprep.subr.bf16.mxu0 0
    %1355 = vmatpush2.bf16.msra.mxu0 0
    %1356 = vmatprep.mubr.bf16.mxu0 0
    %1357 = vmatmul.mubr.bf16.gmra.mxu0 %v1250
    %v1358 = vpop.f32.mrf.mxu0
    %v1359 = vadd.f32 %v1274, %v1358
    %v1360 = vpop.f32.mrf.mxu0
    %v1361 = vpop.f32.mrf.mxu0
    %v1362 = vadd.f32 %v1274, %v1361
    %v1363 = vpop.f32.mrf.mxu0
    %1364 = vdwg.mxu0
    %v1365 = vpack.c.bf16 %v1205, %v1204
    %s1366 = scalar_lea.vmem %s8, 128
    %v1367 = vld [vmem:[%s1366] sm:$0xff]
    %v1368 = vld [vmem:[%s1366 + $0x8] sm:$0xff]
    %v1369 = vld [vmem:[%s1366 + $0x10] sm:$0xff]
    %v1370 = vld [vmem:[%s1366 + $0x18] sm:$0xff]
    %v1371 = vld [vmem:[%s1366 + $0x20] sm:$0xff]
    %v1372 = vld [vmem:[%s1366 + $0x28] sm:$0xff]
    %v1373 = vld [vmem:[%s1366 + $0x30] sm:$0xff]
    %v1374 = vld [vmem:[%s1366 + $0x38] sm:$0xff]
    %v1375 = vld [vmem:[%s1366 + $0x40] sm:$0xff]
    %v1376 = vld [vmem:[%s1366 + $0x48] sm:$0xff]
    %v1377 = vld [vmem:[%s1366 + $0x50] sm:$0xff]
    %v1378 = vld [vmem:[%s1366 + $0x58] sm:$0xff]
    %v1379 = vld [vmem:[%s1366 + $0x60] sm:$0xff]
    %v1380 = vld [vmem:[%s1366 + $0x68] sm:$0xff]
    %v1381 = vld [vmem:[%s1366 + $0x70] sm:$0xff]
    %v1382 = vld [vmem:[%s1366 + $0x78] sm:$0xff]
    %s1383 = scalar_lea.vmem %s9, 2
    %v1384 = vld [vmem:[%s1383] sm:$0x3]
    %v1386 = vlaneseq
    %v1387 = vshrl.u32 %v1386, 7
    %v1388 = vsub.s32 0, %v1387
    %v1389 = vrot.slane %v1384, %v1388
    %v1390 = vlaneseq
    %v1391 = vshrl.u32 %v1390, 7
    %v1392 = vsub.s32 1, %v1391
    %v1393 = vrot.slane %v1384, %v1392
    %v1412 = vunpack.c.l.b16 %v1367
    %v1413 = vunpack.c.h.b16 %v1367
    %v1414 = vunpack.c.l.b16 %v1368
    %v1415 = vunpack.c.h.b16 %v1368
    %v1416 = vunpack.c.l.b16 %v1369
    %v1417 = vunpack.c.h.b16 %v1369
    %v1418 = vunpack.c.l.b16 %v1370
    %v1419 = vunpack.c.h.b16 %v1370
    %v1420 = vunpack.c.l.b16 %v1371
    %v1421 = vunpack.c.h.b16 %v1371
    %v1422 = vunpack.c.l.b16 %v1372
    %v1423 = vunpack.c.h.b16 %v1372
    %v1424 = vunpack.c.l.b16 %v1373
    %v1425 = vunpack.c.h.b16 %v1373
    %v1426 = vunpack.c.l.b16 %v1374
    %v1427 = vunpack.c.h.b16 %v1374
    %v1428 = vunpack.c.l.b16 %v1375
    %v1429 = vunpack.c.h.b16 %v1375
    %v1430 = vunpack.c.l.b16 %v1376
    %v1431 = vunpack.c.h.b16 %v1376
    %v1432 = vunpack.c.l.b16 %v1377
    %v1433 = vunpack.c.h.b16 %v1377
    %v1434 = vunpack.c.l.b16 %v1378
    %v1435 = vunpack.c.h.b16 %v1378
    %v1436 = vunpack.c.l.b16 %v1379
    %v1437 = vunpack.c.h.b16 %v1379
    %v1438 = vunpack.c.l.b16 %v1380
    %v1439 = vunpack.c.h.b16 %v1380
    %v1440 = vunpack.c.l.b16 %v1381
    %v1441 = vunpack.c.h.b16 %v1381
    %v1442 = vunpack.c.l.b16 %v1382
    %v1443 = vunpack.c.h.b16 %v1382
    %v1444 = vpack.c.b16 %v1414, %v1412
    %v1445 = vpack.c.b16 %v1415, %v1413
    %v1446 = vpack.c.b16 %v1418, %v1416
    %v1447 = vpack.c.b16 %v1419, %v1417
    %v1448 = vpack.c.b16 %v1422, %v1420
    %v1449 = vpack.c.b16 %v1423, %v1421
    %v1450 = vpack.c.b16 %v1426, %v1424
    %v1451 = vpack.c.b16 %v1427, %v1425
    %v1452 = vpack.c.b16 %v1430, %v1428
    %v1453 = vpack.c.b16 %v1431, %v1429
    %v1454 = vpack.c.b16 %v1434, %v1432
    %v1455 = vpack.c.b16 %v1435, %v1433
    %v1456 = vpack.c.b16 %v1438, %v1436
    %v1457 = vpack.c.b16 %v1439, %v1437
    %v1458 = vpack.c.b16 %v1442, %v1440
    %v1459 = vpack.c.b16 %v1443, %v1441
    %1476 = vmatprep.subr.bf16.mxu0 %v1459
    %1477 = vmatpush1.bf16.msra.mxu0 %v1458
    %1478 = vmatprep.subr.bf16.mxu0 %v1457
    %1479 = vmatpush1.bf16.msra.mxu0 %v1456
    %1480 = vmatprep.subr.bf16.mxu0 %v1455
    %1481 = vmatpush1.bf16.msra.mxu0 %v1454
    %1482 = vmatprep.subr.bf16.mxu0 %v1453
    %1483 = vmatpush1.bf16.msra.mxu0 %v1452
    %1484 = vmatprep.subr.bf16.mxu0 %v1451
    %1485 = vmatpush1.bf16.msra.mxu0 %v1450
    %1486 = vmatprep.subr.bf16.mxu0 %v1449
    %1487 = vmatpush1.bf16.msra.mxu0 %v1448
    %1488 = vmatprep.subr.bf16.mxu0 %v1447
    %1489 = vmatpush1.bf16.msra.mxu0 %v1446
    %1490 = vmatprep.subr.bf16.mxu0 %v1445
    %1491 = vmatpush1.bf16.msra.mxu0 %v1444
    %1492 = vmatprep.subr.bf16.mxu0 0
    %1493 = vmatpush2.bf16.msra.mxu0 0
    %1494 = vmatprep.subr.bf16.mxu0 0
    %1495 = vmatpush2.bf16.msra.mxu0 0
    %1496 = vmatprep.subr.bf16.mxu0 0
    %1497 = vmatpush2.bf16.msra.mxu0 0
    %1498 = vmatprep.subr.bf16.mxu0 0
    %1499 = vmatpush2.bf16.msra.mxu0 0
    %1500 = vmatprep.subr.bf16.mxu0 0
    %1501 = vmatpush2.bf16.msra.mxu0 0
    %1502 = vmatprep.subr.bf16.mxu0 0
    %1503 = vmatpush2.bf16.msra.mxu0 0
    %1504 = vmatprep.subr.bf16.mxu0 0
    %1505 = vmatpush2.bf16.msra.mxu0 0
    %1506 = vmatprep.subr.bf16.mxu0 0
    %1507 = vmatpush2.bf16.msra.mxu0 0
    %1508 = vmatprep.mubr.bf16.mxu0 0
    %1509 = vmatmul.mubr.bf16.gmra.mxu0 %v1365
    %v1510 = vpop.f32.mrf.mxu0
    %v1511 = vadd.f32 %v1389, %v1510
    %v1512 = vpop.f32.mrf.mxu0
    %v1513 = vadd.f32 %v1393, %v1512
    %v1514 = vpop.f32.mrf.mxu0
    %v1515 = vadd.f32 %v1389, %v1514
    %v1516 = vpop.f32.mrf.mxu0
    %v1517 = vadd.f32 %v1393, %v1516
    %1518 = vdwg.mxu0
    %v1519 = vpack.c.bf16 %v1359, %v1359
    %v1520 = vpack.c.bf16 %v1362, %v1362
    %v1521 = vpack.c.bf16 %v1511, %v1511
    %v1522 = vpack.c.bf16 %v1515, %v1515
    %v1523 = vpack.c.bf16 %v1513, %v1513
    %v1524 = vpack.c.bf16 %v1517, %v1517
    %v1525 = vmul.bf16 %v1519, %v74
    %v1526 = vmul.bf16 %v1520, %v74
    %1527 = vmatprep.subr.bf16.mxu0 0
    %1528 = vmatpush1.bf16.xpose.msra.mxu0 0
    %1529 = vmatprep.subr.bf16.mxu0 0
    %1530 = vmatpush1.bf16.xpose.msra.mxu0 0
    %1531 = vmatprep.subr.bf16.mxu0 0
    %1532 = vmatpush1.bf16.xpose.msra.mxu0 0
    %1533 = vmatprep.subr.bf16.mxu0 0
    %1534 = vmatpush1.bf16.xpose.msra.mxu0 0
    %1535 = vmatprep.subr.bf16.mxu0 0
    %1536 = vmatpush1.bf16.xpose.msra.mxu0 0
    %1537 = vmatprep.subr.bf16.mxu0 0
    %1538 = vmatpush1.bf16.xpose.msra.mxu0 0
    %1539 = vmatprep.subr.bf16.mxu0 0
    %1540 = vmatpush1.bf16.xpose.msra.mxu0 0
    %1541 = vmatprep.subr.bf16.mxu0 0
    %1542 = vmatpush1.bf16.xpose.msra.mxu0 %v1521
    %1543 = vmatprep.subr.bf16.mxu0 0
    %1544 = vmatpush2.bf16.xpose.msra.mxu0 0
    %1545 = vmatprep.subr.bf16.mxu0 0
    %1546 = vmatpush2.bf16.xpose.msra.mxu0 0
    %1547 = vmatprep.subr.bf16.mxu0 0
    %1548 = vmatpush2.bf16.xpose.msra.mxu0 0
    %1549 = vmatprep.subr.bf16.mxu0 0
    %1550 = vmatpush2.bf16.xpose.msra.mxu0 0
    %1551 = vmatprep.subr.bf16.mxu0 0
    %1552 = vmatpush2.bf16.xpose.msra.mxu0 0
    %1553 = vmatprep.subr.bf16.mxu0 0
    %1554 = vmatpush2.bf16.xpose.msra.mxu0 0
    %1555 = vmatprep.subr.bf16.mxu0 0
    %1556 = vmatpush2.bf16.xpose.msra.mxu0 0
    %1557 = vmatprep.subr.bf16.mxu0 0
    %1558 = vmatpush2.bf16.xpose.msra.mxu0 0
    %1559 = vmatprep.mubr.bf16.mxu0 0
    %1560 = vmatmul.mubr.bf16.gmra.mxu0 %v1525
    %v1561 = vpop.f32.mrf.mxu0
    %v1562 = vadd.f32 %v83, %v1561
    %v1563 = vpop.f32.mrf.mxu0
    %v1564 = vpop.f32.mrf.mxu0
    %v1565 = vpop.f32.mrf.mxu0
    %1566 = vdwg.mxu0
    %1567 = vmatprep.subr.bf16.mxu0 0
    %1568 = vmatpush1.bf16.xpose.msra.mxu0 0
    %1569 = vmatprep.subr.bf16.mxu0 0
    %1570 = vmatpush1.bf16.xpose.msra.mxu0 0
    %1571 = vmatprep.subr.bf16.mxu0 0
    %1572 = vmatpush1.bf16.xpose.msra.mxu0 0
    %1573 = vmatprep.subr.bf16.mxu0 0
    %1574 = vmatpush1.bf16.xpose.msra.mxu0 0
    %1575 = vmatprep.subr.bf16.mxu0 0
    %1576 = vmatpush1.bf16.xpose.msra.mxu0 0
    %1577 = vmatprep.subr.bf16.mxu0 0
    %1578 = vmatpush1.bf16.xpose.msra.mxu0 0
    %1579 = vmatprep.subr.bf16.mxu0 0
    %1580 = vmatpush1.bf16.xpose.msra.mxu0 0
    %1581 = vmatprep.subr.bf16.mxu0 0
    %1582 = vmatpush1.bf16.xpose.msra.mxu0 %v1522
    %1583 = vmatprep.subr.bf16.mxu0 0
    %1584 = vmatpush2.bf16.xpose.msra.mxu0 0
    %1585 = vmatprep.subr.bf16.mxu0 0
    %1586 = vmatpush2.bf16.xpose.msra.mxu0 0
    %1587 = vmatprep.subr.bf16.mxu0 0
    %1588 = vmatpush2.bf16.xpose.msra.mxu0 0
    %1589 = vmatprep.subr.bf16.mxu0 0
    %1590 = vmatpush2.bf16.xpose.msra.mxu0 0
    %1591 = vmatprep.subr.bf16.mxu0 0
    %1592 = vmatpush2.bf16.xpose.msra.mxu0 0
    %1593 = vmatprep.subr.bf16.mxu0 0
    %1594 = vmatpush2.bf16.xpose.msra.mxu0 0
    %1595 = vmatprep.subr.bf16.mxu0 0
    %1596 = vmatpush2.bf16.xpose.msra.mxu0 0
    %1597 = vmatprep.subr.bf16.mxu0 0
    %1598 = vmatpush2.bf16.xpose.msra.mxu0 0
    %1599 = vmatprep.mubr.bf16.mxu0 0
    %1600 = vmatmul.mubr.bf16.gmra.mxu0 %v1526
    %v1601 = vpop.f32.mrf.mxu0
    %v1602 = vadd.f32 %v83, %v1601
    %v1603 = vpop.f32.mrf.mxu0
    %v1604 = vpop.f32.mrf.mxu0
    %v1605 = vpop.f32.mrf.mxu0
    %1606 = vdwg.mxu0
    %v1607 = vsel %vm497, %v1562, -inf
    %1608 = vmax.xlane.f32.xlu0 %v1607
    %v1609 = vpop.xlane.xlu0 %1608
    %v1610 = vsel %vm497, %v1602, -inf
    %1611 = vmax.xlane.f32.xlu0 %v1610
    %v1612 = vpop.xlane.xlu0 %1611
    %v1613 = vsub.f32 %v1562, %v1609
    %v1614 = vsub.f32 %v1602, %v1612
    %v1615 = vmul.f32 %v1613, 1.442695
    %v1616 = vpow.pop %v1615
    %v1617 = vmul.f32 %v1614, 1.442695
    %v1618 = vpow.pop %v1617
    %v1619 = vsel %vm497, %v1616, 0.0
    %1620 = vadd.xlane.f32.xlu0 %v1619
    %v1621 = vpop.xlane.xlu0 %1620
    %v1622 = vsel %vm497, %v1618, 0.0
    %1623 = vadd.xlane.f32.xlu0 %v1622
    %v1624 = vpop.xlane.xlu0 %1623
    %v1625 = vrcp.pop %v1621
    %v1626 = vrcp.pop %v1624
    %v1627 = vmul.f32 %v1616, %v1625
    %v1628 = vmul.f32 %v1618, %v1626
    %v1629 = vpack.c.bf16 %v1627, %v1627
    %v1630 = vpack.c.bf16 %v1628, %v1628
    %v1631 = vmul.bf16 %v1523, %v74
    %v1632 = vmul.bf16 %v1524, %v74
    %v1633 = vmul.bf16 %v1519, %v79
    %v1634 = vmul.bf16 %v1520, %v79
    %1635 = vmatprep.subr.bf16.mxu0 0
    %1636 = vmatpush1.bf16.xpose.msra.mxu0 0
    %1637 = vmatprep.subr.bf16.mxu0 0
    %1638 = vmatpush1.bf16.xpose.msra.mxu0 0
    %1639 = vmatprep.subr.bf16.mxu0 0
    %1640 = vmatpush1.bf16.xpose.msra.mxu0 0
    %1641 = vmatprep.subr.bf16.mxu0 0
    %1642 = vmatpush1.bf16.xpose.msra.mxu0 0
    %1643 = vmatprep.subr.bf16.mxu0 0
    %1644 = vmatpush1.bf16.xpose.msra.mxu0 0
    %1645 = vmatprep.subr.bf16.mxu0 0
    %1646 = vmatpush1.bf16.xpose.msra.mxu0 0
    %1647 = vmatprep.subr.bf16.mxu0 0
    %1648 = vmatpush1.bf16.xpose.msra.mxu0 0
    %1649 = vmatprep.subr.bf16.mxu0 0
    %1650 = vmatpush1.bf16.xpose.msra.mxu0 %v1521
    %1651 = vmatprep.subr.bf16.mxu0 0
    %1652 = vmatpush2.bf16.xpose.msra.mxu0 0
    %1653 = vmatprep.subr.bf16.mxu0 0
    %1654 = vmatpush2.bf16.xpose.msra.mxu0 0
    %1655 = vmatprep.subr.bf16.mxu0 0
    %1656 = vmatpush2.bf16.xpose.msra.mxu0 0
    %1657 = vmatprep.subr.bf16.mxu0 0
    %1658 = vmatpush2.bf16.xpose.msra.mxu0 0
    %1659 = vmatprep.subr.bf16.mxu0 0
    %1660 = vmatpush2.bf16.xpose.msra.mxu0 0
    %1661 = vmatprep.subr.bf16.mxu0 0
    %1662 = vmatpush2.bf16.xpose.msra.mxu0 0
    %1663 = vmatprep.subr.bf16.mxu0 0
    %1664 = vmatpush2.bf16.xpose.msra.mxu0 0
    %1665 = vmatprep.subr.bf16.mxu0 0
    %1666 = vmatpush2.bf16.xpose.msra.mxu0 0
    %1667 = vmatprep.mubr.bf16.mxu0 0
    %1668 = vmatmul.mubr.bf16.gmra.mxu0 %v1633
    %v1669 = vpop.f32.mrf.mxu0
    %v1670 = vadd.f32 %v83, %v1669
    %v1671 = vpop.f32.mrf.mxu0
    %v1672 = vpop.f32.mrf.mxu0
    %v1673 = vpop.f32.mrf.mxu0
    %1674 = vdwg.mxu0
    %1675 = vmatprep.subr.bf16.mxu0 0
    %1676 = vmatpush1.bf16.xpose.msra.mxu0 0
    %1677 = vmatprep.subr.bf16.mxu0 0
    %1678 = vmatpush1.bf16.xpose.msra.mxu0 0
    %1679 = vmatprep.subr.bf16.mxu0 0
    %1680 = vmatpush1.bf16.xpose.msra.mxu0 0
    %1681 = vmatprep.subr.bf16.mxu0 0
    %1682 = vmatpush1.bf16.xpose.msra.mxu0 0
    %1683 = vmatprep.subr.bf16.mxu0 0
    %1684 = vmatpush1.bf16.xpose.msra.mxu0 0
    %1685 = vmatprep.subr.bf16.mxu0 0
    %1686 = vmatpush1.bf16.xpose.msra.mxu0 0
    %1687 = vmatprep.subr.bf16.mxu0 0
    %1688 = vmatpush1.bf16.xpose.msra.mxu0 0
    %1689 = vmatprep.subr.bf16.mxu0 0
    %1690 = vmatpush1.bf16.xpose.msra.mxu0 %v1522
    %1691 = vmatprep.subr.bf16.mxu0 0
    %1692 = vmatpush2.bf16.xpose.msra.mxu0 0
    %1693 = vmatprep.subr.bf16.mxu0 0
    %1694 = vmatpush2.bf16.xpose.msra.mxu0 0
    %1695 = vmatprep.subr.bf16.mxu0 0
    %1696 = vmatpush2.bf16.xpose.msra.mxu0 0
    %1697 = vmatprep.subr.bf16.mxu0 0
    %1698 = vmatpush2.bf16.xpose.msra.mxu0 0
    %1699 = vmatprep.subr.bf16.mxu0 0
    %1700 = vmatpush2.bf16.xpose.msra.mxu0 0
    %1701 = vmatprep.subr.bf16.mxu0 0
    %1702 = vmatpush2.bf16.xpose.msra.mxu0 0
    %1703 = vmatprep.subr.bf16.mxu0 0
    %1704 = vmatpush2.bf16.xpose.msra.mxu0 0
    %1705 = vmatprep.subr.bf16.mxu0 0
    %1706 = vmatpush2.bf16.xpose.msra.mxu0 0
    %1707 = vmatprep.mubr.bf16.mxu0 0
    %1708 = vmatmul.mubr.bf16.gmra.mxu0 %v1634
    %v1709 = vpop.f32.mrf.mxu0
    %v1710 = vadd.f32 %v83, %v1709
    %v1711 = vpop.f32.mrf.mxu0
    %v1712 = vpop.f32.mrf.mxu0
    %v1713 = vpop.f32.mrf.mxu0
    %1714 = vdwg.mxu0
    %v1715 = vsel %vm497, %v1670, -inf
    %1716 = vmax.xlane.f32.xlu0 %v1715
    %v1717 = vpop.xlane.xlu0 %1716
    %v1718 = vsel %vm497, %v1710, -inf
    %1719 = vmax.xlane.f32.xlu0 %v1718
    %v1720 = vpop.xlane.xlu0 %1719
    %v1721 = vsub.f32 %v1670, %v1717
    %v1722 = vsub.f32 %v1710, %v1720
    %v1723 = vmul.f32 %v1721, 1.442695
    %v1724 = vpow.pop %v1723
    %v1725 = vmul.f32 %v1722, 1.442695
    %v1726 = vpow.pop %v1725
    %v1727 = vsel %vm497, %v1724, 0.0
    %1728 = vadd.xlane.f32.xlu0 %v1727
    %v1729 = vpop.xlane.xlu0 %1728
    %v1730 = vsel %vm497, %v1726, 0.0
    %1731 = vadd.xlane.f32.xlu0 %v1730
    %v1732 = vpop.xlane.xlu0 %1731
    %v1733 = vrcp.pop %v1729
    %v1734 = vrcp.pop %v1732
    %v1735 = vmul.f32 %v1724, %v1733
    %v1736 = vmul.f32 %v1726, %v1734
    %v1737 = vpack.c.bf16 %v1735, %v1735
    %v1738 = vpack.c.bf16 %v1736, %v1736
    %v1739 = vmul.bf16 %v1523, %v79
    %v1740 = vmul.bf16 %v1524, %v79
    %v1742 = vsel %vm497, %v1737, 0
    %v1745 = vsel %vm635, %v1739, 0
    %1747 = vmatprep.subr.bf16.mxu0 0
    %1748 = vmatpush1.bf16.msra.mxu0 0
    %1749 = vmatprep.subr.bf16.mxu0 0
    %1750 = vmatpush1.bf16.msra.mxu0 0
    %1751 = vmatprep.subr.bf16.mxu0 0
    %1752 = vmatpush1.bf16.msra.mxu0 0
    %1753 = vmatprep.subr.bf16.mxu0 0
    %1754 = vmatpush1.bf16.msra.mxu0 0
    %1755 = vmatprep.subr.bf16.mxu0 0
    %1756 = vmatpush1.bf16.msra.mxu0 0
    %1757 = vmatprep.subr.bf16.mxu0 0
    %1758 = vmatpush1.bf16.msra.mxu0 0
    %1759 = vmatprep.subr.bf16.mxu0 0
    %1760 = vmatpush1.bf16.msra.mxu0 0
    %1761 = vmatprep.subr.bf16.mxu0 0
    %1762 = vmatpush1.bf16.msra.mxu0 %v1745
    %1763 = vmatprep.subr.bf16.mxu0 0
    %1764 = vmatpush2.bf16.msra.mxu0 0
    %1765 = vmatprep.subr.bf16.mxu0 0
    %1766 = vmatpush2.bf16.msra.mxu0 0
    %1767 = vmatprep.subr.bf16.mxu0 0
    %1768 = vmatpush2.bf16.msra.mxu0 0
    %1769 = vmatprep.subr.bf16.mxu0 0
    %1770 = vmatpush2.bf16.msra.mxu0 0
    %1771 = vmatprep.subr.bf16.mxu0 0
    %1772 = vmatpush2.bf16.msra.mxu0 0
    %1773 = vmatprep.subr.bf16.mxu0 0
    %1774 = vmatpush2.bf16.msra.mxu0 0
    %1775 = vmatprep.subr.bf16.mxu0 0
    %1776 = vmatpush2.bf16.msra.mxu0 0
    %1777 = vmatprep.subr.bf16.mxu0 0
    %1778 = vmatpush2.bf16.msra.mxu0 0
    %1779 = vmatprep.mubr.bf16.mxu0 0
    %1780 = vmatmul.mubr.bf16.gmra.mxu0 %v1742
    %v1781 = vpop.f32.mrf.mxu0
    %v1782 = vadd.f32 0.0, %v1781
    %v1783 = vpop.f32.mrf.mxu0
    %v1784 = vpop.f32.mrf.mxu0
    %v1785 = vpop.f32.mrf.mxu0
    %1786 = vdwg.mxu0
    %v1788 = vsel %vm497, %v1738, 0
    %v1791 = vsel %vm635, %v1740, 0
    %1793 = vmatprep.subr.bf16.mxu0 0
    %1794 = vmatpush1.bf16.msra.mxu0 0
    %1795 = vmatprep.subr.bf16.mxu0 0
    %1796 = vmatpush1.bf16.msra.mxu0 0
    %1797 = vmatprep.subr.bf16.mxu0 0
    %1798 = vmatpush1.bf16.msra.mxu0 0
    %1799 = vmatprep.subr.bf16.mxu0 0
    %1800 = vmatpush1.bf16.msra.mxu0 0
    %1801 = vmatprep.subr.bf16.mxu0 0
    %1802 = vmatpush1.bf16.msra.mxu0 0
    %1803 = vmatprep.subr.bf16.mxu0 0
    %1804 = vmatpush1.bf16.msra.mxu0 0
    %1805 = vmatprep.subr.bf16.mxu0 0
    %1806 = vmatpush1.bf16.msra.mxu0 0
    %1807 = vmatprep.subr.bf16.mxu0 0
    %1808 = vmatpush1.bf16.msra.mxu0 %v1791
    %1809 = vmatprep.subr.bf16.mxu0 0
    %1810 = vmatpush2.bf16.msra.mxu0 0
    %1811 = vmatprep.subr.bf16.mxu0 0
    %1812 = vmatpush2.bf16.msra.mxu0 0
    %1813 = vmatprep.subr.bf16.mxu0 0
    %1814 = vmatpush2.bf16.msra.mxu0 0
    %1815 = vmatprep.subr.bf16.mxu0 0
    %1816 = vmatpush2.bf16.msra.mxu0 0
    %1817 = vmatprep.subr.bf16.mxu0 0
    %1818 = vmatpush2.bf16.msra.mxu0 0
    %1819 = vmatprep.subr.bf16.mxu0 0
    %1820 = vmatpush2.bf16.msra.mxu0 0
    %1821 = vmatprep.subr.bf16.mxu0 0
    %1822 = vmatpush2.bf16.msra.mxu0 0
    %1823 = vmatprep.subr.bf16.mxu0 0
    %1824 = vmatpush2.bf16.msra.mxu0 0
    %1825 = vmatprep.mubr.bf16.mxu0 0
    %1826 = vmatmul.mubr.bf16.gmra.mxu0 %v1788
    %v1827 = vpop.f32.mrf.mxu0
    %v1828 = vadd.f32 0.0, %v1827
    %v1829 = vpop.f32.mrf.mxu0
    %v1830 = vpop.f32.mrf.mxu0
    %v1831 = vpop.f32.mrf.mxu0
    %1832 = vdwg.mxu0
    %v1834 = vsel %vm497, %v1629, 0
    %v1837 = vsel %vm635, %v1631, 0
    %1839 = vmatprep.subr.bf16.mxu0 0
    %1840 = vmatpush1.bf16.msra.mxu0 0
    %1841 = vmatprep.subr.bf16.mxu0 0
    %1842 = vmatpush1.bf16.msra.mxu0 0
    %1843 = vmatprep.subr.bf16.mxu0 0
    %1844 = vmatpush1.bf16.msra.mxu0 0
    %1845 = vmatprep.subr.bf16.mxu0 0
    %1846 = vmatpush1.bf16.msra.mxu0 0
    %1847 = vmatprep.subr.bf16.mxu0 0
    %1848 = vmatpush1.bf16.msra.mxu0 0
    %1849 = vmatprep.subr.bf16.mxu0 0
    %1850 = vmatpush1.bf16.msra.mxu0 0
    %1851 = vmatprep.subr.bf16.mxu0 0
    %1852 = vmatpush1.bf16.msra.mxu0 0
    %1853 = vmatprep.subr.bf16.mxu0 0
    %1854 = vmatpush1.bf16.msra.mxu0 %v1837
    %1855 = vmatprep.subr.bf16.mxu0 0
    %1856 = vmatpush2.bf16.msra.mxu0 0
    %1857 = vmatprep.subr.bf16.mxu0 0
    %1858 = vmatpush2.bf16.msra.mxu0 0
    %1859 = vmatprep.subr.bf16.mxu0 0
    %1860 = vmatpush2.bf16.msra.mxu0 0
    %1861 = vmatprep.subr.bf16.mxu0 0
    %1862 = vmatpush2.bf16.msra.mxu0 0
    %1863 = vmatprep.subr.bf16.mxu0 0
    %1864 = vmatpush2.bf16.msra.mxu0 0
    %1865 = vmatprep.subr.bf16.mxu0 0
    %1866 = vmatpush2.bf16.msra.mxu0 0
    %1867 = vmatprep.subr.bf16.mxu0 0
    %1868 = vmatpush2.bf16.msra.mxu0 0
    %1869 = vmatprep.subr.bf16.mxu0 0
    %1870 = vmatpush2.bf16.msra.mxu0 0
    %1871 = vmatprep.mubr.bf16.mxu0 0
    %1872 = vmatmul.mubr.bf16.gmra.mxu0 %v1834
    %v1873 = vpop.f32.mrf.mxu0
    %v1874 = vadd.f32 %v1782, %v1873
    %v1875 = vpop.f32.mrf.mxu0
    %v1876 = vpop.f32.mrf.mxu0
    %v1877 = vpop.f32.mrf.mxu0
    %1878 = vdwg.mxu0
    %v1880 = vsel %vm497, %v1630, 0
    %v1883 = vsel %vm635, %v1632, 0
    %1885 = vmatprep.subr.bf16.mxu0 0
    %1886 = vmatpush1.bf16.msra.mxu0 0
    %1887 = vmatprep.subr.bf16.mxu0 0
    %1888 = vmatpush1.bf16.msra.mxu0 0
    %1889 = vmatprep.subr.bf16.mxu0 0
    %1890 = vmatpush1.bf16.msra.mxu0 0
    %1891 = vmatprep.subr.bf16.mxu0 0
    %1892 = vmatpush1.bf16.msra.mxu0 0
    %1893 = vmatprep.subr.bf16.mxu0 0
    %1894 = vmatpush1.bf16.msra.mxu0 0
    %1895 = vmatprep.subr.bf16.mxu0 0
    %1896 = vmatpush1.bf16.msra.mxu0 0
    %1897 = vmatprep.subr.bf16.mxu0 0
    %1898 = vmatpush1.bf16.msra.mxu0 0
    %1899 = vmatprep.subr.bf16.mxu0 0
    %1900 = vmatpush1.bf16.msra.mxu0 %v1883
    %1901 = vmatprep.subr.bf16.mxu0 0
    %1902 = vmatpush2.bf16.msra.mxu0 0
    %1903 = vmatprep.subr.bf16.mxu0 0
    %1904 = vmatpush2.bf16.msra.mxu0 0
    %1905 = vmatprep.subr.bf16.mxu0 0
    %1906 = vmatpush2.bf16.msra.mxu0 0
    %1907 = vmatprep.subr.bf16.mxu0 0
    %1908 = vmatpush2.bf16.msra.mxu0 0
    %1909 = vmatprep.subr.bf16.mxu0 0
    %1910 = vmatpush2.bf16.msra.mxu0 0
    %1911 = vmatprep.subr.bf16.mxu0 0
    %1912 = vmatpush2.bf16.msra.mxu0 0
    %1913 = vmatprep.subr.bf16.mxu0 0
    %1914 = vmatpush2.bf16.msra.mxu0 0
    %1915 = vmatprep.subr.bf16.mxu0 0
    %1916 = vmatpush2.bf16.msra.mxu0 0
    %1917 = vmatprep.mubr.bf16.mxu0 0
    %1918 = vmatmul.mubr.bf16.gmra.mxu0 %v1880
    %v1919 = vpop.f32.mrf.mxu0
    %v1920 = vadd.f32 %v1828, %v1919
    %v1921 = vpop.f32.mrf.mxu0
    %v1922 = vpop.f32.mrf.mxu0
    %v1923 = vpop.f32.mrf.mxu0
    %1924 = vdwg.mxu0
    %v1925 = vpack.c.bf16 %v1920, %v1874
    %s1926 = scalar_lea.vmem %s10, 64
    %v1927 = vld [vmem:[%s1926] sm:$0xf]
    %v1928 = vld [vmem:[%s1926 + $0x4] sm:$0xf]
    %v1929 = vld [vmem:[%s1926 + $0x8] sm:$0xf]
    %v1930 = vld [vmem:[%s1926 + $0xc] sm:$0xf]
    %v1931 = vld [vmem:[%s1926 + $0x10] sm:$0xf]
    %v1932 = vld [vmem:[%s1926 + $0x14] sm:$0xf]
    %v1933 = vld [vmem:[%s1926 + $0x18] sm:$0xf]
    %v1934 = vld [vmem:[%s1926 + $0x1c] sm:$0xf]
    %v1935 = vld [vmem:[%s1926 + $0x20] sm:$0xf]
    %v1936 = vld [vmem:[%s1926 + $0x24] sm:$0xf]
    %v1937 = vld [vmem:[%s1926 + $0x28] sm:$0xf]
    %v1938 = vld [vmem:[%s1926 + $0x2c] sm:$0xf]
    %v1939 = vld [vmem:[%s1926 + $0x30] sm:$0xf]
    %v1940 = vld [vmem:[%s1926 + $0x34] sm:$0xf]
    %v1941 = vld [vmem:[%s1926 + $0x38] sm:$0xf]
    %v1942 = vld [vmem:[%s1926 + $0x3c] sm:$0xf]
    %s1943 = scalar_lea.vmem %s11, 1
    %v1944 = vld [vmem:[%s1943] sm:$0x1]
    %v1946 = vlaneseq
    %v1947 = vshrl.u32 %v1946, 7
    %v1948 = vsub.s32 0, %v1947
    %v1949 = vrot.slane %v1944, %v1948
    %v1967 = vunpack.c.l.b16 %v1927
    %v1968 = vunpack.c.l.b16 %v1928
    %v1969 = vunpack.c.l.b16 %v1929
    %v1970 = vunpack.c.l.b16 %v1930
    %v1971 = vunpack.c.l.b16 %v1931
    %v1972 = vunpack.c.l.b16 %v1932
    %v1973 = vunpack.c.l.b16 %v1933
    %v1974 = vunpack.c.l.b16 %v1934
    %v1975 = vunpack.c.l.b16 %v1935
    %v1976 = vunpack.c.l.b16 %v1936
    %v1977 = vunpack.c.l.b16 %v1937
    %v1978 = vunpack.c.l.b16 %v1938
    %v1979 = vunpack.c.l.b16 %v1939
    %v1980 = vunpack.c.l.b16 %v1940
    %v1981 = vunpack.c.l.b16 %v1941
    %v1982 = vunpack.c.l.b16 %v1942
    %v1983 = vpack.c.b16 %v1968, %v1967
    %v1984 = vpack.c.b16 %v1970, %v1969
    %v1985 = vpack.c.b16 %v1972, %v1971
    %v1986 = vpack.c.b16 %v1974, %v1973
    %v1987 = vpack.c.b16 %v1976, %v1975
    %v1988 = vpack.c.b16 %v1978, %v1977
    %v1989 = vpack.c.b16 %v1980, %v1979
    %v1990 = vpack.c.b16 %v1982, %v1981
    %1999 = vmatprep.subr.bf16.mxu0 0
    %2000 = vmatpush1.bf16.msra.mxu0 %v1990
    %2001 = vmatprep.subr.bf16.mxu0 0
    %2002 = vmatpush1.bf16.msra.mxu0 %v1989
    %2003 = vmatprep.subr.bf16.mxu0 0
    %2004 = vmatpush1.bf16.msra.mxu0 %v1988
    %2005 = vmatprep.subr.bf16.mxu0 0
    %2006 = vmatpush1.bf16.msra.mxu0 %v1987
    %2007 = vmatprep.subr.bf16.mxu0 0
    %2008 = vmatpush1.bf16.msra.mxu0 %v1986
    %2009 = vmatprep.subr.bf16.mxu0 0
    %2010 = vmatpush1.bf16.msra.mxu0 %v1985
    %2011 = vmatprep.subr.bf16.mxu0 0
    %2012 = vmatpush1.bf16.msra.mxu0 %v1984
    %2013 = vmatprep.subr.bf16.mxu0 0
    %2014 = vmatpush1.bf16.msra.mxu0 %v1983
    %2015 = vmatprep.subr.bf16.mxu0 0
    %2016 = vmatpush2.bf16.msra.mxu0 0
    %2017 = vmatprep.subr.bf16.mxu0 0
    %2018 = vmatpush2.bf16.msra.mxu0 0
    %2019 = vmatprep.subr.bf16.mxu0 0
    %2020 = vmatpush2.bf16.msra.mxu0 0
    %2021 = vmatprep.subr.bf16.mxu0 0
    %2022 = vmatpush2.bf16.msra.mxu0 0
    %2023 = vmatprep.subr.bf16.mxu0 0
    %2024 = vmatpush2.bf16.msra.mxu0 0
    %2025 = vmatprep.subr.bf16.mxu0 0
    %2026 = vmatpush2.bf16.msra.mxu0 0
    %2027 = vmatprep.subr.bf16.mxu0 0
    %2028 = vmatpush2.bf16.msra.mxu0 0
    %2029 = vmatprep.subr.bf16.mxu0 0
    %2030 = vmatpush2.bf16.msra.mxu0 0
    %2031 = vmatprep.mubr.bf16.mxu0 0
    %2032 = vmatmul.mubr.bf16.gmra.mxu0 %v1925
    %v2033 = vpop.f32.mrf.mxu0
    %v2034 = vadd.f32 %v1949, %v2033
    %v2035 = vpop.f32.mrf.mxu0
    %v2036 = vpop.f32.mrf.mxu0
    %v2037 = vadd.f32 %v1949, %v2036
    %v2038 = vpop.f32.mrf.mxu0
    %2039 = vdwg.mxu0
    %v2040 = vadd.f32 %v2034, %v1204
    %v2041 = vadd.f32 %v2037, %v1205
    %s2042 = scalar_lea.vmem %s12, 1
    %v2043 = vld [vmem:[%s2042] sm:$0x1]
    %s2044 = scalar_lea.vmem %s13, 1
    %v2045 = vld [vmem:[%s2044] sm:$0x1]
    %2046 = vadd.xlane.f32.xlu0 %v2040
    %v2047 = vpop.xlane.xlu0 %2046
    %2048 = vadd.xlane.f32.xlu0 %v2041
    %v2049 = vpop.xlane.xlu0 %2048
    %v2050 = vmul.f32 %v2047, 0.03125
    %v2051 = vmul.f32 %v2049, 0.03125
    %v2052 = vsub.f32 %v2040, %v2050
    %v2053 = vsub.f32 %v2041, %v2051
    %v2054 = vmul.f32 %v2052, %v68
    %v2055 = vmul.f32 %v2053, %v68
    %v2056 = vmul.f32 %v2054, %v2054
    %v2057 = vmul.f32 %v2055, %v2055
    %2058 = vadd.xlane.f32.xlu0 %v2056
    %v2059 = vpop.xlane.xlu0 %2058
    %2060 = vadd.xlane.f32.xlu0 %v2057
    %v2061 = vpop.xlane.xlu0 %2060
    %v2062 = vmul.f32 %v2059, 0.03125
    %v2063 = vmul.f32 %v2061, 0.03125
    %v2064 = vadd.f32 %v2062, 1e-08
    %v2065 = vadd.f32 %v2063, 1e-08
    %v2066 = vrsqrt.pop %v2064
    %v2067 = vrsqrt.pop %v2065
    %v2068 = vmul.f32 %v2054, %v2066
    %v2069 = vmul.f32 %v2055, %v2067
    %v2071 = vlaneseq
    %v2072 = vshrl.u32 %v2071, 7
    %v2073 = vsub.s32 0, %v2072
    %v2074 = vrot.slane %v2043, %v2073
    %v2076 = vmul.f32 %v2068, %v2074
    %v2077 = vmul.f32 %v2069, %v2074
    %v2079 = vlaneseq
    %v2080 = vshrl.u32 %v2079, 7
    %v2081 = vsub.s32 0, %v2080
    %v2082 = vrot.slane %v2045, %v2081
    %v2084 = vadd.f32 %v2076, %v2082
    %v2085 = vadd.f32 %v2077, %v2082
    %v2086 = vpack.c.bf16 %v2085, %v2084
    %s2087 = scalar_lea.vmem %s14, 64
    %v2088 = vld [vmem:[%s2087] sm:$0xf]
    %v2089 = vld [vmem:[%s2087 + $0x4] sm:$0xf]
    %v2090 = vld [vmem:[%s2087 + $0x8] sm:$0xf]
    %v2091 = vld [vmem:[%s2087 + $0xc] sm:$0xf]
    %v2092 = vld [vmem:[%s2087 + $0x10] sm:$0xf]
    %v2093 = vld [vmem:[%s2087 + $0x14] sm:$0xf]
    %v2094 = vld [vmem:[%s2087 + $0x18] sm:$0xf]
    %v2095 = vld [vmem:[%s2087 + $0x1c] sm:$0xf]
    %v2096 = vld [vmem:[%s2087 + $0x20] sm:$0xf]
    %v2097 = vld [vmem:[%s2087 + $0x24] sm:$0xf]
    %v2098 = vld [vmem:[%s2087 + $0x28] sm:$0xf]
    %v2099 = vld [vmem:[%s2087 + $0x2c] sm:$0xf]
    %v2100 = vld [vmem:[%s2087 + $0x30] sm:$0xf]
    %v2101 = vld [vmem:[%s2087 + $0x34] sm:$0xf]
    %v2102 = vld [vmem:[%s2087 + $0x38] sm:$0xf]
    %v2103 = vld [vmem:[%s2087 + $0x3c] sm:$0xf]
    %s2104 = scalar_lea.vmem %s15, 1
    %v2105 = vld [vmem:[%s2104] sm:$0x1]
    %v2107 = vlaneseq
    %v2108 = vshrl.u32 %v2107, 7
    %v2109 = vsub.s32 0, %v2108
    %v2110 = vrot.slane %v2105, %v2109
    %v2128 = vunpack.c.l.b16 %v2088
    %v2129 = vunpack.c.l.b16 %v2089
    %v2130 = vunpack.c.l.b16 %v2090
    %v2131 = vunpack.c.l.b16 %v2091
    %v2132 = vunpack.c.l.b16 %v2092
    %v2133 = vunpack.c.l.b16 %v2093
    %v2134 = vunpack.c.l.b16 %v2094
    %v2135 = vunpack.c.l.b16 %v2095
    %v2136 = vunpack.c.l.b16 %v2096
    %v2137 = vunpack.c.l.b16 %v2097
    %v2138 = vunpack.c.l.b16 %v2098
    %v2139 = vunpack.c.l.b16 %v2099
    %v2140 = vunpack.c.l.b16 %v2100
    %v2141 = vunpack.c.l.b16 %v2101
    %v2142 = vunpack.c.l.b16 %v2102
    %v2143 = vunpack.c.l.b16 %v2103
    %v2144 = vpack.c.b16 %v2129, %v2128
    %v2145 = vpack.c.b16 %v2131, %v2130
    %v2146 = vpack.c.b16 %v2133, %v2132
    %v2147 = vpack.c.b16 %v2135, %v2134
    %v2148 = vpack.c.b16 %v2137, %v2136
    %v2149 = vpack.c.b16 %v2139, %v2138
    %v2150 = vpack.c.b16 %v2141, %v2140
    %v2151 = vpack.c.b16 %v2143, %v2142
    %2160 = vmatprep.subr.bf16.mxu0 0
    %2161 = vmatpush1.bf16.msra.mxu0 %v2151
    %2162 = vmatprep.subr.bf16.mxu0 0
    %2163 = vmatpush1.bf16.msra.mxu0 %v2150
    %2164 = vmatprep.subr.bf16.mxu0 0
    %2165 = vmatpush1.bf16.msra.mxu0 %v2149
    %2166 = vmatprep.subr.bf16.mxu0 0
    %2167 = vmatpush1.bf16.msra.mxu0 %v2148
    %2168 = vmatprep.subr.bf16.mxu0 0
    %2169 = vmatpush1.bf16.msra.mxu0 %v2147
    %2170 = vmatprep.subr.bf16.mxu0 0
    %2171 = vmatpush1.bf16.msra.mxu0 %v2146
    %2172 = vmatprep.subr.bf16.mxu0 0
    %2173 = vmatpush1.bf16.msra.mxu0 %v2145
    %2174 = vmatprep.subr.bf16.mxu0 0
    %2175 = vmatpush1.bf16.msra.mxu0 %v2144
    %2176 = vmatprep.subr.bf16.mxu0 0
    %2177 = vmatpush2.bf16.msra.mxu0 0
    %2178 = vmatprep.subr.bf16.mxu0 0
    %2179 = vmatpush2.bf16.msra.mxu0 0
    %2180 = vmatprep.subr.bf16.mxu0 0
    %2181 = vmatpush2.bf16.msra.mxu0 0
    %2182 = vmatprep.subr.bf16.mxu0 0
    %2183 = vmatpush2.bf16.msra.mxu0 0
    %2184 = vmatprep.subr.bf16.mxu0 0
    %2185 = vmatpush2.bf16.msra.mxu0 0
    %2186 = vmatprep.subr.bf16.mxu0 0
    %2187 = vmatpush2.bf16.msra.mxu0 0
    %2188 = vmatprep.subr.bf16.mxu0 0
    %2189 = vmatpush2.bf16.msra.mxu0 0
    %2190 = vmatprep.subr.bf16.mxu0 0
    %2191 = vmatpush2.bf16.msra.mxu0 0
    %2192 = vmatprep.mubr.bf16.mxu0 0
    %2193 = vmatmul.mubr.bf16.gmra.mxu0 %v2086
    %v2194 = vpop.f32.mrf.mxu0
    %v2195 = vadd.f32 %v2110, %v2194
    %v2196 = vpop.f32.mrf.mxu0
    %v2197 = vpop.f32.mrf.mxu0
    %v2198 = vadd.f32 %v2110, %v2197
    %v2199 = vpop.f32.mrf.mxu0
    %2200 = vdwg.mxu0
    %v2201 = vmax.f32 %v2195, 0.0
    %v2202 = vmax.f32 %v2198, 0.0
    %v2203 = vpack.c.bf16 %v2202, %v2201
    %s2204 = scalar_lea.vmem %s16, 64
    %v2205 = vld [vmem:[%s2204] sm:$0xf]
    %v2206 = vld [vmem:[%s2204 + $0x4] sm:$0xf]
    %v2207 = vld [vmem:[%s2204 + $0x8] sm:$0xf]
    %v2208 = vld [vmem:[%s2204 + $0xc] sm:$0xf]
    %v2209 = vld [vmem:[%s2204 + $0x10] sm:$0xf]
    %v2210 = vld [vmem:[%s2204 + $0x14] sm:$0xf]
    %v2211 = vld [vmem:[%s2204 + $0x18] sm:$0xf]
    %v2212 = vld [vmem:[%s2204 + $0x1c] sm:$0xf]
    %v2213 = vld [vmem:[%s2204 + $0x20] sm:$0xf]
    %v2214 = vld [vmem:[%s2204 + $0x24] sm:$0xf]
    %v2215 = vld [vmem:[%s2204 + $0x28] sm:$0xf]
    %v2216 = vld [vmem:[%s2204 + $0x2c] sm:$0xf]
    %v2217 = vld [vmem:[%s2204 + $0x30] sm:$0xf]
    %v2218 = vld [vmem:[%s2204 + $0x34] sm:$0xf]
    %v2219 = vld [vmem:[%s2204 + $0x38] sm:$0xf]
    %v2220 = vld [vmem:[%s2204 + $0x3c] sm:$0xf]
    %s2221 = scalar_lea.vmem %s17, 1
    %v2222 = vld [vmem:[%s2221] sm:$0x1]
    %v2224 = vlaneseq
    %v2225 = vshrl.u32 %v2224, 7
    %v2226 = vsub.s32 0, %v2225
    %v2227 = vrot.slane %v2222, %v2226
    %v2245 = vunpack.c.l.b16 %v2205
    %v2246 = vunpack.c.l.b16 %v2206
    %v2247 = vunpack.c.l.b16 %v2207
    %v2248 = vunpack.c.l.b16 %v2208
    %v2249 = vunpack.c.l.b16 %v2209
    %v2250 = vunpack.c.l.b16 %v2210
    %v2251 = vunpack.c.l.b16 %v2211
    %v2252 = vunpack.c.l.b16 %v2212
    %v2253 = vunpack.c.l.b16 %v2213
    %v2254 = vunpack.c.l.b16 %v2214
    %v2255 = vunpack.c.l.b16 %v2215
    %v2256 = vunpack.c.l.b16 %v2216
    %v2257 = vunpack.c.l.b16 %v2217
    %v2258 = vunpack.c.l.b16 %v2218
    %v2259 = vunpack.c.l.b16 %v2219
    %v2260 = vunpack.c.l.b16 %v2220
    %v2261 = vpack.c.b16 %v2246, %v2245
    %v2262 = vpack.c.b16 %v2248, %v2247
    %v2263 = vpack.c.b16 %v2250, %v2249
    %v2264 = vpack.c.b16 %v2252, %v2251
    %v2265 = vpack.c.b16 %v2254, %v2253
    %v2266 = vpack.c.b16 %v2256, %v2255
    %v2267 = vpack.c.b16 %v2258, %v2257
    %v2268 = vpack.c.b16 %v2260, %v2259
    %2277 = vmatprep.subr.bf16.mxu0 0
    %2278 = vmatpush1.bf16.msra.mxu0 %v2268
    %2279 = vmatprep.subr.bf16.mxu0 0
    %2280 = vmatpush1.bf16.msra.mxu0 %v2267
    %2281 = vmatprep.subr.bf16.mxu0 0
    %2282 = vmatpush1.bf16.msra.mxu0 %v2266
    %2283 = vmatprep.subr.bf16.mxu0 0
    %2284 = vmatpush1.bf16.msra.mxu0 %v2265
    %2285 = vmatprep.subr.bf16.mxu0 0
    %2286 = vmatpush1.bf16.msra.mxu0 %v2264
    %2287 = vmatprep.subr.bf16.mxu0 0
    %2288 = vmatpush1.bf16.msra.mxu0 %v2263
    %2289 = vmatprep.subr.bf16.mxu0 0
    %2290 = vmatpush1.bf16.msra.mxu0 %v2262
    %2291 = vmatprep.subr.bf16.mxu0 0
    %2292 = vmatpush1.bf16.msra.mxu0 %v2261
    %2293 = vmatprep.subr.bf16.mxu0 0
    %2294 = vmatpush2.bf16.msra.mxu0 0
    %2295 = vmatprep.subr.bf16.mxu0 0
    %2296 = vmatpush2.bf16.msra.mxu0 0
    %2297 = vmatprep.subr.bf16.mxu0 0
    %2298 = vmatpush2.bf16.msra.mxu0 0
    %2299 = vmatprep.subr.bf16.mxu0 0
    %2300 = vmatpush2.bf16.msra.mxu0 0
    %2301 = vmatprep.subr.bf16.mxu0 0
    %2302 = vmatpush2.bf16.msra.mxu0 0
    %2303 = vmatprep.subr.bf16.mxu0 0
    %2304 = vmatpush2.bf16.msra.mxu0 0
    %2305 = vmatprep.subr.bf16.mxu0 0
    %2306 = vmatpush2.bf16.msra.mxu0 0
    %2307 = vmatprep.subr.bf16.mxu0 0
    %2308 = vmatpush2.bf16.msra.mxu0 0
    %2309 = vmatprep.mubr.bf16.mxu0 0
    %2310 = vmatmul.mubr.bf16.gmra.mxu0 %v2203
    %v2311 = vpop.f32.mrf.mxu0
    %v2312 = vadd.f32 %v2227, %v2311
    %v2313 = vpop.f32.mrf.mxu0
    %v2314 = vpop.f32.mrf.mxu0
    %v2315 = vadd.f32 %v2227, %v2314
    %v2316 = vpop.f32.mrf.mxu0
    %2317 = vdwg.mxu0
    %v2318 = vadd.f32 %v2312, %v2040
    %v2319 = vadd.f32 %v2315, %v2041
    %v2320 = vld [vmem:[%s2] sm:$0xf]
    %v2321 = vld [vmem:[%s2 + $0x4] sm:$0xf]
    %v2322 = vunpack.c.l.bf16 %v2320
    %v2323 = vunpack.c.l.bf16 %v2321
    %v2324 = vld [vmem:[%s3] sm:$0xf]
    %v2325 = vld [vmem:[%s3 + $0x4] sm:$0xf]
    %v2326 = vunpack.c.l.bf16 %v2324
    %v2327 = vunpack.c.l.bf16 %v2325
    %v2328 = vmul.f32 %v2318, %v2322
    %v2329 = vmul.f32 %v2319, %v2323
    %2330 = vadd.xlane.f32.xlu0 %v2328
    %v2331 = vpop.xlane.xlu0 %2330
    %2332 = vadd.xlane.f32.xlu0 %v2329
    %v2333 = vpop.xlane.xlu0 %2332
    %v2336 = vlaneseq
    %v2337 = vshrl.u32 %v2336, 7
    %v2338 = vsub.s32 %v65, %v2337
    %v2339 = vrot.slane %v2331, %v2338
    %v2340 = vlaneseq
    %v2341 = vshrl.u32 %v2340, 7
    %v2342 = vsub.s32 %v65, %v2341
    %v2343 = vrot.slane %v2333, %v2342
    %vm2344 = vcmask 1041409
    %v2345 = vsel %vm2344, %v2343, %v2339
    %vm2347 = vcmask 58368
    %2348 = vst.msk [vmem:[#allocation2] sm:$0x3] %vm2347, %v2345
    %v2349 = vmul.f32 %v2318, %v2326
    %v2350 = vmul.f32 %v2319, %v2327
    %2351 = vadd.xlane.f32.xlu0 %v2349
    %v2352 = vpop.xlane.xlu0 %2351
    %2353 = vadd.xlane.f32.xlu0 %v2350
    %v2354 = vpop.xlane.xlu0 %2353
    %v2357 = vlaneseq
    %v2358 = vshrl.u32 %v2357, 7
    %v2359 = vsub.s32 %v65, %v2358
    %v2360 = vrot.slane %v2352, %v2359
    %v2361 = vlaneseq
    %v2362 = vshrl.u32 %v2361, 7
    %v2363 = vsub.s32 %v65, %v2362
    %v2364 = vrot.slane %v2354, %v2363
    %v2365 = vsel %vm2344, %v2364, %v2360
    %2367 = vst.msk [vmem:[#allocation4] sm:$0x3] %vm2347, %v2365
    // Predicated region
    $region74: #{sasrec_forward.1} parent=1 // pred_check
      _
    $region75: #{sasrec_forward.1} parent=1 // pred_check_branch
      %2369 = sbr.rel (0) target = $region77
    $region76: #{sasrec_forward.1} parent=1 // pred_region
      %s2371 = ssub.s32 32, 32
      %2372 = vsyncadd [#allocation3], %s2371
      %s2374 = sshll.u32 [#allocation2], 4
      %s2375 = int_to_ptr.vmem [resolvable:$true] %s2374
      %2377 = dma.vmem_to_hbm [thread:$0]  %s2375, 32, %s18, [#allocation3]
    $region77: #{sasrec_forward.1} parent=1 // pred_fallthru
      _
    // Predicated region
    $region78: #{sasrec_forward.1} parent=1 // pred_check
      _
    $region79: #{sasrec_forward.1} parent=1 // pred_check_branch
      %2379 = sbr.rel (0) target = $region81
    $region80: #{sasrec_forward.1} parent=1 // pred_region
      %s2381 = ssub.s32 32, 32
      %2382 = vsyncadd [#allocation5], %s2381
      %s2384 = sshll.u32 [#allocation4], 4
      %s2385 = int_to_ptr.vmem [resolvable:$true] %s2384
      %2387 = dma.vmem_to_hbm [thread:$0]  %s2385, 32, %s19, [#allocation5]
    $region81: #{sasrec_forward.1} parent=1 // pred_fallthru
      _
    // Predicated region
    $region82: #{sasrec_forward.1} parent=1 // pred_check
      _
    $region83: #{sasrec_forward.1} parent=1 // pred_check_branch
      %2389 = sbr.rel (0) target = $region85
    $region84: #{sasrec_forward.1} parent=1 // pred_region
      %2390 = dma.done [#allocation3], 32
    $region85: #{sasrec_forward.1} parent=1 // pred_fallthru
      _
    // Predicated region
    $region86: #{sasrec_forward.1} parent=1 // pred_check
      _
    $region87: #{sasrec_forward.1} parent=1 // pred_check_branch
      %2392 = sbr.rel (0) target = $region89
    $region88: #{sasrec_forward.1} parent=1 // pred_region
      %2393 = dma.done [#allocation5], 32
    $region89: #{sasrec_forward.1} parent=1 // pred_fallthru
      _
    %2394 = vsyncpa [#allocation3], 1
    %2395 = vsyncpa [#allocation5], 1

// kernel: sasrec_forward.1
$region0: #{sasrec_forward.1}
  #allocation0 [shape = 'u32[]', space=smem, size = 0x4, offset = 0x4, fixed_abs, tag = 'smem constant byte address 0x4 - core index']
  #allocation1 [shape = 'u32[144,128]{1,0:T(1,128)}', space=vmem, size = 0x12000, scoped, tag = 'internal scratch']
  %s0 = inlined_call_operand.vmem [shape: bf16[16,128], index: 0, kind: input, shape index: {}]
  %s1 = inlined_call_operand.vmem [shape: f32[16,1], index: 1, kind: input, shape index: {}]
  %s2 = inlined_call_operand.vmem [shape: bf16[16,128], index: 2, kind: input, shape index: {}]
  %s3 = inlined_call_operand.vmem [shape: bf16[16,128], index: 3, kind: input, shape index: {}]
  %s4 = inlined_call_operand.vmem [shape: f32[2,1,128], index: 4, kind: input, shape index: {}]
  %s5 = inlined_call_operand.vmem [shape: f32[2,1,128], index: 5, kind: input, shape index: {}]
  %s6 = inlined_call_operand.vmem [shape: bf16[2,128,128], index: 6, kind: input, shape index: {}]
  %s7 = inlined_call_operand.vmem [shape: f32[2,1,128], index: 7, kind: input, shape index: {}]
  %s8 = inlined_call_operand.vmem [shape: bf16[2,128,256], index: 8, kind: input, shape index: {}]
  %s9 = inlined_call_operand.vmem [shape: f32[2,1,256], index: 9, kind: input, shape index: {}]
  %s10 = inlined_call_operand.vmem [shape: bf16[2,128,128], index: 10, kind: input, shape index: {}]
  %s11 = inlined_call_operand.vmem [shape: f32[2,1,128], index: 11, kind: input, shape index: {}]
  %s12 = inlined_call_operand.vmem [shape: f32[2,1,128], index: 12, kind: input, shape index: {}]
  %s13 = inlined_call_operand.vmem [shape: f32[2,1,128], index: 13, kind: input, shape index: {}]
  %s14 = inlined_call_operand.vmem [shape: bf16[2,128,128], index: 14, kind: input, shape index: {}]
  %s15 = inlined_call_operand.vmem [shape: f32[2,1,128], index: 15, kind: input, shape index: {}]
  %s16 = inlined_call_operand.vmem [shape: bf16[2,128,128], index: 16, kind: input, shape index: {}]
  %s17 = inlined_call_operand.vmem [shape: f32[2,1,128], index: 17, kind: input, shape index: {}]
  %s18 = inlined_call_operand.hbm [shape: f32[2,8], index: 18, kind: output, shape index: {0}]
  %s19 = inlined_call_operand.hbm [shape: f32[2,8], index: 19, kind: output, shape index: {1}]
  %20 = xla_tuple %s18, %s19
  %s21 = sld [smem:[#allocation0]]
  $region90: #{sasrec_forward.1} parent=0
    _
  %s23 = ssub.s32 1, %s21
  %s24 = scalar_select 0, %s23, %s21
  $region1: #{sasrec_forward.1} parent=0
    #allocation2 [shape = 'u8[1024]{0}', space=vmem, size = 0x400, scoped, tag = 'output window, operand 0, single buffered']
    #allocation3 [shape = 's32[1]{0}', space=sflag, size = 0x4, scoped, tag = 'scoped memory for sasrec_forward.1']
    #allocation4 [shape = 'u8[1024]{0}', space=vmem, size = 0x400, scoped, tag = 'output window, operand 1, single buffered']
    #allocation5 [shape = 's32[1]{0}', space=sflag, size = 0x4, scoped, tag = 'scoped memory for sasrec_forward.1']
    %25 = vsyncpa [#allocation3], 0
    %26 = vsyncpa [#allocation5], 0
    // Predicated region
    $region2: #{sasrec_forward.1} parent=1 // pred_check
      _
    $region3: #{sasrec_forward.1} parent=1 // pred_check_branch
      %28 = sbr.rel (0) target = $region5
    $region4: #{sasrec_forward.1} parent=1 // pred_region
      _
    $region5: #{sasrec_forward.1} parent=1 // pred_fallthru
      _
    // Predicated region
    $region6: #{sasrec_forward.1} parent=1 // pred_check
      _
    $region7: #{sasrec_forward.1} parent=1 // pred_check_branch
      %30 = sbr.rel (0) target = $region9
    $region8: #{sasrec_forward.1} parent=1 // pred_region
      _
    $region9: #{sasrec_forward.1} parent=1 // pred_fallthru
      _
    // Predicated region
    $region10: #{sasrec_forward.1} parent=1 // pred_check
      _
    $region11: #{sasrec_forward.1} parent=1 // pred_check_branch
      %32 = sbr.rel (0) target = $region13
    $region12: #{sasrec_forward.1} parent=1 // pred_region
      _
    $region13: #{sasrec_forward.1} parent=1 // pred_fallthru
      _
    // Predicated region
    $region14: #{sasrec_forward.1} parent=1 // pred_check
      _
    $region15: #{sasrec_forward.1} parent=1 // pred_check_branch
      %34 = sbr.rel (0) target = $region17
    $region16: #{sasrec_forward.1} parent=1 // pred_region
      _
    $region17: #{sasrec_forward.1} parent=1 // pred_fallthru
      _
    // Predicated region
    $region18: #{sasrec_forward.1} parent=1 // pred_check
      _
    $region19: #{sasrec_forward.1} parent=1 // pred_check_branch
      %36 = sbr.rel (0) target = $region21
    $region20: #{sasrec_forward.1} parent=1 // pred_region
      _
    $region21: #{sasrec_forward.1} parent=1 // pred_fallthru
      _
    // Predicated region
    $region22: #{sasrec_forward.1} parent=1 // pred_check
      _
    $region23: #{sasrec_forward.1} parent=1 // pred_check_branch
      %38 = sbr.rel (0) target = $region25
    $region24: #{sasrec_forward.1} parent=1 // pred_region
      _
    $region25: #{sasrec_forward.1} parent=1 // pred_fallthru
      _
    // Predicated region
    $region26: #{sasrec_forward.1} parent=1 // pred_check
      _
    $region27: #{sasrec_forward.1} parent=1 // pred_check_branch
      %40 = sbr.rel (0) target = $region29
    $region28: #{sasrec_forward.1} parent=1 // pred_region
      _
    $region29: #{sasrec_forward.1} parent=1 // pred_fallthru
      _
    // Predicated region
    $region30: #{sasrec_forward.1} parent=1 // pred_check
      _
    $region31: #{sasrec_forward.1} parent=1 // pred_check_branch
      %42 = sbr.rel (0) target = $region33
    $region32: #{sasrec_forward.1} parent=1 // pred_region
      _
    $region33: #{sasrec_forward.1} parent=1 // pred_fallthru
      _
    // Predicated region
    $region34: #{sasrec_forward.1} parent=1 // pred_check
      _
    $region35: #{sasrec_forward.1} parent=1 // pred_check_branch
      %44 = sbr.rel (0) target = $region37
    $region36: #{sasrec_forward.1} parent=1 // pred_region
      _
    $region37: #{sasrec_forward.1} parent=1 // pred_fallthru
      _
    // Predicated region
    $region38: #{sasrec_forward.1} parent=1 // pred_check
      _
    $region39: #{sasrec_forward.1} parent=1 // pred_check_branch
      %46 = sbr.rel (0) target = $region41
    $region40: #{sasrec_forward.1} parent=1 // pred_region
      _
    $region41: #{sasrec_forward.1} parent=1 // pred_fallthru
      _
    // Predicated region
    $region42: #{sasrec_forward.1} parent=1 // pred_check
      _
    $region43: #{sasrec_forward.1} parent=1 // pred_check_branch
      %48 = sbr.rel (0) target = $region45
    $region44: #{sasrec_forward.1} parent=1 // pred_region
      _
    $region45: #{sasrec_forward.1} parent=1 // pred_fallthru
      _
    // Predicated region
    $region46: #{sasrec_forward.1} parent=1 // pred_check
      _
    $region47: #{sasrec_forward.1} parent=1 // pred_check_branch
      %50 = sbr.rel (0) target = $region49
    $region48: #{sasrec_forward.1} parent=1 // pred_region
      _
    $region49: #{sasrec_forward.1} parent=1 // pred_fallthru
      _
    // Predicated region
    $region50: #{sasrec_forward.1} parent=1 // pred_check
      _
    $region51: #{sasrec_forward.1} parent=1 // pred_check_branch
      %52 = sbr.rel (0) target = $region53
    $region52: #{sasrec_forward.1} parent=1 // pred_region
      _
    $region53: #{sasrec_forward.1} parent=1 // pred_fallthru
      _
    // Predicated region
    $region54: #{sasrec_forward.1} parent=1 // pred_check
      _
    $region55: #{sasrec_forward.1} parent=1 // pred_check_branch
      %54 = sbr.rel (0) target = $region57
    $region56: #{sasrec_forward.1} parent=1 // pred_region
      _
    $region57: #{sasrec_forward.1} parent=1 // pred_fallthru
      _
    // Predicated region
    $region58: #{sasrec_forward.1} parent=1 // pred_check
      _
    $region59: #{sasrec_forward.1} parent=1 // pred_check_branch
      %56 = sbr.rel (0) target = $region61
    $region60: #{sasrec_forward.1} parent=1 // pred_region
      _
    $region61: #{sasrec_forward.1} parent=1 // pred_fallthru
      _
    // Predicated region
    $region62: #{sasrec_forward.1} parent=1 // pred_check
      _
    $region63: #{sasrec_forward.1} parent=1 // pred_check_branch
      %58 = sbr.rel (0) target = $region65
    $region64: #{sasrec_forward.1} parent=1 // pred_region
      _
    $region65: #{sasrec_forward.1} parent=1 // pred_fallthru
      _
    // Predicated region
    $region66: #{sasrec_forward.1} parent=1 // pred_check
      _
    $region67: #{sasrec_forward.1} parent=1 // pred_check_branch
      %60 = sbr.rel (0) target = $region69
    $region68: #{sasrec_forward.1} parent=1 // pred_region
      _
    $region69: #{sasrec_forward.1} parent=1 // pred_fallthru
      _
    // Predicated region
    $region70: #{sasrec_forward.1} parent=1 // pred_check
      _
    $region71: #{sasrec_forward.1} parent=1 // pred_check_branch
      %62 = sbr.rel (0) target = $region73
    $region72: #{sasrec_forward.1} parent=1 // pred_region
      _
    $region73: #{sasrec_forward.1} parent=1 // pred_fallthru
      _
    %v64 = vlaneseq
    %v65 = vand.u32 %v64, 127
    %vm66 = vcmp.lt.s32.totalorder %v65, 32
    %v67 = vsel %vm66, 1, 0
    %v68 = vcvt.s32.f32 %v67
    %vm69 = vcmp.ge.s32.totalorder %v65, 0
    %vm70 = vcmp.lt.s32.totalorder %v65, 16
    %vm71 = vmand %vm69, %vm70
    %v72 = vsel %vm71, 1, 0
    %v73 = vcvt.s32.f32 %v72
    %v74 = vpack.c.bf16 %v73, %v73
    %vm75 = vcmp.ge.s32.totalorder %v65, 16
    %vm76 = vmand %vm75, %vm66
    %v77 = vsel %vm76, 1, 0
    %v78 = vcvt.s32.f32 %v77
    %v79 = vpack.c.bf16 %v78, %v78
    %v80 = vlaneseq
    %v81 = vshrl.u32 %v80, 7
    %vm82 = vcmp.le.s32.totalorder %v65, %v81
    %v83 = vsel %vm82, 0.0, -1e+30
    %v84 = vld [vmem:[%s1] sm:$0xff]
    %v85 = vld [vmem:[%s1 + $0x8] sm:$0xff]
    %v86 = vld [vmem:[%s0] sm:$0xf]
    %v87 = vld [vmem:[%s0 + $0x4] sm:$0xf]
    %v88 = vunpack.c.l.bf16 %v86
    %v89 = vunpack.c.l.bf16 %v87
    %91 = vset.pattern.permute.xlu0 0
    %92 = vperm.xlu0 %91, %v84
    %v93 = vpop.permute.xlu0 %92
    %96 = vset.pattern.permute.xlu0 0
    %97 = vperm.xlu0 %96, %v85
    %v98 = vpop.permute.xlu0 %97
    %v100 = vmul.f32 %v88, %v93
    %v101 = vmul.f32 %v89, %v98
    %v102 = vld [vmem:[%s4] sm:$0x1]
    %v103 = vld [vmem:[%s5] sm:$0x1]
    %104 = vadd.xlane.f32.xlu0 %v100
    %v105 = vpop.xlane.xlu0 %104
    %106 = vadd.xlane.f32.xlu0 %v101
    %v107 = vpop.xlane.xlu0 %106
    %v108 = vmul.f32 %v105, 0.03125
    %v109 = vmul.f32 %v107, 0.03125
    %v110 = vsub.f32 %v100, %v108
    %v111 = vsub.f32 %v101, %v109
    %v112 = vmul.f32 %v110, %v68
    %v113 = vmul.f32 %v111, %v68
    %v114 = vmul.f32 %v112, %v112
    %v115 = vmul.f32 %v113, %v113
    %116 = vadd.xlane.f32.xlu0 %v114
    %v117 = vpop.xlane.xlu0 %116
    %118 = vadd.xlane.f32.xlu0 %v115
    %v119 = vpop.xlane.xlu0 %118
    %v120 = vmul.f32 %v117, 0.03125
    %v121 = vmul.f32 %v119, 0.03125
    %v122 = vadd.f32 %v120, 1e-08
    %v123 = vadd.f32 %v121, 1e-08
    %v124 = vrsqrt.pop %v122
    %v125 = vrsqrt.pop %v123
    %v126 = vmul.f32 %v112, %v124
    %v127 = vmul.f32 %v113, %v125
    %v129 = vlaneseq
    %v130 = vshrl.u32 %v129, 7
    %v131 = vsub.s32 0, %v130
    %v132 = vrot.slane %v102, %v131
    %v134 = vmul.f32 %v126, %v132
    %v135 = vmul.f32 %v127, %v132
    %v137 = vlaneseq
    %v138 = vshrl.u32 %v137, 7
    %v139 = vsub.s32 0, %v138
    %v140 = vrot.slane %v103, %v139
    %v142 = vadd.f32 %v134, %v140
    %v143 = vadd.f32 %v135, %v140
    %v144 = vpack.c.bf16 %v143, %v142
    %v145 = vld [vmem:[%s6] sm:$0xf]
    %v146 = vld [vmem:[%s6 + $0x4] sm:$0xf]
    %v147 = vld [vmem:[%s6 + $0x8] sm:$0xf]
    %v148 = vld [vmem:[%s6 + $0xc] sm:$0xf]
    %v149 = vld [vmem:[%s6 + $0x10] sm:$0xf]
    %v150 = vld [vmem:[%s6 + $0x14] sm:$0xf]
    %v151 = vld [vmem:[%s6 + $0x18] sm:$0xf]
    %v152 = vld [vmem:[%s6 + $0x1c] sm:$0xf]
    %v153 = vld [vmem:[%s6 + $0x20] sm:$0xf]
    %v154 = vld [vmem:[%s6 + $0x24] sm:$0xf]
    %v155 = vld [vmem:[%s6 + $0x28] sm:$0xf]
    %v156 = vld [vmem:[%s6 + $0x2c] sm:$0xf]
    %v157 = vld [vmem:[%s6 + $0x30] sm:$0xf]
    %v158 = vld [vmem:[%s6 + $0x34] sm:$0xf]
    %v159 = vld [vmem:[%s6 + $0x38] sm:$0xf]
    %v160 = vld [vmem:[%s6 + $0x3c] sm:$0xf]
    %v161 = vld [vmem:[%s7] sm:$0x1]
    %v163 = vlaneseq
    %v164 = vshrl.u32 %v163, 7
    %v165 = vsub.s32 0, %v164
    %v166 = vrot.slane %v161, %v165
    %v184 = vunpack.c.l.b16 %v145
    %v185 = vunpack.c.l.b16 %v146
    %v186 = vunpack.c.l.b16 %v147
    %v187 = vunpack.c.l.b16 %v148
    %v188 = vunpack.c.l.b16 %v149
    %v189 = vunpack.c.l.b16 %v150
    %v190 = vunpack.c.l.b16 %v151
    %v191 = vunpack.c.l.b16 %v152
    %v192 = vunpack.c.l.b16 %v153
    %v193 = vunpack.c.l.b16 %v154
    %v194 = vunpack.c.l.b16 %v155
    %v195 = vunpack.c.l.b16 %v156
    %v196 = vunpack.c.l.b16 %v157
    %v197 = vunpack.c.l.b16 %v158
    %v198 = vunpack.c.l.b16 %v159
    %v199 = vunpack.c.l.b16 %v160
    %v200 = vpack.c.b16 %v185, %v184
    %v201 = vpack.c.b16 %v187, %v186
    %v202 = vpack.c.b16 %v189, %v188
    %v203 = vpack.c.b16 %v191, %v190
    %v204 = vpack.c.b16 %v193, %v192
    %v205 = vpack.c.b16 %v195, %v194
    %v206 = vpack.c.b16 %v197, %v196
    %v207 = vpack.c.b16 %v199, %v198
    %216 = vmatprep.subr.bf16.mxu0 0
    %217 = vmatpush1.bf16.msra.mxu0 %v207
    %218 = vmatprep.subr.bf16.mxu0 0
    %219 = vmatpush1.bf16.msra.mxu0 %v206
    %220 = vmatprep.subr.bf16.mxu0 0
    %221 = vmatpush1.bf16.msra.mxu0 %v205
    %222 = vmatprep.subr.bf16.mxu0 0
    %223 = vmatpush1.bf16.msra.mxu0 %v204
    %224 = vmatprep.subr.bf16.mxu0 0
    %225 = vmatpush1.bf16.msra.mxu0 %v203
    %226 = vmatprep.subr.bf16.mxu0 0
    %227 = vmatpush1.bf16.msra.mxu0 %v202
    %228 = vmatprep.subr.bf16.mxu0 0
    %229 = vmatpush1.bf16.msra.mxu0 %v201
    %230 = vmatprep.subr.bf16.mxu0 0
    %231 = vmatpush1.bf16.msra.mxu0 %v200
    %232 = vmatprep.subr.bf16.mxu0 0
    %233 = vmatpush2.bf16.msra.mxu0 0
    %234 = vmatprep.subr.bf16.mxu0 0
    %235 = vmatpush2.bf16.msra.mxu0 0
    %236 = vmatprep.subr.bf16.mxu0 0
    %237 = vmatpush2.bf16.msra.mxu0 0
    %238 = vmatprep.subr.bf16.mxu0 0
    %239 = vmatpush2.bf16.msra.mxu0 0
    %240 = vmatprep.subr.bf16.mxu0 0
    %241 = vmatpush2.bf16.msra.mxu0 0
    %242 = vmatprep.subr.bf16.mxu0 0
    %243 = vmatpush2.bf16.msra.mxu0 0
    %244 = vmatprep.subr.bf16.mxu0 0
    %245 = vmatpush2.bf16.msra.mxu0 0
    %246 = vmatprep.subr.bf16.mxu0 0
    %247 = vmatpush2.bf16.msra.mxu0 0
    %248 = vmatprep.mubr.bf16.mxu0 0
    %249 = vmatmul.mubr.bf16.gmra.mxu0 %v144
    %v250 = vpop.f32.mrf.mxu0
    %v251 = vadd.f32 %v166, %v250
    %v252 = vpop.f32.mrf.mxu0
    %v253 = vpop.f32.mrf.mxu0
    %v254 = vadd.f32 %v166, %v253
    %v255 = vpop.f32.mrf.mxu0
    %256 = vdwg.mxu0
    %v257 = vpack.c.bf16 %v101, %v100
    %v258 = vld [vmem:[%s8] sm:$0xff]
    %v259 = vld [vmem:[%s8 + $0x8] sm:$0xff]
    %v260 = vld [vmem:[%s8 + $0x10] sm:$0xff]
    %v261 = vld [vmem:[%s8 + $0x18] sm:$0xff]
    %v262 = vld [vmem:[%s8 + $0x20] sm:$0xff]
    %v263 = vld [vmem:[%s8 + $0x28] sm:$0xff]
    %v264 = vld [vmem:[%s8 + $0x30] sm:$0xff]
    %v265 = vld [vmem:[%s8 + $0x38] sm:$0xff]
    %v266 = vld [vmem:[%s8 + $0x40] sm:$0xff]
    %v267 = vld [vmem:[%s8 + $0x48] sm:$0xff]
    %v268 = vld [vmem:[%s8 + $0x50] sm:$0xff]
    %v269 = vld [vmem:[%s8 + $0x58] sm:$0xff]
    %v270 = vld [vmem:[%s8 + $0x60] sm:$0xff]
    %v271 = vld [vmem:[%s8 + $0x68] sm:$0xff]
    %v272 = vld [vmem:[%s8 + $0x70] sm:$0xff]
    %v273 = vld [vmem:[%s8 + $0x78] sm:$0xff]
    %v274 = vld [vmem:[%s9] sm:$0x3]
    %v276 = vlaneseq
    %v277 = vshrl.u32 %v276, 7
    %v278 = vsub.s32 0, %v277
    %v279 = vrot.slane %v274, %v278
    %v280 = vlaneseq
    %v281 = vshrl.u32 %v280, 7
    %v282 = vsub.s32 1, %v281
    %v283 = vrot.slane %v274, %v282
    %v302 = vunpack.c.l.b16 %v258
    %v303 = vunpack.c.h.b16 %v258
    %v304 = vunpack.c.l.b16 %v259
    %v305 = vunpack.c.h.b16 %v259
    %v306 = vunpack.c.l.b16 %v260
    %v307 = vunpack.c.h.b16 %v260
    %v308 = vunpack.c.l.b16 %v261
    %v309 = vunpack.c.h.b16 %v261
    %v310 = vunpack.c.l.b16 %v262
    %v311 = vunpack.c.h.b16 %v262
    %v312 = vunpack.c.l.b16 %v263
    %v313 = vunpack.c.h.b16 %v263
    %v314 = vunpack.c.l.b16 %v264
    %v315 = vunpack.c.h.b16 %v264
    %v316 = vunpack.c.l.b16 %v265
    %v317 = vunpack.c.h.b16 %v265
    %v318 = vunpack.c.l.b16 %v266
    %v319 = vunpack.c.h.b16 %v266
    %v320 = vunpack.c.l.b16 %v267
    %v321 = vunpack.c.h.b16 %v267
    %v322 = vunpack.c.l.b16 %v268
    %v323 = vunpack.c.h.b16 %v268
    %v324 = vunpack.c.l.b16 %v269
    %v325 = vunpack.c.h.b16 %v269
    %v326 = vunpack.c.l.b16 %v270
    %v327 = vunpack.c.h.b16 %v270
    %v328 = vunpack.c.l.b16 %v271
    %v329 = vunpack.c.h.b16 %v271
    %v330 = vunpack.c.l.b16 %v272
    %v331 = vunpack.c.h.b16 %v272
    %v332 = vunpack.c.l.b16 %v273
    %v333 = vunpack.c.h.b16 %v273
    %v334 = vpack.c.b16 %v304, %v302
    %v335 = vpack.c.b16 %v305, %v303
    %v336 = vpack.c.b16 %v308, %v306
    %v337 = vpack.c.b16 %v309, %v307
    %v338 = vpack.c.b16 %v312, %v310
    %v339 = vpack.c.b16 %v313, %v311
    %v340 = vpack.c.b16 %v316, %v314
    %v341 = vpack.c.b16 %v317, %v315
    %v342 = vpack.c.b16 %v320, %v318
    %v343 = vpack.c.b16 %v321, %v319
    %v344 = vpack.c.b16 %v324, %v322
    %v345 = vpack.c.b16 %v325, %v323
    %v346 = vpack.c.b16 %v328, %v326
    %v347 = vpack.c.b16 %v329, %v327
    %v348 = vpack.c.b16 %v332, %v330
    %v349 = vpack.c.b16 %v333, %v331
    %366 = vmatprep.subr.bf16.mxu0 %v349
    %367 = vmatpush1.bf16.msra.mxu0 %v348
    %368 = vmatprep.subr.bf16.mxu0 %v347
    %369 = vmatpush1.bf16.msra.mxu0 %v346
    %370 = vmatprep.subr.bf16.mxu0 %v345
    %371 = vmatpush1.bf16.msra.mxu0 %v344
    %372 = vmatprep.subr.bf16.mxu0 %v343
    %373 = vmatpush1.bf16.msra.mxu0 %v342
    %374 = vmatprep.subr.bf16.mxu0 %v341
    %375 = vmatpush1.bf16.msra.mxu0 %v340
    %376 = vmatprep.subr.bf16.mxu0 %v339
    %377 = vmatpush1.bf16.msra.mxu0 %v338
    %378 = vmatprep.subr.bf16.mxu0 %v337
    %379 = vmatpush1.bf16.msra.mxu0 %v336
    %380 = vmatprep.subr.bf16.mxu0 %v335
    %381 = vmatpush1.bf16.msra.mxu0 %v334
    %382 = vmatprep.subr.bf16.mxu0 0
    %383 = vmatpush2.bf16.msra.mxu0 0
    %384 = vmatprep.subr.bf16.mxu0 0
    %385 = vmatpush2.bf16.msra.mxu0 0
    %386 = vmatprep.subr.bf16.mxu0 0
    %387 = vmatpush2.bf16.msra.mxu0 0
    %388 = vmatprep.subr.bf16.mxu0 0
    %389 = vmatpush2.bf16.msra.mxu0 0
    %390 = vmatprep.subr.bf16.mxu0 0
    %391 = vmatpush2.bf16.msra.mxu0 0
    %392 = vmatprep.subr.bf16.mxu0 0
    %393 = vmatpush2.bf16.msra.mxu0 0
    %394 = vmatprep.subr.bf16.mxu0 0
    %395 = vmatpush2.bf16.msra.mxu0 0
    %396 = vmatprep.subr.bf16.mxu0 0
    %397 = vmatpush2.bf16.msra.mxu0 0
    %398 = vmatprep.mubr.bf16.mxu0 0
    %399 = vmatmul.mubr.bf16.gmra.mxu0 %v257
    %v400 = vpop.f32.mrf.mxu0
    %v401 = vadd.f32 %v279, %v400
    %v402 = vpop.f32.mrf.mxu0
    %v403 = vadd.f32 %v283, %v402
    %v404 = vpop.f32.mrf.mxu0
    %v405 = vadd.f32 %v279, %v404
    %v406 = vpop.f32.mrf.mxu0
    %v407 = vadd.f32 %v283, %v406
    %408 = vdwg.mxu0
    %v409 = vpack.c.bf16 %v251, %v251
    %v410 = vpack.c.bf16 %v254, %v254
    %v411 = vpack.c.bf16 %v401, %v401
    %v412 = vpack.c.bf16 %v405, %v405
    %v413 = vpack.c.bf16 %v403, %v403
    %v414 = vpack.c.bf16 %v407, %v407
    %v415 = vmul.bf16 %v409, %v74
    %v416 = vmul.bf16 %v410, %v74
    %417 = vmatprep.subr.bf16.mxu0 0
    %418 = vmatpush1.bf16.xpose.msra.mxu0 0
    %419 = vmatprep.subr.bf16.mxu0 0
    %420 = vmatpush1.bf16.xpose.msra.mxu0 0
    %421 = vmatprep.subr.bf16.mxu0 0
    %422 = vmatpush1.bf16.xpose.msra.mxu0 0
    %423 = vmatprep.subr.bf16.mxu0 0
    %424 = vmatpush1.bf16.xpose.msra.mxu0 0
    %425 = vmatprep.subr.bf16.mxu0 0
    %426 = vmatpush1.bf16.xpose.msra.mxu0 0
    %427 = vmatprep.subr.bf16.mxu0 0
    %428 = vmatpush1.bf16.xpose.msra.mxu0 0
    %429 = vmatprep.subr.bf16.mxu0 0
    %430 = vmatpush1.bf16.xpose.msra.mxu0 0
    %431 = vmatprep.subr.bf16.mxu0 0
    %432 = vmatpush1.bf16.xpose.msra.mxu0 %v411
    %433 = vmatprep.subr.bf16.mxu0 0
    %434 = vmatpush2.bf16.xpose.msra.mxu0 0
    %435 = vmatprep.subr.bf16.mxu0 0
    %436 = vmatpush2.bf16.xpose.msra.mxu0 0
    %437 = vmatprep.subr.bf16.mxu0 0
    %438 = vmatpush2.bf16.xpose.msra.mxu0 0
    %439 = vmatprep.subr.bf16.mxu0 0
    %440 = vmatpush2.bf16.xpose.msra.mxu0 0
    %441 = vmatprep.subr.bf16.mxu0 0
    %442 = vmatpush2.bf16.xpose.msra.mxu0 0
    %443 = vmatprep.subr.bf16.mxu0 0
    %444 = vmatpush2.bf16.xpose.msra.mxu0 0
    %445 = vmatprep.subr.bf16.mxu0 0
    %446 = vmatpush2.bf16.xpose.msra.mxu0 0
    %447 = vmatprep.subr.bf16.mxu0 0
    %448 = vmatpush2.bf16.xpose.msra.mxu0 0
    %449 = vmatprep.mubr.bf16.mxu0 0
    %450 = vmatmul.mubr.bf16.gmra.mxu0 %v415
    %v451 = vpop.f32.mrf.mxu0
    %v452 = vadd.f32 %v83, %v451
    %v453 = vpop.f32.mrf.mxu0
    %v454 = vpop.f32.mrf.mxu0
    %v455 = vpop.f32.mrf.mxu0
    %456 = vdwg.mxu0
    %457 = vmatprep.subr.bf16.mxu0 0
    %458 = vmatpush1.bf16.xpose.msra.mxu0 0
    %459 = vmatprep.subr.bf16.mxu0 0
    %460 = vmatpush1.bf16.xpose.msra.mxu0 0
    %461 = vmatprep.subr.bf16.mxu0 0
    %462 = vmatpush1.bf16.xpose.msra.mxu0 0
    %463 = vmatprep.subr.bf16.mxu0 0
    %464 = vmatpush1.bf16.xpose.msra.mxu0 0
    %465 = vmatprep.subr.bf16.mxu0 0
    %466 = vmatpush1.bf16.xpose.msra.mxu0 0
    %467 = vmatprep.subr.bf16.mxu0 0
    %468 = vmatpush1.bf16.xpose.msra.mxu0 0
    %469 = vmatprep.subr.bf16.mxu0 0
    %470 = vmatpush1.bf16.xpose.msra.mxu0 0
    %471 = vmatprep.subr.bf16.mxu0 0
    %472 = vmatpush1.bf16.xpose.msra.mxu0 %v412
    %473 = vmatprep.subr.bf16.mxu0 0
    %474 = vmatpush2.bf16.xpose.msra.mxu0 0
    %475 = vmatprep.subr.bf16.mxu0 0
    %476 = vmatpush2.bf16.xpose.msra.mxu0 0
    %477 = vmatprep.subr.bf16.mxu0 0
    %478 = vmatpush2.bf16.xpose.msra.mxu0 0
    %479 = vmatprep.subr.bf16.mxu0 0
    %480 = vmatpush2.bf16.xpose.msra.mxu0 0
    %481 = vmatprep.subr.bf16.mxu0 0
    %482 = vmatpush2.bf16.xpose.msra.mxu0 0
    %483 = vmatprep.subr.bf16.mxu0 0
    %484 = vmatpush2.bf16.xpose.msra.mxu0 0
    %485 = vmatprep.subr.bf16.mxu0 0
    %486 = vmatpush2.bf16.xpose.msra.mxu0 0
    %487 = vmatprep.subr.bf16.mxu0 0
    %488 = vmatpush2.bf16.xpose.msra.mxu0 0
    %489 = vmatprep.mubr.bf16.mxu0 0
    %490 = vmatmul.mubr.bf16.gmra.mxu0 %v416
    %v491 = vpop.f32.mrf.mxu0
    %v492 = vadd.f32 %v83, %v491
    %v493 = vpop.f32.mrf.mxu0
    %v494 = vpop.f32.mrf.mxu0
    %v495 = vpop.f32.mrf.mxu0
    %496 = vdwg.mxu0
    %vm497 = vcmask 64512
    %v498 = vsel %vm497, %v452, -inf
    %499 = vmax.xlane.f32.xlu0 %v498
    %v500 = vpop.xlane.xlu0 %499
    %v501 = vsel %vm497, %v492, -inf
    %502 = vmax.xlane.f32.xlu0 %v501
    %v503 = vpop.xlane.xlu0 %502
    %v504 = vsub.f32 %v452, %v500
    %v505 = vsub.f32 %v492, %v503
    %v506 = vmul.f32 %v504, 1.442695
    %v507 = vpow.pop %v506
    %v508 = vmul.f32 %v505, 1.442695
    %v509 = vpow.pop %v508
    %v510 = vsel %vm497, %v507, 0.0
    %511 = vadd.xlane.f32.xlu0 %v510
    %v512 = vpop.xlane.xlu0 %511
    %v513 = vsel %vm497, %v509, 0.0
    %514 = vadd.xlane.f32.xlu0 %v513
    %v515 = vpop.xlane.xlu0 %514
    %v516 = vrcp.pop %v512
    %v517 = vrcp.pop %v515
    %v518 = vmul.f32 %v507, %v516
    %v519 = vmul.f32 %v509, %v517
    %v520 = vpack.c.bf16 %v518, %v518
    %v521 = vpack.c.bf16 %v519, %v519
    %v522 = vmul.bf16 %v413, %v74
    %v523 = vmul.bf16 %v414, %v74
    %v524 = vmul.bf16 %v409, %v79
    %v525 = vmul.bf16 %v410, %v79
    %526 = vmatprep.subr.bf16.mxu0 0
    %527 = vmatpush1.bf16.xpose.msra.mxu0 0
    %528 = vmatprep.subr.bf16.mxu0 0
    %529 = vmatpush1.bf16.xpose.msra.mxu0 0
    %530 = vmatprep.subr.bf16.mxu0 0
    %531 = vmatpush1.bf16.xpose.msra.mxu0 0
    %532 = vmatprep.subr.bf16.mxu0 0
    %533 = vmatpush1.bf16.xpose.msra.mxu0 0
    %534 = vmatprep.subr.bf16.mxu0 0
    %535 = vmatpush1.bf16.xpose.msra.mxu0 0
    %536 = vmatprep.subr.bf16.mxu0 0
    %537 = vmatpush1.bf16.xpose.msra.mxu0 0
    %538 = vmatprep.subr.bf16.mxu0 0
    %539 = vmatpush1.bf16.xpose.msra.mxu0 0
    %540 = vmatprep.subr.bf16.mxu0 0
    %541 = vmatpush1.bf16.xpose.msra.mxu0 %v411
    %542 = vmatprep.subr.bf16.mxu0 0
    %543 = vmatpush2.bf16.xpose.msra.mxu0 0
    %544 = vmatprep.subr.bf16.mxu0 0
    %545 = vmatpush2.bf16.xpose.msra.mxu0 0
    %546 = vmatprep.subr.bf16.mxu0 0
    %547 = vmatpush2.bf16.xpose.msra.mxu0 0
    %548 = vmatprep.subr.bf16.mxu0 0
    %549 = vmatpush2.bf16.xpose.msra.mxu0 0
    %550 = vmatprep.subr.bf16.mxu0 0
    %551 = vmatpush2.bf16.xpose.msra.mxu0 0
    %552 = vmatprep.subr.bf16.mxu0 0
    %553 = vmatpush2.bf16.xpose.msra.mxu0 0
    %554 = vmatprep.subr.bf16.mxu0 0
    %555 = vmatpush2.bf16.xpose.msra.mxu0 0
    %556 = vmatprep.subr.bf16.mxu0 0
    %557 = vmatpush2.bf16.xpose.msra.mxu0 0
    %558 = vmatprep.mubr.bf16.mxu0 0
    %559 = vmatmul.mubr.bf16.gmra.mxu0 %v524
    %v560 = vpop.f32.mrf.mxu0
    %v561 = vadd.f32 %v83, %v560
    %v562 = vpop.f32.mrf.mxu0
    %v563 = vpop.f32.mrf.mxu0
    %v564 = vpop.f32.mrf.mxu0
    %565 = vdwg.mxu0
    %566 = vmatprep.subr.bf16.mxu0 0
    %567 = vmatpush1.bf16.xpose.msra.mxu0 0
    %568 = vmatprep.subr.bf16.mxu0 0
    %569 = vmatpush1.bf16.xpose.msra.mxu0 0
    %570 = vmatprep.subr.bf16.mxu0 0
    %571 = vmatpush1.bf16.xpose.msra.mxu0 0
    %572 = vmatprep.subr.bf16.mxu0 0
    %573 = vmatpush1.bf16.xpose.msra.mxu0 0
    %574 = vmatprep.subr.bf16.mxu0 0
    %575 = vmatpush1.bf16.xpose.msra.mxu0 0
    %576 = vmatprep.subr.bf16.mxu0 0
    %577 = vmatpush1.bf16.xpose.msra.mxu0 0
    %578 = vmatprep.subr.bf16.mxu0 0
    %579 = vmatpush1.bf16.xpose.msra.mxu0 0
    %580 = vmatprep.subr.bf16.mxu0 0
    %581 = vmatpush1.bf16.xpose.msra.mxu0 %v412
    %582 = vmatprep.subr.bf16.mxu0 0
    %583 = vmatpush2.bf16.xpose.msra.mxu0 0
    %584 = vmatprep.subr.bf16.mxu0 0
    %585 = vmatpush2.bf16.xpose.msra.mxu0 0
    %586 = vmatprep.subr.bf16.mxu0 0
    %587 = vmatpush2.bf16.xpose.msra.mxu0 0
    %588 = vmatprep.subr.bf16.mxu0 0
    %589 = vmatpush2.bf16.xpose.msra.mxu0 0
    %590 = vmatprep.subr.bf16.mxu0 0
    %591 = vmatpush2.bf16.xpose.msra.mxu0 0
    %592 = vmatprep.subr.bf16.mxu0 0
    %593 = vmatpush2.bf16.xpose.msra.mxu0 0
    %594 = vmatprep.subr.bf16.mxu0 0
    %595 = vmatpush2.bf16.xpose.msra.mxu0 0
    %596 = vmatprep.subr.bf16.mxu0 0
    %597 = vmatpush2.bf16.xpose.msra.mxu0 0
    %598 = vmatprep.mubr.bf16.mxu0 0
    %599 = vmatmul.mubr.bf16.gmra.mxu0 %v525
    %v600 = vpop.f32.mrf.mxu0
    %v601 = vadd.f32 %v83, %v600
    %v602 = vpop.f32.mrf.mxu0
    %v603 = vpop.f32.mrf.mxu0
    %v604 = vpop.f32.mrf.mxu0
    %605 = vdwg.mxu0
    %v606 = vsel %vm497, %v561, -inf
    %607 = vmax.xlane.f32.xlu0 %v606
    %v608 = vpop.xlane.xlu0 %607
    %v609 = vsel %vm497, %v601, -inf
    %610 = vmax.xlane.f32.xlu0 %v609
    %v611 = vpop.xlane.xlu0 %610
    %v612 = vsub.f32 %v561, %v608
    %v613 = vsub.f32 %v601, %v611
    %v614 = vmul.f32 %v612, 1.442695
    %v615 = vpow.pop %v614
    %v616 = vmul.f32 %v613, 1.442695
    %v617 = vpow.pop %v616
    %v618 = vsel %vm497, %v615, 0.0
    %619 = vadd.xlane.f32.xlu0 %v618
    %v620 = vpop.xlane.xlu0 %619
    %v621 = vsel %vm497, %v617, 0.0
    %622 = vadd.xlane.f32.xlu0 %v621
    %v623 = vpop.xlane.xlu0 %622
    %v624 = vrcp.pop %v620
    %v625 = vrcp.pop %v623
    %v626 = vmul.f32 %v615, %v624
    %v627 = vmul.f32 %v617, %v625
    %v628 = vpack.c.bf16 %v626, %v626
    %v629 = vpack.c.bf16 %v627, %v627
    %v630 = vmul.bf16 %v413, %v79
    %v631 = vmul.bf16 %v414, %v79
    %v633 = vsel %vm497, %v628, 0
    %vm635 = vcmask 1043456
    %v637 = vsel %vm635, %v630, 0
    %639 = vmatprep.subr.bf16.mxu0 0
    %640 = vmatpush1.bf16.msra.mxu0 0
    %641 = vmatprep.subr.bf16.mxu0 0
    %642 = vmatpush1.bf16.msra.mxu0 0
    %643 = vmatprep.subr.bf16.mxu0 0
    %644 = vmatpush1.bf16.msra.mxu0 0
    %645 = vmatprep.subr.bf16.mxu0 0
    %646 = vmatpush1.bf16.msra.mxu0 0
    %647 = vmatprep.subr.bf16.mxu0 0
    %648 = vmatpush1.bf16.msra.mxu0 0
    %649 = vmatprep.subr.bf16.mxu0 0
    %650 = vmatpush1.bf16.msra.mxu0 0
    %651 = vmatprep.subr.bf16.mxu0 0
    %652 = vmatpush1.bf16.msra.mxu0 0
    %653 = vmatprep.subr.bf16.mxu0 0
    %654 = vmatpush1.bf16.msra.mxu0 %v637
    %655 = vmatprep.subr.bf16.mxu0 0
    %656 = vmatpush2.bf16.msra.mxu0 0
    %657 = vmatprep.subr.bf16.mxu0 0
    %658 = vmatpush2.bf16.msra.mxu0 0
    %659 = vmatprep.subr.bf16.mxu0 0
    %660 = vmatpush2.bf16.msra.mxu0 0
    %661 = vmatprep.subr.bf16.mxu0 0
    %662 = vmatpush2.bf16.msra.mxu0 0
    %663 = vmatprep.subr.bf16.mxu0 0
    %664 = vmatpush2.bf16.msra.mxu0 0
    %665 = vmatprep.subr.bf16.mxu0 0
    %666 = vmatpush2.bf16.msra.mxu0 0
    %667 = vmatprep.subr.bf16.mxu0 0
    %668 = vmatpush2.bf16.msra.mxu0 0
    %669 = vmatprep.subr.bf16.mxu0 0
    %670 = vmatpush2.bf16.msra.mxu0 0
    %671 = vmatprep.mubr.bf16.mxu0 0
    %672 = vmatmul.mubr.bf16.gmra.mxu0 %v633
    %v673 = vpop.f32.mrf.mxu0
    %v674 = vadd.f32 0.0, %v673
    %v675 = vpop.f32.mrf.mxu0
    %v676 = vpop.f32.mrf.mxu0
    %v677 = vpop.f32.mrf.mxu0
    %678 = vdwg.mxu0
    %v680 = vsel %vm497, %v629, 0
    %v683 = vsel %vm635, %v631, 0
    %685 = vmatprep.subr.bf16.mxu0 0
    %686 = vmatpush1.bf16.msra.mxu0 0
    %687 = vmatprep.subr.bf16.mxu0 0
    %688 = vmatpush1.bf16.msra.mxu0 0
    %689 = vmatprep.subr.bf16.mxu0 0
    %690 = vmatpush1.bf16.msra.mxu0 0
    %691 = vmatprep.subr.bf16.mxu0 0
    %692 = vmatpush1.bf16.msra.mxu0 0
    %693 = vmatprep.subr.bf16.mxu0 0
    %694 = vmatpush1.bf16.msra.mxu0 0
    %695 = vmatprep.subr.bf16.mxu0 0
    %696 = vmatpush1.bf16.msra.mxu0 0
    %697 = vmatprep.subr.bf16.mxu0 0
    %698 = vmatpush1.bf16.msra.mxu0 0
    %699 = vmatprep.subr.bf16.mxu0 0
    %700 = vmatpush1.bf16.msra.mxu0 %v683
    %701 = vmatprep.subr.bf16.mxu0 0
    %702 = vmatpush2.bf16.msra.mxu0 0
    %703 = vmatprep.subr.bf16.mxu0 0
    %704 = vmatpush2.bf16.msra.mxu0 0
    %705 = vmatprep.subr.bf16.mxu0 0
    %706 = vmatpush2.bf16.msra.mxu0 0
    %707 = vmatprep.subr.bf16.mxu0 0
    %708 = vmatpush2.bf16.msra.mxu0 0
    %709 = vmatprep.subr.bf16.mxu0 0
    %710 = vmatpush2.bf16.msra.mxu0 0
    %711 = vmatprep.subr.bf16.mxu0 0
    %712 = vmatpush2.bf16.msra.mxu0 0
    %713 = vmatprep.subr.bf16.mxu0 0
    %714 = vmatpush2.bf16.msra.mxu0 0
    %715 = vmatprep.subr.bf16.mxu0 0
    %716 = vmatpush2.bf16.msra.mxu0 0
    %717 = vmatprep.mubr.bf16.mxu0 0
    %718 = vmatmul.mubr.bf16.gmra.mxu0 %v680
    %v719 = vpop.f32.mrf.mxu0
    %v720 = vadd.f32 0.0, %v719
    %v721 = vpop.f32.mrf.mxu0
    %v722 = vpop.f32.mrf.mxu0
    %v723 = vpop.f32.mrf.mxu0
    %724 = vdwg.mxu0
    %v726 = vsel %vm497, %v520, 0
    %v729 = vsel %vm635, %v522, 0
    %731 = vmatprep.subr.bf16.mxu0 0
    %732 = vmatpush1.bf16.msra.mxu0 0
    %733 = vmatprep.subr.bf16.mxu0 0
    %734 = vmatpush1.bf16.msra.mxu0 0
    %735 = vmatprep.subr.bf16.mxu0 0
    %736 = vmatpush1.bf16.msra.mxu0 0
    %737 = vmatprep.subr.bf16.mxu0 0
    %738 = vmatpush1.bf16.msra.mxu0 0
    %739 = vmatprep.subr.bf16.mxu0 0
    %740 = vmatpush1.bf16.msra.mxu0 0
    %741 = vmatprep.subr.bf16.mxu0 0
    %742 = vmatpush1.bf16.msra.mxu0 0
    %743 = vmatprep.subr.bf16.mxu0 0
    %744 = vmatpush1.bf16.msra.mxu0 0
    %745 = vmatprep.subr.bf16.mxu0 0
    %746 = vmatpush1.bf16.msra.mxu0 %v729
    %747 = vmatprep.subr.bf16.mxu0 0
    %748 = vmatpush2.bf16.msra.mxu0 0
    %749 = vmatprep.subr.bf16.mxu0 0
    %750 = vmatpush2.bf16.msra.mxu0 0
    %751 = vmatprep.subr.bf16.mxu0 0
    %752 = vmatpush2.bf16.msra.mxu0 0
    %753 = vmatprep.subr.bf16.mxu0 0
    %754 = vmatpush2.bf16.msra.mxu0 0
    %755 = vmatprep.subr.bf16.mxu0 0
    %756 = vmatpush2.bf16.msra.mxu0 0
    %757 = vmatprep.subr.bf16.mxu0 0
    %758 = vmatpush2.bf16.msra.mxu0 0
    %759 = vmatprep.subr.bf16.mxu0 0
    %760 = vmatpush2.bf16.msra.mxu0 0
    %761 = vmatprep.subr.bf16.mxu0 0
    %762 = vmatpush2.bf16.msra.mxu0 0
    %763 = vmatprep.mubr.bf16.mxu0 0
    %764 = vmatmul.mubr.bf16.gmra.mxu0 %v726
    %v765 = vpop.f32.mrf.mxu0
    %v766 = vadd.f32 %v674, %v765
    %v767 = vpop.f32.mrf.mxu0
    %v768 = vpop.f32.mrf.mxu0
    %v769 = vpop.f32.mrf.mxu0
    %770 = vdwg.mxu0
    %v772 = vsel %vm497, %v521, 0
    %v775 = vsel %vm635, %v523, 0
    %777 = vmatprep.subr.bf16.mxu0 0
    %778 = vmatpush1.bf16.msra.mxu0 0
    %779 = vmatprep.subr.bf16.mxu0 0
    %780 = vmatpush1.bf16.msra.mxu0 0
    %781 = vmatprep.subr.bf16.mxu0 0
    %782 = vmatpush1.bf16.msra.mxu0 0
    %783 = vmatprep.subr.bf16.mxu0 0
    %784 = vmatpush1.bf16.msra.mxu0 0
    %785 = vmatprep.subr.bf16.mxu0 0
    %786 = vmatpush1.bf16.msra.mxu0 0
    %787 = vmatprep.subr.bf16.mxu0 0
    %788 = vmatpush1.bf16.msra.mxu0 0
    %789 = vmatprep.subr.bf16.mxu0 0
    %790 = vmatpush1.bf16.msra.mxu0 0
    %791 = vmatprep.subr.bf16.mxu0 0
    %792 = vmatpush1.bf16.msra.mxu0 %v775
    %793 = vmatprep.subr.bf16.mxu0 0
    %794 = vmatpush2.bf16.msra.mxu0 0
    %795 = vmatprep.subr.bf16.mxu0 0
    %796 = vmatpush2.bf16.msra.mxu0 0
    %797 = vmatprep.subr.bf16.mxu0 0
    %798 = vmatpush2.bf16.msra.mxu0 0
    %799 = vmatprep.subr.bf16.mxu0 0
    %800 = vmatpush2.bf16.msra.mxu0 0
    %801 = vmatprep.subr.bf16.mxu0 0
    %802 = vmatpush2.bf16.msra.mxu0 0
    %803 = vmatprep.subr.bf16.mxu0 0
    %804 = vmatpush2.bf16.msra.mxu0 0
    %805 = vmatprep.subr.bf16.mxu0 0
    %806 = vmatpush2.bf16.msra.mxu0 0
    %807 = vmatprep.subr.bf16.mxu0 0
    %808 = vmatpush2.bf16.msra.mxu0 0
    %809 = vmatprep.mubr.bf16.mxu0 0
    %810 = vmatmul.mubr.bf16.gmra.mxu0 %v772
    %v811 = vpop.f32.mrf.mxu0
    %v812 = vadd.f32 %v720, %v811
    %v813 = vpop.f32.mrf.mxu0
    %v814 = vpop.f32.mrf.mxu0
    %v815 = vpop.f32.mrf.mxu0
    %816 = vdwg.mxu0
    %v817 = vpack.c.bf16 %v812, %v766
    %v818 = vld [vmem:[%s10] sm:$0xf]
    %v819 = vld [vmem:[%s10 + $0x4] sm:$0xf]
    %v820 = vld [vmem:[%s10 + $0x8] sm:$0xf]
    %v821 = vld [vmem:[%s10 + $0xc] sm:$0xf]
    %v822 = vld [vmem:[%s10 + $0x10] sm:$0xf]
    %v823 = vld [vmem:[%s10 + $0x14] sm:$0xf]
    %v824 = vld [vmem:[%s10 + $0x18] sm:$0xf]
    %v825 = vld [vmem:[%s10 + $0x1c] sm:$0xf]
    %v826 = vld [vmem:[%s10 + $0x20] sm:$0xf]
    %v827 = vld [vmem:[%s10 + $0x24] sm:$0xf]
    %v828 = vld [vmem:[%s10 + $0x28] sm:$0xf]
    %v829 = vld [vmem:[%s10 + $0x2c] sm:$0xf]
    %v830 = vld [vmem:[%s10 + $0x30] sm:$0xf]
    %v831 = vld [vmem:[%s10 + $0x34] sm:$0xf]
    %v832 = vld [vmem:[%s10 + $0x38] sm:$0xf]
    %v833 = vld [vmem:[%s10 + $0x3c] sm:$0xf]
    %v834 = vld [vmem:[%s11] sm:$0x1]
    %v836 = vlaneseq
    %v837 = vshrl.u32 %v836, 7
    %v838 = vsub.s32 0, %v837
    %v839 = vrot.slane %v834, %v838
    %v857 = vunpack.c.l.b16 %v818
    %v858 = vunpack.c.l.b16 %v819
    %v859 = vunpack.c.l.b16 %v820
    %v860 = vunpack.c.l.b16 %v821
    %v861 = vunpack.c.l.b16 %v822
    %v862 = vunpack.c.l.b16 %v823
    %v863 = vunpack.c.l.b16 %v824
    %v864 = vunpack.c.l.b16 %v825
    %v865 = vunpack.c.l.b16 %v826
    %v866 = vunpack.c.l.b16 %v827
    %v867 = vunpack.c.l.b16 %v828
    %v868 = vunpack.c.l.b16 %v829
    %v869 = vunpack.c.l.b16 %v830
    %v870 = vunpack.c.l.b16 %v831
    %v871 = vunpack.c.l.b16 %v832
    %v872 = vunpack.c.l.b16 %v833
    %v873 = vpack.c.b16 %v858, %v857
    %v874 = vpack.c.b16 %v860, %v859
    %v875 = vpack.c.b16 %v862, %v861
    %v876 = vpack.c.b16 %v864, %v863
    %v877 = vpack.c.b16 %v866, %v865
    %v878 = vpack.c.b16 %v868, %v867
    %v879 = vpack.c.b16 %v870, %v869
    %v880 = vpack.c.b16 %v872, %v871
    %889 = vmatprep.subr.bf16.mxu0 0
    %890 = vmatpush1.bf16.msra.mxu0 %v880
    %891 = vmatprep.subr.bf16.mxu0 0
    %892 = vmatpush1.bf16.msra.mxu0 %v879
    %893 = vmatprep.subr.bf16.mxu0 0
    %894 = vmatpush1.bf16.msra.mxu0 %v878
    %895 = vmatprep.subr.bf16.mxu0 0
    %896 = vmatpush1.bf16.msra.mxu0 %v877
    %897 = vmatprep.subr.bf16.mxu0 0
    %898 = vmatpush1.bf16.msra.mxu0 %v876
    %899 = vmatprep.subr.bf16.mxu0 0
    %900 = vmatpush1.bf16.msra.mxu0 %v875
    %901 = vmatprep.subr.bf16.mxu0 0
    %902 = vmatpush1.bf16.msra.mxu0 %v874
    %903 = vmatprep.subr.bf16.mxu0 0
    %904 = vmatpush1.bf16.msra.mxu0 %v873
    %905 = vmatprep.subr.bf16.mxu0 0
    %906 = vmatpush2.bf16.msra.mxu0 0
    %907 = vmatprep.subr.bf16.mxu0 0
    %908 = vmatpush2.bf16.msra.mxu0 0
    %909 = vmatprep.subr.bf16.mxu0 0
    %910 = vmatpush2.bf16.msra.mxu0 0
    %911 = vmatprep.subr.bf16.mxu0 0
    %912 = vmatpush2.bf16.msra.mxu0 0
    %913 = vmatprep.subr.bf16.mxu0 0
    %914 = vmatpush2.bf16.msra.mxu0 0
    %915 = vmatprep.subr.bf16.mxu0 0
    %916 = vmatpush2.bf16.msra.mxu0 0
    %917 = vmatprep.subr.bf16.mxu0 0
    %918 = vmatpush2.bf16.msra.mxu0 0
    %919 = vmatprep.subr.bf16.mxu0 0
    %920 = vmatpush2.bf16.msra.mxu0 0
    %921 = vmatprep.mubr.bf16.mxu0 0
    %922 = vmatmul.mubr.bf16.gmra.mxu0 %v817
    %v923 = vpop.f32.mrf.mxu0
    %v924 = vadd.f32 %v839, %v923
    %v925 = vpop.f32.mrf.mxu0
    %v926 = vpop.f32.mrf.mxu0
    %v927 = vadd.f32 %v839, %v926
    %v928 = vpop.f32.mrf.mxu0
    %929 = vdwg.mxu0
    %v930 = vadd.f32 %v924, %v100
    %v931 = vadd.f32 %v927, %v101
    %v932 = vld [vmem:[%s12] sm:$0x1]
    %v933 = vld [vmem:[%s13] sm:$0x1]
    %934 = vadd.xlane.f32.xlu0 %v930
    %v935 = vpop.xlane.xlu0 %934
    %936 = vadd.xlane.f32.xlu0 %v931
    %v937 = vpop.xlane.xlu0 %936
    %v938 = vmul.f32 %v935, 0.03125
    %v939 = vmul.f32 %v937, 0.03125
    %v940 = vsub.f32 %v930, %v938
    %v941 = vsub.f32 %v931, %v939
    %v942 = vmul.f32 %v940, %v68
    %v943 = vmul.f32 %v941, %v68
    %v944 = vmul.f32 %v942, %v942
    %v945 = vmul.f32 %v943, %v943
    %946 = vadd.xlane.f32.xlu0 %v944
    %v947 = vpop.xlane.xlu0 %946
    %948 = vadd.xlane.f32.xlu0 %v945
    %v949 = vpop.xlane.xlu0 %948
    %v950 = vmul.f32 %v947, 0.03125
    %v951 = vmul.f32 %v949, 0.03125
    %v952 = vadd.f32 %v950, 1e-08
    %v953 = vadd.f32 %v951, 1e-08
    %v954 = vrsqrt.pop %v952
    %v955 = vrsqrt.pop %v953
    %v956 = vmul.f32 %v942, %v954
    %v957 = vmul.f32 %v943, %v955
    %v959 = vlaneseq
    %v960 = vshrl.u32 %v959, 7
    %v961 = vsub.s32 0, %v960
    %v962 = vrot.slane %v932, %v961
    %v964 = vmul.f32 %v956, %v962
    %v965 = vmul.f32 %v957, %v962
    %v967 = vlaneseq
    %v968 = vshrl.u32 %v967, 7
    %v969 = vsub.s32 0, %v968
    %v970 = vrot.slane %v933, %v969
    %v972 = vadd.f32 %v964, %v970
    %v973 = vadd.f32 %v965, %v970
    %v974 = vpack.c.bf16 %v973, %v972
    %v975 = vld [vmem:[%s14] sm:$0xf]
    %v976 = vld [vmem:[%s14 + $0x4] sm:$0xf]
    %v977 = vld [vmem:[%s14 + $0x8] sm:$0xf]
    %v978 = vld [vmem:[%s14 + $0xc] sm:$0xf]
    %v979 = vld [vmem:[%s14 + $0x10] sm:$0xf]
    %v980 = vld [vmem:[%s14 + $0x14] sm:$0xf]
    %v981 = vld [vmem:[%s14 + $0x18] sm:$0xf]
    %v982 = vld [vmem:[%s14 + $0x1c] sm:$0xf]
    %v983 = vld [vmem:[%s14 + $0x20] sm:$0xf]
    %v984 = vld [vmem:[%s14 + $0x24] sm:$0xf]
    %v985 = vld [vmem:[%s14 + $0x28] sm:$0xf]
    %v986 = vld [vmem:[%s14 + $0x2c] sm:$0xf]
    %v987 = vld [vmem:[%s14 + $0x30] sm:$0xf]
    %v988 = vld [vmem:[%s14 + $0x34] sm:$0xf]
    %v989 = vld [vmem:[%s14 + $0x38] sm:$0xf]
    %v990 = vld [vmem:[%s14 + $0x3c] sm:$0xf]
    %v991 = vld [vmem:[%s15] sm:$0x1]
    %v993 = vlaneseq
    %v994 = vshrl.u32 %v993, 7
    %v995 = vsub.s32 0, %v994
    %v996 = vrot.slane %v991, %v995
    %v1014 = vunpack.c.l.b16 %v975
    %v1015 = vunpack.c.l.b16 %v976
    %v1016 = vunpack.c.l.b16 %v977
    %v1017 = vunpack.c.l.b16 %v978
    %v1018 = vunpack.c.l.b16 %v979
    %v1019 = vunpack.c.l.b16 %v980
    %v1020 = vunpack.c.l.b16 %v981
    %v1021 = vunpack.c.l.b16 %v982
    %v1022 = vunpack.c.l.b16 %v983
    %v1023 = vunpack.c.l.b16 %v984
    %v1024 = vunpack.c.l.b16 %v985
    %v1025 = vunpack.c.l.b16 %v986
    %v1026 = vunpack.c.l.b16 %v987
    %v1027 = vunpack.c.l.b16 %v988
    %v1028 = vunpack.c.l.b16 %v989
    %v1029 = vunpack.c.l.b16 %v990
    %v1030 = vpack.c.b16 %v1015, %v1014
    %v1031 = vpack.c.b16 %v1017, %v1016
    %v1032 = vpack.c.b16 %v1019, %v1018
    %v1033 = vpack.c.b16 %v1021, %v1020
    %v1034 = vpack.c.b16 %v1023, %v1022
    %v1035 = vpack.c.b16 %v1025, %v1024
    %v1036 = vpack.c.b16 %v1027, %v1026
    %v1037 = vpack.c.b16 %v1029, %v1028
    %1046 = vmatprep.subr.bf16.mxu0 0
    %1047 = vmatpush1.bf16.msra.mxu0 %v1037
    %1048 = vmatprep.subr.bf16.mxu0 0
    %1049 = vmatpush1.bf16.msra.mxu0 %v1036
    %1050 = vmatprep.subr.bf16.mxu0 0
    %1051 = vmatpush1.bf16.msra.mxu0 %v1035
    %1052 = vmatprep.subr.bf16.mxu0 0
    %1053 = vmatpush1.bf16.msra.mxu0 %v1034
    %1054 = vmatprep.subr.bf16.mxu0 0
    %1055 = vmatpush1.bf16.msra.mxu0 %v1033
    %1056 = vmatprep.subr.bf16.mxu0 0
    %1057 = vmatpush1.bf16.msra.mxu0 %v1032
    %1058 = vmatprep.subr.bf16.mxu0 0
    %1059 = vmatpush1.bf16.msra.mxu0 %v1031
    %1060 = vmatprep.subr.bf16.mxu0 0
    %1061 = vmatpush1.bf16.msra.mxu0 %v1030
    %1062 = vmatprep.subr.bf16.mxu0 0
    %1063 = vmatpush2.bf16.msra.mxu0 0
    %1064 = vmatprep.subr.bf16.mxu0 0
    %1065 = vmatpush2.bf16.msra.mxu0 0
    %1066 = vmatprep.subr.bf16.mxu0 0
    %1067 = vmatpush2.bf16.msra.mxu0 0
    %1068 = vmatprep.subr.bf16.mxu0 0
    %1069 = vmatpush2.bf16.msra.mxu0 0
    %1070 = vmatprep.subr.bf16.mxu0 0
    %1071 = vmatpush2.bf16.msra.mxu0 0
    %1072 = vmatprep.subr.bf16.mxu0 0
    %1073 = vmatpush2.bf16.msra.mxu0 0
    %1074 = vmatprep.subr.bf16.mxu0 0
    %1075 = vmatpush2.bf16.msra.mxu0 0
    %1076 = vmatprep.subr.bf16.mxu0 0
    %1077 = vmatpush2.bf16.msra.mxu0 0
    %1078 = vmatprep.mubr.bf16.mxu0 0
    %1079 = vmatmul.mubr.bf16.gmra.mxu0 %v974
    %v1080 = vpop.f32.mrf.mxu0
    %v1081 = vadd.f32 %v996, %v1080
    %v1082 = vpop.f32.mrf.mxu0
    %v1083 = vpop.f32.mrf.mxu0
    %v1084 = vadd.f32 %v996, %v1083
    %v1085 = vpop.f32.mrf.mxu0
    %1086 = vdwg.mxu0
    %v1087 = vmax.f32 %v1081, 0.0
    %v1088 = vmax.f32 %v1084, 0.0
    %v1089 = vpack.c.bf16 %v1088, %v1087
    %v1090 = vld [vmem:[%s16] sm:$0xf]
    %v1091 = vld [vmem:[%s16 + $0x4] sm:$0xf]
    %v1092 = vld [vmem:[%s16 + $0x8] sm:$0xf]
    %v1093 = vld [vmem:[%s16 + $0xc] sm:$0xf]
    %v1094 = vld [vmem:[%s16 + $0x10] sm:$0xf]
    %v1095 = vld [vmem:[%s16 + $0x14] sm:$0xf]
    %v1096 = vld [vmem:[%s16 + $0x18] sm:$0xf]
    %v1097 = vld [vmem:[%s16 + $0x1c] sm:$0xf]
    %v1098 = vld [vmem:[%s16 + $0x20] sm:$0xf]
    %v1099 = vld [vmem:[%s16 + $0x24] sm:$0xf]
    %v1100 = vld [vmem:[%s16 + $0x28] sm:$0xf]
    %v1101 = vld [vmem:[%s16 + $0x2c] sm:$0xf]
    %v1102 = vld [vmem:[%s16 + $0x30] sm:$0xf]
    %v1103 = vld [vmem:[%s16 + $0x34] sm:$0xf]
    %v1104 = vld [vmem:[%s16 + $0x38] sm:$0xf]
    %v1105 = vld [vmem:[%s16 + $0x3c] sm:$0xf]
    %v1106 = vld [vmem:[%s17] sm:$0x1]
    %v1108 = vlaneseq
    %v1109 = vshrl.u32 %v1108, 7
    %v1110 = vsub.s32 0, %v1109
    %v1111 = vrot.slane %v1106, %v1110
    %v1129 = vunpack.c.l.b16 %v1090
    %v1130 = vunpack.c.l.b16 %v1091
    %v1131 = vunpack.c.l.b16 %v1092
    %v1132 = vunpack.c.l.b16 %v1093
    %v1133 = vunpack.c.l.b16 %v1094
    %v1134 = vunpack.c.l.b16 %v1095
    %v1135 = vunpack.c.l.b16 %v1096
    %v1136 = vunpack.c.l.b16 %v1097
    %v1137 = vunpack.c.l.b16 %v1098
    %v1138 = vunpack.c.l.b16 %v1099
    %v1139 = vunpack.c.l.b16 %v1100
    %v1140 = vunpack.c.l.b16 %v1101
    %v1141 = vunpack.c.l.b16 %v1102
    %v1142 = vunpack.c.l.b16 %v1103
    %v1143 = vunpack.c.l.b16 %v1104
    %v1144 = vunpack.c.l.b16 %v1105
    %v1145 = vpack.c.b16 %v1130, %v1129
    %v1146 = vpack.c.b16 %v1132, %v1131
    %v1147 = vpack.c.b16 %v1134, %v1133
    %v1148 = vpack.c.b16 %v1136, %v1135
    %v1149 = vpack.c.b16 %v1138, %v1137
    %v1150 = vpack.c.b16 %v1140, %v1139
    %v1151 = vpack.c.b16 %v1142, %v1141
    %v1152 = vpack.c.b16 %v1144, %v1143
    %1161 = vmatprep.subr.bf16.mxu0 0
    %1162 = vmatpush1.bf16.msra.mxu0 %v1152
    %1163 = vmatprep.subr.bf16.mxu0 0
    %1164 = vmatpush1.bf16.msra.mxu0 %v1151
    %1165 = vmatprep.subr.bf16.mxu0 0
    %1166 = vmatpush1.bf16.msra.mxu0 %v1150
    %1167 = vmatprep.subr.bf16.mxu0 0
    %1168 = vmatpush1.bf16.msra.mxu0 %v1149
    %1169 = vmatprep.subr.bf16.mxu0 0
    %1170 = vmatpush1.bf16.msra.mxu0 %v1148
    %1171 = vmatprep.subr.bf16.mxu0 0
    %1172 = vmatpush1.bf16.msra.mxu0 %v1147
    %1173 = vmatprep.subr.bf16.mxu0 0
    %1174 = vmatpush1.bf16.msra.mxu0 %v1146
    %1175 = vmatprep.subr.bf16.mxu0 0
    %1176 = vmatpush1.bf16.msra.mxu0 %v1145
    %1177 = vmatprep.subr.bf16.mxu0 0
    %1178 = vmatpush2.bf16.msra.mxu0 0
    %1179 = vmatprep.subr.bf16.mxu0 0
    %1180 = vmatpush2.bf16.msra.mxu0 0
    %1181 = vmatprep.subr.bf16.mxu0 0
    %1182 = vmatpush2.bf16.msra.mxu0 0
    %1183 = vmatprep.subr.bf16.mxu0 0
    %1184 = vmatpush2.bf16.msra.mxu0 0
    %1185 = vmatprep.subr.bf16.mxu0 0
    %1186 = vmatpush2.bf16.msra.mxu0 0
    %1187 = vmatprep.subr.bf16.mxu0 0
    %1188 = vmatpush2.bf16.msra.mxu0 0
    %1189 = vmatprep.subr.bf16.mxu0 0
    %1190 = vmatpush2.bf16.msra.mxu0 0
    %1191 = vmatprep.subr.bf16.mxu0 0
    %1192 = vmatpush2.bf16.msra.mxu0 0
    %1193 = vmatprep.mubr.bf16.mxu0 0
    %1194 = vmatmul.mubr.bf16.gmra.mxu0 %v1089
    %v1195 = vpop.f32.mrf.mxu0
    %v1196 = vadd.f32 %v1111, %v1195
    %v1197 = vpop.f32.mrf.mxu0
    %v1198 = vpop.f32.mrf.mxu0
    %v1199 = vadd.f32 %v1111, %v1198
    %v1200 = vpop.f32.mrf.mxu0
    %1201 = vdwg.mxu0
    %v1202 = vadd.f32 %v1196, %v930
    %v1203 = vadd.f32 %v1199, %v931
    %v1204 = vmul.f32 %v1202, %v93
    %v1205 = vmul.f32 %v1203, %v98
    %s1206 = scalar_lea.vmem %s4, 1
    %v1207 = vld [vmem:[%s1206] sm:$0x1]
    %s1208 = scalar_lea.vmem %s5, 1
    %v1209 = vld [vmem:[%s1208] sm:$0x1]
    %1210 = vadd.xlane.f32.xlu0 %v1204
    %v1211 = vpop.xlane.xlu0 %1210
    %1212 = vadd.xlane.f32.xlu0 %v1205
    %v1213 = vpop.xlane.xlu0 %1212
    %v1214 = vmul.f32 %v1211, 0.03125
    %v1215 = vmul.f32 %v1213, 0.03125
    %v1216 = vsub.f32 %v1204, %v1214
    %v1217 = vsub.f32 %v1205, %v1215
    %v1218 = vmul.f32 %v1216, %v68
    %v1219 = vmul.f32 %v1217, %v68
    %v1220 = vmul.f32 %v1218, %v1218
    %v1221 = vmul.f32 %v1219, %v1219
    %1222 = vadd.xlane.f32.xlu0 %v1220
    %v1223 = vpop.xlane.xlu0 %1222
    %1224 = vadd.xlane.f32.xlu0 %v1221
    %v1225 = vpop.xlane.xlu0 %1224
    %v1226 = vmul.f32 %v1223, 0.03125
    %v1227 = vmul.f32 %v1225, 0.03125
    %v1228 = vadd.f32 %v1226, 1e-08
    %v1229 = vadd.f32 %v1227, 1e-08
    %v1230 = vrsqrt.pop %v1228
    %v1231 = vrsqrt.pop %v1229
    %v1232 = vmul.f32 %v1218, %v1230
    %v1233 = vmul.f32 %v1219, %v1231
    %v1235 = vlaneseq
    %v1236 = vshrl.u32 %v1235, 7
    %v1237 = vsub.s32 0, %v1236
    %v1238 = vrot.slane %v1207, %v1237
    %v1240 = vmul.f32 %v1232, %v1238
    %v1241 = vmul.f32 %v1233, %v1238
    %v1243 = vlaneseq
    %v1244 = vshrl.u32 %v1243, 7
    %v1245 = vsub.s32 0, %v1244
    %v1246 = vrot.slane %v1209, %v1245
    %v1248 = vadd.f32 %v1240, %v1246
    %v1249 = vadd.f32 %v1241, %v1246
    %v1250 = vpack.c.bf16 %v1249, %v1248
    %s1251 = scalar_lea.vmem %s6, 64
    %v1252 = vld [vmem:[%s1251] sm:$0xf]
    %v1253 = vld [vmem:[%s1251 + $0x4] sm:$0xf]
    %v1254 = vld [vmem:[%s1251 + $0x8] sm:$0xf]
    %v1255 = vld [vmem:[%s1251 + $0xc] sm:$0xf]
    %v1256 = vld [vmem:[%s1251 + $0x10] sm:$0xf]
    %v1257 = vld [vmem:[%s1251 + $0x14] sm:$0xf]
    %v1258 = vld [vmem:[%s1251 + $0x18] sm:$0xf]
    %v1259 = vld [vmem:[%s1251 + $0x1c] sm:$0xf]
    %v1260 = vld [vmem:[%s1251 + $0x20] sm:$0xf]
    %v1261 = vld [vmem:[%s1251 + $0x24] sm:$0xf]
    %v1262 = vld [vmem:[%s1251 + $0x28] sm:$0xf]
    %v1263 = vld [vmem:[%s1251 + $0x2c] sm:$0xf]
    %v1264 = vld [vmem:[%s1251 + $0x30] sm:$0xf]
    %v1265 = vld [vmem:[%s1251 + $0x34] sm:$0xf]
    %v1266 = vld [vmem:[%s1251 + $0x38] sm:$0xf]
    %v1267 = vld [vmem:[%s1251 + $0x3c] sm:$0xf]
    %s1268 = scalar_lea.vmem %s7, 1
    %v1269 = vld [vmem:[%s1268] sm:$0x1]
    %v1271 = vlaneseq
    %v1272 = vshrl.u32 %v1271, 7
    %v1273 = vsub.s32 0, %v1272
    %v1274 = vrot.slane %v1269, %v1273
    %v1292 = vunpack.c.l.b16 %v1252
    %v1293 = vunpack.c.l.b16 %v1253
    %v1294 = vunpack.c.l.b16 %v1254
    %v1295 = vunpack.c.l.b16 %v1255
    %v1296 = vunpack.c.l.b16 %v1256
    %v1297 = vunpack.c.l.b16 %v1257
    %v1298 = vunpack.c.l.b16 %v1258
    %v1299 = vunpack.c.l.b16 %v1259
    %v1300 = vunpack.c.l.b16 %v1260
    %v1301 = vunpack.c.l.b16 %v1261
    %v1302 = vunpack.c.l.b16 %v1262
    %v1303 = vunpack.c.l.b16 %v1263
    %v1304 = vunpack.c.l.b16 %v1264
    %v1305 = vunpack.c.l.b16 %v1265
    %v1306 = vunpack.c.l.b16 %v1266
    %v1307 = vunpack.c.l.b16 %v1267
    %v1308 = vpack.c.b16 %v1293, %v1292
    %v1309 = vpack.c.b16 %v1295, %v1294
    %v1310 = vpack.c.b16 %v1297, %v1296
    %v1311 = vpack.c.b16 %v1299, %v1298
    %v1312 = vpack.c.b16 %v1301, %v1300
    %v1313 = vpack.c.b16 %v1303, %v1302
    %v1314 = vpack.c.b16 %v1305, %v1304
    %v1315 = vpack.c.b16 %v1307, %v1306
    %1324 = vmatprep.subr.bf16.mxu0 0
    %1325 = vmatpush1.bf16.msra.mxu0 %v1315
    %1326 = vmatprep.subr.bf16.mxu0 0
    %1327 = vmatpush1.bf16.msra.mxu0 %v1314
    %1328 = vmatprep.subr.bf16.mxu0 0
    %1329 = vmatpush1.bf16.msra.mxu0 %v1313
    %1330 = vmatprep.subr.bf16.mxu0 0
    %1331 = vmatpush1.bf16.msra.mxu0 %v1312
    %1332 = vmatprep.subr.bf16.mxu0 0
    %1333 = vmatpush1.bf16.msra.mxu0 %v1311
    %1334 = vmatprep.subr.bf16.mxu0 0
    %1335 = vmatpush1.bf16.msra.mxu0 %v1310
    %1336 = vmatprep.subr.bf16.mxu0 0
    %1337 = vmatpush1.bf16.msra.mxu0 %v1309
    %1338 = vmatprep.subr.bf16.mxu0 0
    %1339 = vmatpush1.bf16.msra.mxu0 %v1308
    %1340 = vmatprep.subr.bf16.mxu0 0
    %1341 = vmatpush2.bf16.msra.mxu0 0
    %1342 = vmatprep.subr.bf16.mxu0 0
    %1343 = vmatpush2.bf16.msra.mxu0 0
    %1344 = vmatprep.subr.bf16.mxu0 0
    %1345 = vmatpush2.bf16.msra.mxu0 0
    %1346 = vmatprep.subr.bf16.mxu0 0
    %1347 = vmatpush2.bf16.msra.mxu0 0
    %1348 = vmatprep.subr.bf16.mxu0 0
    %1349 = vmatpush2.bf16.msra.mxu0 0
    %1350 = vmatprep.subr.bf16.mxu0 0
    %1351 = vmatpush2.bf16.msra.mxu0 0
    %1352 = vmatprep.subr.bf16.mxu0 0
    %1353 = vmatpush2.bf16.msra.mxu0 0
    %1354 = vmatprep.subr.bf16.mxu0 0
    %1355 = vmatpush2.bf16.msra.mxu0 0
    %1356 = vmatprep.mubr.bf16.mxu0 0
    %1357 = vmatmul.mubr.bf16.gmra.mxu0 %v1250
    %v1358 = vpop.f32.mrf.mxu0
    %v1359 = vadd.f32 %v1274, %v1358
    %v1360 = vpop.f32.mrf.mxu0
    %v1361 = vpop.f32.mrf.mxu0
    %v1362 = vadd.f32 %v1274, %v1361
    %v1363 = vpop.f32.mrf.mxu0
    %1364 = vdwg.mxu0
    %v1365 = vpack.c.bf16 %v1205, %v1204
    %s1366 = scalar_lea.vmem %s8, 128
    %v1367 = vld [vmem:[%s1366] sm:$0xff]
    %v1368 = vld [vmem:[%s1366 + $0x8] sm:$0xff]
    %v1369 = vld [vmem:[%s1366 + $0x10] sm:$0xff]
    %v1370 = vld [vmem:[%s1366 + $0x18] sm:$0xff]
    %v1371 = vld [vmem:[%s1366 + $0x20] sm:$0xff]
    %v1372 = vld [vmem:[%s1366 + $0x28] sm:$0xff]
    %v1373 = vld [vmem:[%s1366 + $0x30] sm:$0xff]
    %v1374 = vld [vmem:[%s1366 + $0x38] sm:$0xff]
    %v1375 = vld [vmem:[%s1366 + $0x40] sm:$0xff]
    %v1376 = vld [vmem:[%s1366 + $0x48] sm:$0xff]
    %v1377 = vld [vmem:[%s1366 + $0x50] sm:$0xff]
    %v1378 = vld [vmem:[%s1366 + $0x58] sm:$0xff]
    %v1379 = vld [vmem:[%s1366 + $0x60] sm:$0xff]
    %v1380 = vld [vmem:[%s1366 + $0x68] sm:$0xff]
    %v1381 = vld [vmem:[%s1366 + $0x70] sm:$0xff]
    %v1382 = vld [vmem:[%s1366 + $0x78] sm:$0xff]
    %s1383 = scalar_lea.vmem %s9, 2
    %v1384 = vld [vmem:[%s1383] sm:$0x3]
    %v1386 = vlaneseq
    %v1387 = vshrl.u32 %v1386, 7
    %v1388 = vsub.s32 0, %v1387
    %v1389 = vrot.slane %v1384, %v1388
    %v1390 = vlaneseq
    %v1391 = vshrl.u32 %v1390, 7
    %v1392 = vsub.s32 1, %v1391
    %v1393 = vrot.slane %v1384, %v1392
    %v1412 = vunpack.c.l.b16 %v1367
    %v1413 = vunpack.c.h.b16 %v1367
    %v1414 = vunpack.c.l.b16 %v1368
    %v1415 = vunpack.c.h.b16 %v1368
    %v1416 = vunpack.c.l.b16 %v1369
    %v1417 = vunpack.c.h.b16 %v1369
    %v1418 = vunpack.c.l.b16 %v1370
    %v1419 = vunpack.c.h.b16 %v1370
    %v1420 = vunpack.c.l.b16 %v1371
    %v1421 = vunpack.c.h.b16 %v1371
    %v1422 = vunpack.c.l.b16 %v1372
    %v1423 = vunpack.c.h.b16 %v1372
    %v1424 = vunpack.c.l.b16 %v1373
    %v1425 = vunpack.c.h.b16 %v1373
    %v1426 = vunpack.c.l.b16 %v1374
    %v1427 = vunpack.c.h.b16 %v1374
    %v1428 = vunpack.c.l.b16 %v1375
    %v1429 = vunpack.c.h.b16 %v1375
    %v1430 = vunpack.c.l.b16 %v1376
    %v1431 = vunpack.c.h.b16 %v1376
    %v1432 = vunpack.c.l.b16 %v1377
    %v1433 = vunpack.c.h.b16 %v1377
    %v1434 = vunpack.c.l.b16 %v1378
    %v1435 = vunpack.c.h.b16 %v1378
    %v1436 = vunpack.c.l.b16 %v1379
    %v1437 = vunpack.c.h.b16 %v1379
    %v1438 = vunpack.c.l.b16 %v1380
    %v1439 = vunpack.c.h.b16 %v1380
    %v1440 = vunpack.c.l.b16 %v1381
    %v1441 = vunpack.c.h.b16 %v1381
    %v1442 = vunpack.c.l.b16 %v1382
    %v1443 = vunpack.c.h.b16 %v1382
    %v1444 = vpack.c.b16 %v1414, %v1412
    %v1445 = vpack.c.b16 %v1415, %v1413
    %v1446 = vpack.c.b16 %v1418, %v1416
    %v1447 = vpack.c.b16 %v1419, %v1417
    %v1448 = vpack.c.b16 %v1422, %v1420
    %v1449 = vpack.c.b16 %v1423, %v1421
    %v1450 = vpack.c.b16 %v1426, %v1424
    %v1451 = vpack.c.b16 %v1427, %v1425
    %v1452 = vpack.c.b16 %v1430, %v1428
    %v1453 = vpack.c.b16 %v1431, %v1429
    %v1454 = vpack.c.b16 %v1434, %v1432
    %v1455 = vpack.c.b16 %v1435, %v1433
    %v1456 = vpack.c.b16 %v1438, %v1436
    %v1457 = vpack.c.b16 %v1439, %v1437
    %v1458 = vpack.c.b16 %v1442, %v1440
    %v1459 = vpack.c.b16 %v1443, %v1441
    %1476 = vmatprep.subr.bf16.mxu0 %v1459
    %1477 = vmatpush1.bf16.msra.mxu0 %v1458
    %1478 = vmatprep.subr.bf16.mxu0 %v1457
    %1479 = vmatpush1.bf16.msra.mxu0 %v1456
    %1480 = vmatprep.subr.bf16.mxu0 %v1455
    %1481 = vmatpush1.bf16.msra.mxu0 %v1454
    %1482 = vmatprep.subr.bf16.mxu0 %v1453
    %1483 = vmatpush1.bf16.msra.mxu0 %v1452
    %1484 = vmatprep.subr.bf16.mxu0 %v1451
    %1485 = vmatpush1.bf16.msra.mxu0 %v1450
    %1486 = vmatprep.subr.bf16.mxu0 %v1449
    %1487 = vmatpush1.bf16.msra.mxu0 %v1448
    %1488 = vmatprep.subr.bf16.mxu0 %v1447
    %1489 = vmatpush1.bf16.msra.mxu0 %v1446
    %1490 = vmatprep.subr.bf16.mxu0 %v1445
    %1491 = vmatpush1.bf16.msra.mxu0 %v1444
    %1492 = vmatprep.subr.bf16.mxu0 0
    %1493 = vmatpush2.bf16.msra.mxu0 0
    %1494 = vmatprep.subr.bf16.mxu0 0
    %1495 = vmatpush2.bf16.msra.mxu0 0
    %1496 = vmatprep.subr.bf16.mxu0 0
    %1497 = vmatpush2.bf16.msra.mxu0 0
    %1498 = vmatprep.subr.bf16.mxu0 0
    %1499 = vmatpush2.bf16.msra.mxu0 0
    %1500 = vmatprep.subr.bf16.mxu0 0
    %1501 = vmatpush2.bf16.msra.mxu0 0
    %1502 = vmatprep.subr.bf16.mxu0 0
    %1503 = vmatpush2.bf16.msra.mxu0 0
    %1504 = vmatprep.subr.bf16.mxu0 0
    %1505 = vmatpush2.bf16.msra.mxu0 0
    %1506 = vmatprep.subr.bf16.mxu0 0
    %1507 = vmatpush2.bf16.msra.mxu0 0
    %1508 = vmatprep.mubr.bf16.mxu0 0
    %1509 = vmatmul.mubr.bf16.gmra.mxu0 %v1365
    %v1510 = vpop.f32.mrf.mxu0
    %v1511 = vadd.f32 %v1389, %v1510
    %v1512 = vpop.f32.mrf.mxu0
    %v1513 = vadd.f32 %v1393, %v1512
    %v1514 = vpop.f32.mrf.mxu0
    %v1515 = vadd.f32 %v1389, %v1514
    %v1516 = vpop.f32.mrf.mxu0
    %v1517 = vadd.f32 %v1393, %v1516
    %1518 = vdwg.mxu0
    %v1519 = vpack.c.bf16 %v1359, %v1359
    %v1520 = vpack.c.bf16 %v1362, %v1362
    %v1521 = vpack.c.bf16 %v1511, %v1511
    %v1522 = vpack.c.bf16 %v1515, %v1515
    %v1523 = vpack.c.bf16 %v1513, %v1513
    %v1524 = vpack.c.bf16 %v1517, %v1517
    %v1525 = vmul.bf16 %v1519, %v74
    %v1526 = vmul.bf16 %v1520, %v74
    %1527 = vmatprep.subr.bf16.mxu0 0
    %1528 = vmatpush1.bf16.xpose.msra.mxu0 0
    %1529 = vmatprep.subr.bf16.mxu0 0
    %1530 = vmatpush1.bf16.xpose.msra.mxu0 0
    %1531 = vmatprep.subr.bf16.mxu0 0
    %1532 = vmatpush1.bf16.xpose.msra.mxu0 0
    %1533 = vmatprep.subr.bf16.mxu0 0
    %1534 = vmatpush1.bf16.xpose.msra.mxu0 0
    %1535 = vmatprep.subr.bf16.mxu0 0
    %1536 = vmatpush1.bf16.xpose.msra.mxu0 0
    %1537 = vmatprep.subr.bf16.mxu0 0
    %1538 = vmatpush1.bf16.xpose.msra.mxu0 0
    %1539 = vmatprep.subr.bf16.mxu0 0
    %1540 = vmatpush1.bf16.xpose.msra.mxu0 0
    %1541 = vmatprep.subr.bf16.mxu0 0
    %1542 = vmatpush1.bf16.xpose.msra.mxu0 %v1521
    %1543 = vmatprep.subr.bf16.mxu0 0
    %1544 = vmatpush2.bf16.xpose.msra.mxu0 0
    %1545 = vmatprep.subr.bf16.mxu0 0
    %1546 = vmatpush2.bf16.xpose.msra.mxu0 0
    %1547 = vmatprep.subr.bf16.mxu0 0
    %1548 = vmatpush2.bf16.xpose.msra.mxu0 0
    %1549 = vmatprep.subr.bf16.mxu0 0
    %1550 = vmatpush2.bf16.xpose.msra.mxu0 0
    %1551 = vmatprep.subr.bf16.mxu0 0
    %1552 = vmatpush2.bf16.xpose.msra.mxu0 0
    %1553 = vmatprep.subr.bf16.mxu0 0
    %1554 = vmatpush2.bf16.xpose.msra.mxu0 0
    %1555 = vmatprep.subr.bf16.mxu0 0
    %1556 = vmatpush2.bf16.xpose.msra.mxu0 0
    %1557 = vmatprep.subr.bf16.mxu0 0
    %1558 = vmatpush2.bf16.xpose.msra.mxu0 0
    %1559 = vmatprep.mubr.bf16.mxu0 0
    %1560 = vmatmul.mubr.bf16.gmra.mxu0 %v1525
    %v1561 = vpop.f32.mrf.mxu0
    %v1562 = vadd.f32 %v83, %v1561
    %v1563 = vpop.f32.mrf.mxu0
    %v1564 = vpop.f32.mrf.mxu0
    %v1565 = vpop.f32.mrf.mxu0
    %1566 = vdwg.mxu0
    %1567 = vmatprep.subr.bf16.mxu0 0
    %1568 = vmatpush1.bf16.xpose.msra.mxu0 0
    %1569 = vmatprep.subr.bf16.mxu0 0
    %1570 = vmatpush1.bf16.xpose.msra.mxu0 0
    %1571 = vmatprep.subr.bf16.mxu0 0
    %1572 = vmatpush1.bf16.xpose.msra.mxu0 0
    %1573 = vmatprep.subr.bf16.mxu0 0
    %1574 = vmatpush1.bf16.xpose.msra.mxu0 0
    %1575 = vmatprep.subr.bf16.mxu0 0
    %1576 = vmatpush1.bf16.xpose.msra.mxu0 0
    %1577 = vmatprep.subr.bf16.mxu0 0
    %1578 = vmatpush1.bf16.xpose.msra.mxu0 0
    %1579 = vmatprep.subr.bf16.mxu0 0
    %1580 = vmatpush1.bf16.xpose.msra.mxu0 0
    %1581 = vmatprep.subr.bf16.mxu0 0
    %1582 = vmatpush1.bf16.xpose.msra.mxu0 %v1522
    %1583 = vmatprep.subr.bf16.mxu0 0
    %1584 = vmatpush2.bf16.xpose.msra.mxu0 0
    %1585 = vmatprep.subr.bf16.mxu0 0
    %1586 = vmatpush2.bf16.xpose.msra.mxu0 0
    %1587 = vmatprep.subr.bf16.mxu0 0
    %1588 = vmatpush2.bf16.xpose.msra.mxu0 0
    %1589 = vmatprep.subr.bf16.mxu0 0
    %1590 = vmatpush2.bf16.xpose.msra.mxu0 0
    %1591 = vmatprep.subr.bf16.mxu0 0
    %1592 = vmatpush2.bf16.xpose.msra.mxu0 0
    %1593 = vmatprep.subr.bf16.mxu0 0
    %1594 = vmatpush2.bf16.xpose.msra.mxu0 0
    %1595 = vmatprep.subr.bf16.mxu0 0
    %1596 = vmatpush2.bf16.xpose.msra.mxu0 0
    %1597 = vmatprep.subr.bf16.mxu0 0
    %1598 = vmatpush2.bf16.xpose.msra.mxu0 0
    %1599 = vmatprep.mubr.bf16.mxu0 0
    %1600 = vmatmul.mubr.bf16.gmra.mxu0 %v1526
    %v1601 = vpop.f32.mrf.mxu0
    %v1602 = vadd.f32 %v83, %v1601
    %v1603 = vpop.f32.mrf.mxu0
    %v1604 = vpop.f32.mrf.mxu0
    %v1605 = vpop.f32.mrf.mxu0
    %1606 = vdwg.mxu0
    %v1607 = vsel %vm497, %v1562, -inf
    %1608 = vmax.xlane.f32.xlu0 %v1607
    %v1609 = vpop.xlane.xlu0 %1608
    %v1610 = vsel %vm497, %v1602, -inf
    %1611 = vmax.xlane.f32.xlu0 %v1610
    %v1612 = vpop.xlane.xlu0 %1611
    %v1613 = vsub.f32 %v1562, %v1609
    %v1614 = vsub.f32 %v1602, %v1612
    %v1615 = vmul.f32 %v1613, 1.442695
    %v1616 = vpow.pop %v1615
    %v1617 = vmul.f32 %v1614, 1.442695
    %v1618 = vpow.pop %v1617
    %v1619 = vsel %vm497, %v1616, 0.0
    %1620 = vadd.xlane.f32.xlu0 %v1619
    %v1621 = vpop.xlane.xlu0 %1620
    %v1622 = vsel %vm497, %v1618, 0.0
    %1623 = vadd.xlane.f32.xlu0 %v1622
    %v1624 = vpop.xlane.xlu0 %1623
    %v1625 = vrcp.pop %v1621
    %v1626 = vrcp.pop %v1624
    %v1627 = vmul.f32 %v1616, %v1625
    %v1628 = vmul.f32 %v1618, %v1626
    %v1629 = vpack.c.bf16 %v1627, %v1627
    %v1630 = vpack.c.bf16 %v1628, %v1628
    %v1631 = vmul.bf16 %v1523, %v74
    %v1632 = vmul.bf16 %v1524, %v74
    %v1633 = vmul.bf16 %v1519, %v79
    %v1634 = vmul.bf16 %v1520, %v79
    %1635 = vmatprep.subr.bf16.mxu0 0
    %1636 = vmatpush1.bf16.xpose.msra.mxu0 0
    %1637 = vmatprep.subr.bf16.mxu0 0
    %1638 = vmatpush1.bf16.xpose.msra.mxu0 0
    %1639 = vmatprep.subr.bf16.mxu0 0
    %1640 = vmatpush1.bf16.xpose.msra.mxu0 0
    %1641 = vmatprep.subr.bf16.mxu0 0
    %1642 = vmatpush1.bf16.xpose.msra.mxu0 0
    %1643 = vmatprep.subr.bf16.mxu0 0
    %1644 = vmatpush1.bf16.xpose.msra.mxu0 0
    %1645 = vmatprep.subr.bf16.mxu0 0
    %1646 = vmatpush1.bf16.xpose.msra.mxu0 0
    %1647 = vmatprep.subr.bf16.mxu0 0
    %1648 = vmatpush1.bf16.xpose.msra.mxu0 0
    %1649 = vmatprep.subr.bf16.mxu0 0
    %1650 = vmatpush1.bf16.xpose.msra.mxu0 %v1521
    %1651 = vmatprep.subr.bf16.mxu0 0
    %1652 = vmatpush2.bf16.xpose.msra.mxu0 0
    %1653 = vmatprep.subr.bf16.mxu0 0
    %1654 = vmatpush2.bf16.xpose.msra.mxu0 0
    %1655 = vmatprep.subr.bf16.mxu0 0
    %1656 = vmatpush2.bf16.xpose.msra.mxu0 0
    %1657 = vmatprep.subr.bf16.mxu0 0
    %1658 = vmatpush2.bf16.xpose.msra.mxu0 0
    %1659 = vmatprep.subr.bf16.mxu0 0
    %1660 = vmatpush2.bf16.xpose.msra.mxu0 0
    %1661 = vmatprep.subr.bf16.mxu0 0
    %1662 = vmatpush2.bf16.xpose.msra.mxu0 0
    %1663 = vmatprep.subr.bf16.mxu0 0
    %1664 = vmatpush2.bf16.xpose.msra.mxu0 0
    %1665 = vmatprep.subr.bf16.mxu0 0
    %1666 = vmatpush2.bf16.xpose.msra.mxu0 0
    %1667 = vmatprep.mubr.bf16.mxu0 0
    %1668 = vmatmul.mubr.bf16.gmra.mxu0 %v1633
    %v1669 = vpop.f32.mrf.mxu0
    %v1670 = vadd.f32 %v83, %v1669
    %v1671 = vpop.f32.mrf.mxu0
    %v1672 = vpop.f32.mrf.mxu0
    %v1673 = vpop.f32.mrf.mxu0
    %1674 = vdwg.mxu0
    %1675 = vmatprep.subr.bf16.mxu0 0
    %1676 = vmatpush1.bf16.xpose.msra.mxu0 0
    %1677 = vmatprep.subr.bf16.mxu0 0
    %1678 = vmatpush1.bf16.xpose.msra.mxu0 0
    %1679 = vmatprep.subr.bf16.mxu0 0
    %1680 = vmatpush1.bf16.xpose.msra.mxu0 0
    %1681 = vmatprep.subr.bf16.mxu0 0
    %1682 = vmatpush1.bf16.xpose.msra.mxu0 0
    %1683 = vmatprep.subr.bf16.mxu0 0
    %1684 = vmatpush1.bf16.xpose.msra.mxu0 0
    %1685 = vmatprep.subr.bf16.mxu0 0
    %1686 = vmatpush1.bf16.xpose.msra.mxu0 0
    %1687 = vmatprep.subr.bf16.mxu0 0
    %1688 = vmatpush1.bf16.xpose.msra.mxu0 0
    %1689 = vmatprep.subr.bf16.mxu0 0
    %1690 = vmatpush1.bf16.xpose.msra.mxu0 %v1522
    %1691 = vmatprep.subr.bf16.mxu0 0
    %1692 = vmatpush2.bf16.xpose.msra.mxu0 0
    %1693 = vmatprep.subr.bf16.mxu0 0
    %1694 = vmatpush2.bf16.xpose.msra.mxu0 0
    %1695 = vmatprep.subr.bf16.mxu0 0
    %1696 = vmatpush2.bf16.xpose.msra.mxu0 0
    %1697 = vmatprep.subr.bf16.mxu0 0
    %1698 = vmatpush2.bf16.xpose.msra.mxu0 0
    %1699 = vmatprep.subr.bf16.mxu0 0
    %1700 = vmatpush2.bf16.xpose.msra.mxu0 0
    %1701 = vmatprep.subr.bf16.mxu0 0
    %1702 = vmatpush2.bf16.xpose.msra.mxu0 0
    %1703 = vmatprep.subr.bf16.mxu0 0
    %1704 = vmatpush2.bf16.xpose.msra.mxu0 0
    %1705 = vmatprep.subr.bf16.mxu0 0
    %1706 = vmatpush2.bf16.xpose.msra.mxu0 0
    %1707 = vmatprep.mubr.bf16.mxu0 0
    %1708 = vmatmul.mubr.bf16.gmra.mxu0 %v1634
    %v1709 = vpop.f32.mrf.mxu0
    %v1710 = vadd.f32 %v83, %v1709
    %v1711 = vpop.f32.mrf.mxu0
    %v1712 = vpop.f32.mrf.mxu0
    %v1713 = vpop.f32.mrf.mxu0
    %1714 = vdwg.mxu0
    %v1715 = vsel %vm497, %v1670, -inf
    %1716 = vmax.xlane.f32.xlu0 %v1715
    %v1717 = vpop.xlane.xlu0 %1716
    %v1718 = vsel %vm497, %v1710, -inf
    %1719 = vmax.xlane.f32.xlu0 %v1718
    %v1720 = vpop.xlane.xlu0 %1719
    %v1721 = vsub.f32 %v1670, %v1717
    %v1722 = vsub.f32 %v1710, %v1720
    %v1723 = vmul.f32 %v1721, 1.442695
    %v1724 = vpow.pop %v1723
    %v1725 = vmul.f32 %v1722, 1.442695
    %v1726 = vpow.pop %v1725
    %v1727 = vsel %vm497, %v1724, 0.0
    %1728 = vadd.xlane.f32.xlu0 %v1727
    %v1729 = vpop.xlane.xlu0 %1728
    %v1730 = vsel %vm497, %v1726, 0.0
    %1731 = vadd.xlane.f32.xlu0 %v1730
    %v1732 = vpop.xlane.xlu0 %1731
    %v1733 = vrcp.pop %v1729
    %v1734 = vrcp.pop %v1732
    %v1735 = vmul.f32 %v1724, %v1733
    %v1736 = vmul.f32 %v1726, %v1734
    %v1737 = vpack.c.bf16 %v1735, %v1735
    %v1738 = vpack.c.bf16 %v1736, %v1736
    %v1739 = vmul.bf16 %v1523, %v79
    %v1740 = vmul.bf16 %v1524, %v79
    %v1742 = vsel %vm497, %v1737, 0
    %v1745 = vsel %vm635, %v1739, 0
    %1747 = vmatprep.subr.bf16.mxu0 0
    %1748 = vmatpush1.bf16.msra.mxu0 0
    %1749 = vmatprep.subr.bf16.mxu0 0
    %1750 = vmatpush1.bf16.msra.mxu0 0
    %1751 = vmatprep.subr.bf16.mxu0 0
    %1752 = vmatpush1.bf16.msra.mxu0 0
    %1753 = vmatprep.subr.bf16.mxu0 0
    %1754 = vmatpush1.bf16.msra.mxu0 0
    %1755 = vmatprep.subr.bf16.mxu0 0
    %1756 = vmatpush1.bf16.msra.mxu0 0
    %1757 = vmatprep.subr.bf16.mxu0 0
    %1758 = vmatpush1.bf16.msra.mxu0 0
    %1759 = vmatprep.subr.bf16.mxu0 0
    %1760 = vmatpush1.bf16.msra.mxu0 0
    %1761 = vmatprep.subr.bf16.mxu0 0
    %1762 = vmatpush1.bf16.msra.mxu0 %v1745
    %1763 = vmatprep.subr.bf16.mxu0 0
    %1764 = vmatpush2.bf16.msra.mxu0 0
    %1765 = vmatprep.subr.bf16.mxu0 0
    %1766 = vmatpush2.bf16.msra.mxu0 0
    %1767 = vmatprep.subr.bf16.mxu0 0
    %1768 = vmatpush2.bf16.msra.mxu0 0
    %1769 = vmatprep.subr.bf16.mxu0 0
    %1770 = vmatpush2.bf16.msra.mxu0 0
    %1771 = vmatprep.subr.bf16.mxu0 0
    %1772 = vmatpush2.bf16.msra.mxu0 0
    %1773 = vmatprep.subr.bf16.mxu0 0
    %1774 = vmatpush2.bf16.msra.mxu0 0
    %1775 = vmatprep.subr.bf16.mxu0 0
    %1776 = vmatpush2.bf16.msra.mxu0 0
    %1777 = vmatprep.subr.bf16.mxu0 0
    %1778 = vmatpush2.bf16.msra.mxu0 0
    %1779 = vmatprep.mubr.bf16.mxu0 0
    %1780 = vmatmul.mubr.bf16.gmra.mxu0 %v1742
    %v1781 = vpop.f32.mrf.mxu0
    %v1782 = vadd.f32 0.0, %v1781
    %v1783 = vpop.f32.mrf.mxu0
    %v1784 = vpop.f32.mrf.mxu0
    %v1785 = vpop.f32.mrf.mxu0
    %1786 = vdwg.mxu0
    %v1788 = vsel %vm497, %v1738, 0
    %v1791 = vsel %vm635, %v1740, 0
    %1793 = vmatprep.subr.bf16.mxu0 0
    %1794 = vmatpush1.bf16.msra.mxu0 0
    %1795 = vmatprep.subr.bf16.mxu0 0
    %1796 = vmatpush1.bf16.msra.mxu0 0
    %1797 = vmatprep.subr.bf16.mxu0 0
    %1798 = vmatpush1.bf16.msra.mxu0 0
    %1799 = vmatprep.subr.bf16.mxu0 0
    %1800 = vmatpush1.bf16.msra.mxu0 0
    %1801 = vmatprep.subr.bf16.mxu0 0
    %1802 = vmatpush1.bf16.msra.mxu0 0
    %1803 = vmatprep.subr.bf16.mxu0 0
    %1804 = vmatpush1.bf16.msra.mxu0 0
    %1805 = vmatprep.subr.bf16.mxu0 0
    %1806 = vmatpush1.bf16.msra.mxu0 0
    %1807 = vmatprep.subr.bf16.mxu0 0
    %1808 = vmatpush1.bf16.msra.mxu0 %v1791
    %1809 = vmatprep.subr.bf16.mxu0 0
    %1810 = vmatpush2.bf16.msra.mxu0 0
    %1811 = vmatprep.subr.bf16.mxu0 0
    %1812 = vmatpush2.bf16.msra.mxu0 0
    %1813 = vmatprep.subr.bf16.mxu0 0
    %1814 = vmatpush2.bf16.msra.mxu0 0
    %1815 = vmatprep.subr.bf16.mxu0 0
    %1816 = vmatpush2.bf16.msra.mxu0 0
    %1817 = vmatprep.subr.bf16.mxu0 0
    %1818 = vmatpush2.bf16.msra.mxu0 0
    %1819 = vmatprep.subr.bf16.mxu0 0
    %1820 = vmatpush2.bf16.msra.mxu0 0
    %1821 = vmatprep.subr.bf16.mxu0 0
    %1822 = vmatpush2.bf16.msra.mxu0 0
    %1823 = vmatprep.subr.bf16.mxu0 0
    %1824 = vmatpush2.bf16.msra.mxu0 0
    %1825 = vmatprep.mubr.bf16.mxu0 0
    %1826 = vmatmul.mubr.bf16.gmra.mxu0 %v1788
    %v1827 = vpop.f32.mrf.mxu0
    %v1828 = vadd.f32 0.0, %v1827
    %v1829 = vpop.f32.mrf.mxu0
    %v1830 = vpop.f32.mrf.mxu0
    %v1831 = vpop.f32.mrf.mxu0
    %1832 = vdwg.mxu0
    %v1834 = vsel %vm497, %v1629, 0
    %v1837 = vsel %vm635, %v1631, 0
    %1839 = vmatprep.subr.bf16.mxu0 0
    %1840 = vmatpush1.bf16.msra.mxu0 0
    %1841 = vmatprep.subr.bf16.mxu0 0
    %1842 = vmatpush1.bf16.msra.mxu0 0
    %1843 = vmatprep.subr.bf16.mxu0 0
    %1844 = vmatpush1.bf16.msra.mxu0 0
    %1845 = vmatprep.subr.bf16.mxu0 0
    %1846 = vmatpush1.bf16.msra.mxu0 0
    %1847 = vmatprep.subr.bf16.mxu0 0
    %1848 = vmatpush1.bf16.msra.mxu0 0
    %1849 = vmatprep.subr.bf16.mxu0 0
    %1850 = vmatpush1.bf16.msra.mxu0 0
    %1851 = vmatprep.subr.bf16.mxu0 0
    %1852 = vmatpush1.bf16.msra.mxu0 0
    %1853 = vmatprep.subr.bf16.mxu0 0
    %1854 = vmatpush1.bf16.msra.mxu0 %v1837
    %1855 = vmatprep.subr.bf16.mxu0 0
    %1856 = vmatpush2.bf16.msra.mxu0 0
    %1857 = vmatprep.subr.bf16.mxu0 0
    %1858 = vmatpush2.bf16.msra.mxu0 0
    %1859 = vmatprep.subr.bf16.mxu0 0
    %1860 = vmatpush2.bf16.msra.mxu0 0
    %1861 = vmatprep.subr.bf16.mxu0 0
    %1862 = vmatpush2.bf16.msra.mxu0 0
    %1863 = vmatprep.subr.bf16.mxu0 0
    %1864 = vmatpush2.bf16.msra.mxu0 0
    %1865 = vmatprep.subr.bf16.mxu0 0
    %1866 = vmatpush2.bf16.msra.mxu0 0
    %1867 = vmatprep.subr.bf16.mxu0 0
    %1868 = vmatpush2.bf16.msra.mxu0 0
    %1869 = vmatprep.subr.bf16.mxu0 0
    %1870 = vmatpush2.bf16.msra.mxu0 0
    %1871 = vmatprep.mubr.bf16.mxu0 0
    %1872 = vmatmul.mubr.bf16.gmra.mxu0 %v1834
    %v1873 = vpop.f32.mrf.mxu0
    %v1874 = vadd.f32 %v1782, %v1873
    %v1875 = vpop.f32.mrf.mxu0
    %v1876 = vpop.f32.mrf.mxu0
    %v1877 = vpop.f32.mrf.mxu0
    %1878 = vdwg.mxu0
    %v1880 = vsel %vm497, %v1630, 0
    %v1883 = vsel %vm635, %v1632, 0
    %1885 = vmatprep.subr.bf16.mxu0 0
    %1886 = vmatpush1.bf16.msra.mxu0 0
    %1887 = vmatprep.subr.bf16.mxu0 0
    %1888 = vmatpush1.bf16.msra.mxu0 0
    %1889 = vmatprep.subr.bf16.mxu0 0
    %1890 = vmatpush1.bf16.msra.mxu0 0
    %1891 = vmatprep.subr.bf16.mxu0 0
    %1892 = vmatpush1.bf16.msra.mxu0 0
    %1893 = vmatprep.subr.bf16.mxu0 0
    %1894 = vmatpush1.bf16.msra.mxu0 0
    %1895 = vmatprep.subr.bf16.mxu0 0
    %1896 = vmatpush1.bf16.msra.mxu0 0
    %1897 = vmatprep.subr.bf16.mxu0 0
    %1898 = vmatpush1.bf16.msra.mxu0 0
    %1899 = vmatprep.subr.bf16.mxu0 0
    %1900 = vmatpush1.bf16.msra.mxu0 %v1883
    %1901 = vmatprep.subr.bf16.mxu0 0
    %1902 = vmatpush2.bf16.msra.mxu0 0
    %1903 = vmatprep.subr.bf16.mxu0 0
    %1904 = vmatpush2.bf16.msra.mxu0 0
    %1905 = vmatprep.subr.bf16.mxu0 0
    %1906 = vmatpush2.bf16.msra.mxu0 0
    %1907 = vmatprep.subr.bf16.mxu0 0
    %1908 = vmatpush2.bf16.msra.mxu0 0
    %1909 = vmatprep.subr.bf16.mxu0 0
    %1910 = vmatpush2.bf16.msra.mxu0 0
    %1911 = vmatprep.subr.bf16.mxu0 0
    %1912 = vmatpush2.bf16.msra.mxu0 0
    %1913 = vmatprep.subr.bf16.mxu0 0
    %1914 = vmatpush2.bf16.msra.mxu0 0
    %1915 = vmatprep.subr.bf16.mxu0 0
    %1916 = vmatpush2.bf16.msra.mxu0 0
    %1917 = vmatprep.mubr.bf16.mxu0 0
    %1918 = vmatmul.mubr.bf16.gmra.mxu0 %v1880
    %v1919 = vpop.f32.mrf.mxu0
    %v1920 = vadd.f32 %v1828, %v1919
    %v1921 = vpop.f32.mrf.mxu0
    %v1922 = vpop.f32.mrf.mxu0
    %v1923 = vpop.f32.mrf.mxu0
    %1924 = vdwg.mxu0
    %v1925 = vpack.c.bf16 %v1920, %v1874
    %s1926 = scalar_lea.vmem %s10, 64
    %v1927 = vld [vmem:[%s1926] sm:$0xf]
    %v1928 = vld [vmem:[%s1926 + $0x4] sm:$0xf]
    %v1929 = vld [vmem:[%s1926 + $0x8] sm:$0xf]
    %v1930 = vld [vmem:[%s1926 + $0xc] sm:$0xf]
    %v1931 = vld [vmem:[%s1926 + $0x10] sm:$0xf]
    %v1932 = vld [vmem:[%s1926 + $0x14] sm:$0xf]
    %v1933 = vld [vmem:[%s1926 + $0x18] sm:$0xf]
    %v1934 = vld [vmem:[%s1926 + $0x1c] sm:$0xf]
    %v1935 = vld [vmem:[%s1926 + $0x20] sm:$0xf]
    %v1936 = vld [vmem:[%s1926 + $0x24] sm:$0xf]
    %v1937 = vld [vmem:[%s1926 + $0x28] sm:$0xf]
    %v1938 = vld [vmem:[%s1926 + $0x2c] sm:$0xf]
    %v1939 = vld [vmem:[%s1926 + $0x30] sm:$0xf]
    %v1940 = vld [vmem:[%s1926 + $0x34] sm:$0xf]
    %v1941 = vld [vmem:[%s1926 + $0x38] sm:$0xf]
    %v1942 = vld [vmem:[%s1926 + $0x3c] sm:$0xf]
    %s1943 = scalar_lea.vmem %s11, 1
    %v1944 = vld [vmem:[%s1943] sm:$0x1]
    %v1946 = vlaneseq
    %v1947 = vshrl.u32 %v1946, 7
    %v1948 = vsub.s32 0, %v1947
    %v1949 = vrot.slane %v1944, %v1948
    %v1967 = vunpack.c.l.b16 %v1927
    %v1968 = vunpack.c.l.b16 %v1928
    %v1969 = vunpack.c.l.b16 %v1929
    %v1970 = vunpack.c.l.b16 %v1930
    %v1971 = vunpack.c.l.b16 %v1931
    %v1972 = vunpack.c.l.b16 %v1932
    %v1973 = vunpack.c.l.b16 %v1933
    %v1974 = vunpack.c.l.b16 %v1934
    %v1975 = vunpack.c.l.b16 %v1935
    %v1976 = vunpack.c.l.b16 %v1936
    %v1977 = vunpack.c.l.b16 %v1937
    %v1978 = vunpack.c.l.b16 %v1938
    %v1979 = vunpack.c.l.b16 %v1939
    %v1980 = vunpack.c.l.b16 %v1940
    %v1981 = vunpack.c.l.b16 %v1941
    %v1982 = vunpack.c.l.b16 %v1942
    %v1983 = vpack.c.b16 %v1968, %v1967
    %v1984 = vpack.c.b16 %v1970, %v1969
    %v1985 = vpack.c.b16 %v1972, %v1971
    %v1986 = vpack.c.b16 %v1974, %v1973
    %v1987 = vpack.c.b16 %v1976, %v1975
    %v1988 = vpack.c.b16 %v1978, %v1977
    %v1989 = vpack.c.b16 %v1980, %v1979
    %v1990 = vpack.c.b16 %v1982, %v1981
    %1999 = vmatprep.subr.bf16.mxu0 0
    %2000 = vmatpush1.bf16.msra.mxu0 %v1990
    %2001 = vmatprep.subr.bf16.mxu0 0
    %2002 = vmatpush1.bf16.msra.mxu0 %v1989
    %2003 = vmatprep.subr.bf16.mxu0 0
    %2004 = vmatpush1.bf16.msra.mxu0 %v1988
    %2005 = vmatprep.subr.bf16.mxu0 0
    %2006 = vmatpush1.bf16.msra.mxu0 %v1987
    %2007 = vmatprep.subr.bf16.mxu0 0
    %2008 = vmatpush1.bf16.msra.mxu0 %v1986
    %2009 = vmatprep.subr.bf16.mxu0 0
    %2010 = vmatpush1.bf16.msra.mxu0 %v1985
    %2011 = vmatprep.subr.bf16.mxu0 0
    %2012 = vmatpush1.bf16.msra.mxu0 %v1984
    %2013 = vmatprep.subr.bf16.mxu0 0
    %2014 = vmatpush1.bf16.msra.mxu0 %v1983
    %2015 = vmatprep.subr.bf16.mxu0 0
    %2016 = vmatpush2.bf16.msra.mxu0 0
    %2017 = vmatprep.subr.bf16.mxu0 0
    %2018 = vmatpush2.bf16.msra.mxu0 0
    %2019 = vmatprep.subr.bf16.mxu0 0
    %2020 = vmatpush2.bf16.msra.mxu0 0
    %2021 = vmatprep.subr.bf16.mxu0 0
    %2022 = vmatpush2.bf16.msra.mxu0 0
    %2023 = vmatprep.subr.bf16.mxu0 0
    %2024 = vmatpush2.bf16.msra.mxu0 0
    %2025 = vmatprep.subr.bf16.mxu0 0
    %2026 = vmatpush2.bf16.msra.mxu0 0
    %2027 = vmatprep.subr.bf16.mxu0 0
    %2028 = vmatpush2.bf16.msra.mxu0 0
    %2029 = vmatprep.subr.bf16.mxu0 0
    %2030 = vmatpush2.bf16.msra.mxu0 0
    %2031 = vmatprep.mubr.bf16.mxu0 0
    %2032 = vmatmul.mubr.bf16.gmra.mxu0 %v1925
    %v2033 = vpop.f32.mrf.mxu0
    %v2034 = vadd.f32 %v1949, %v2033
    %v2035 = vpop.f32.mrf.mxu0
    %v2036 = vpop.f32.mrf.mxu0
    %v2037 = vadd.f32 %v1949, %v2036
    %v2038 = vpop.f32.mrf.mxu0
    %2039 = vdwg.mxu0
    %v2040 = vadd.f32 %v2034, %v1204
    %v2041 = vadd.f32 %v2037, %v1205
    %s2042 = scalar_lea.vmem %s12, 1
    %v2043 = vld [vmem:[%s2042] sm:$0x1]
    %s2044 = scalar_lea.vmem %s13, 1
    %v2045 = vld [vmem:[%s2044] sm:$0x1]
    %2046 = vadd.xlane.f32.xlu0 %v2040
    %v2047 = vpop.xlane.xlu0 %2046
    %2048 = vadd.xlane.f32.xlu0 %v2041
    %v2049 = vpop.xlane.xlu0 %2048
    %v2050 = vmul.f32 %v2047, 0.03125
    %v2051 = vmul.f32 %v2049, 0.03125
    %v2052 = vsub.f32 %v2040, %v2050
    %v2053 = vsub.f32 %v2041, %v2051
    %v2054 = vmul.f32 %v2052, %v68
    %v2055 = vmul.f32 %v2053, %v68
    %v2056 = vmul.f32 %v2054, %v2054
    %v2057 = vmul.f32 %v2055, %v2055
    %2058 = vadd.xlane.f32.xlu0 %v2056
    %v2059 = vpop.xlane.xlu0 %2058
    %2060 = vadd.xlane.f32.xlu0 %v2057
    %v2061 = vpop.xlane.xlu0 %2060
    %v2062 = vmul.f32 %v2059, 0.03125
    %v2063 = vmul.f32 %v2061, 0.03125
    %v2064 = vadd.f32 %v2062, 1e-08
    %v2065 = vadd.f32 %v2063, 1e-08
    %v2066 = vrsqrt.pop %v2064
    %v2067 = vrsqrt.pop %v2065
    %v2068 = vmul.f32 %v2054, %v2066
    %v2069 = vmul.f32 %v2055, %v2067
    %v2071 = vlaneseq
    %v2072 = vshrl.u32 %v2071, 7
    %v2073 = vsub.s32 0, %v2072
    %v2074 = vrot.slane %v2043, %v2073
    %v2076 = vmul.f32 %v2068, %v2074
    %v2077 = vmul.f32 %v2069, %v2074
    %v2079 = vlaneseq
    %v2080 = vshrl.u32 %v2079, 7
    %v2081 = vsub.s32 0, %v2080
    %v2082 = vrot.slane %v2045, %v2081
    %v2084 = vadd.f32 %v2076, %v2082
    %v2085 = vadd.f32 %v2077, %v2082
    %v2086 = vpack.c.bf16 %v2085, %v2084
    %s2087 = scalar_lea.vmem %s14, 64
    %v2088 = vld [vmem:[%s2087] sm:$0xf]
    %v2089 = vld [vmem:[%s2087 + $0x4] sm:$0xf]
    %v2090 = vld [vmem:[%s2087 + $0x8] sm:$0xf]
    %v2091 = vld [vmem:[%s2087 + $0xc] sm:$0xf]
    %v2092 = vld [vmem:[%s2087 + $0x10] sm:$0xf]
    %v2093 = vld [vmem:[%s2087 + $0x14] sm:$0xf]
    %v2094 = vld [vmem:[%s2087 + $0x18] sm:$0xf]
    %v2095 = vld [vmem:[%s2087 + $0x1c] sm:$0xf]
    %v2096 = vld [vmem:[%s2087 + $0x20] sm:$0xf]
    %v2097 = vld [vmem:[%s2087 + $0x24] sm:$0xf]
    %v2098 = vld [vmem:[%s2087 + $0x28] sm:$0xf]
    %v2099 = vld [vmem:[%s2087 + $0x2c] sm:$0xf]
    %v2100 = vld [vmem:[%s2087 + $0x30] sm:$0xf]
    %v2101 = vld [vmem:[%s2087 + $0x34] sm:$0xf]
    %v2102 = vld [vmem:[%s2087 + $0x38] sm:$0xf]
    %v2103 = vld [vmem:[%s2087 + $0x3c] sm:$0xf]
    %s2104 = scalar_lea.vmem %s15, 1
    %v2105 = vld [vmem:[%s2104] sm:$0x1]
    %v2107 = vlaneseq
    %v2108 = vshrl.u32 %v2107, 7
    %v2109 = vsub.s32 0, %v2108
    %v2110 = vrot.slane %v2105, %v2109
    %v2128 = vunpack.c.l.b16 %v2088
    %v2129 = vunpack.c.l.b16 %v2089
    %v2130 = vunpack.c.l.b16 %v2090
    %v2131 = vunpack.c.l.b16 %v2091
    %v2132 = vunpack.c.l.b16 %v2092
    %v2133 = vunpack.c.l.b16 %v2093
    %v2134 = vunpack.c.l.b16 %v2094
    %v2135 = vunpack.c.l.b16 %v2095
    %v2136 = vunpack.c.l.b16 %v2096
    %v2137 = vunpack.c.l.b16 %v2097
    %v2138 = vunpack.c.l.b16 %v2098
    %v2139 = vunpack.c.l.b16 %v2099
    %v2140 = vunpack.c.l.b16 %v2100
    %v2141 = vunpack.c.l.b16 %v2101
    %v2142 = vunpack.c.l.b16 %v2102
    %v2143 = vunpack.c.l.b16 %v2103
    %v2144 = vpack.c.b16 %v2129, %v2128
    %v2145 = vpack.c.b16 %v2131, %v2130
    %v2146 = vpack.c.b16 %v2133, %v2132
    %v2147 = vpack.c.b16 %v2135, %v2134
    %v2148 = vpack.c.b16 %v2137, %v2136
    %v2149 = vpack.c.b16 %v2139, %v2138
    %v2150 = vpack.c.b16 %v2141, %v2140
    %v2151 = vpack.c.b16 %v2143, %v2142
    %2160 = vmatprep.subr.bf16.mxu0 0
    %2161 = vmatpush1.bf16.msra.mxu0 %v2151
    %2162 = vmatprep.subr.bf16.mxu0 0
    %2163 = vmatpush1.bf16.msra.mxu0 %v2150
    %2164 = vmatprep.subr.bf16.mxu0 0
    %2165 = vmatpush1.bf16.msra.mxu0 %v2149
    %2166 = vmatprep.subr.bf16.mxu0 0
    %2167 = vmatpush1.bf16.msra.mxu0 %v2148
    %2168 = vmatprep.subr.bf16.mxu0 0
    %2169 = vmatpush1.bf16.msra.mxu0 %v2147
    %2170 = vmatprep.subr.bf16.mxu0 0
    %2171 = vmatpush1.bf16.msra.mxu0 %v2146
    %2172 = vmatprep.subr.bf16.mxu0 0
    %2173 = vmatpush1.bf16.msra.mxu0 %v2145
    %2174 = vmatprep.subr.bf16.mxu0 0
    %2175 = vmatpush1.bf16.msra.mxu0 %v2144
    %2176 = vmatprep.subr.bf16.mxu0 0
    %2177 = vmatpush2.bf16.msra.mxu0 0
    %2178 = vmatprep.subr.bf16.mxu0 0
    %2179 = vmatpush2.bf16.msra.mxu0 0
    %2180 = vmatprep.subr.bf16.mxu0 0
    %2181 = vmatpush2.bf16.msra.mxu0 0
    %2182 = vmatprep.subr.bf16.mxu0 0
    %2183 = vmatpush2.bf16.msra.mxu0 0
    %2184 = vmatprep.subr.bf16.mxu0 0
    %2185 = vmatpush2.bf16.msra.mxu0 0
    %2186 = vmatprep.subr.bf16.mxu0 0
    %2187 = vmatpush2.bf16.msra.mxu0 0
    %2188 = vmatprep.subr.bf16.mxu0 0
    %2189 = vmatpush2.bf16.msra.mxu0 0
    %2190 = vmatprep.subr.bf16.mxu0 0
    %2191 = vmatpush2.bf16.msra.mxu0 0
    %2192 = vmatprep.mubr.bf16.mxu0 0
    %2193 = vmatmul.mubr.bf16.gmra.mxu0 %v2086
    %v2194 = vpop.f32.mrf.mxu0
    %v2195 = vadd.f32 %v2110, %v2194
    %v2196 = vpop.f32.mrf.mxu0
    %v2197 = vpop.f32.mrf.mxu0
    %v2198 = vadd.f32 %v2110, %v2197
    %v2199 = vpop.f32.mrf.mxu0
    %2200 = vdwg.mxu0
    %v2201 = vmax.f32 %v2195, 0.0
    %v2202 = vmax.f32 %v2198, 0.0
    %v2203 = vpack.c.bf16 %v2202, %v2201
    %s2204 = scalar_lea.vmem %s16, 64
    %v2205 = vld [vmem:[%s2204] sm:$0xf]
    %v2206 = vld [vmem:[%s2204 + $0x4] sm:$0xf]
    %v2207 = vld [vmem:[%s2204 + $0x8] sm:$0xf]
    %v2208 = vld [vmem:[%s2204 + $0xc] sm:$0xf]
    %v2209 = vld [vmem:[%s2204 + $0x10] sm:$0xf]
    %v2210 = vld [vmem:[%s2204 + $0x14] sm:$0xf]
    %v2211 = vld [vmem:[%s2204 + $0x18] sm:$0xf]
    %v2212 = vld [vmem:[%s2204 + $0x1c] sm:$0xf]
    %v2213 = vld [vmem:[%s2204 + $0x20] sm:$0xf]
    %v2214 = vld [vmem:[%s2204 + $0x24] sm:$0xf]
    %v2215 = vld [vmem:[%s2204 + $0x28] sm:$0xf]
    %v2216 = vld [vmem:[%s2204 + $0x2c] sm:$0xf]
    %v2217 = vld [vmem:[%s2204 + $0x30] sm:$0xf]
    %v2218 = vld [vmem:[%s2204 + $0x34] sm:$0xf]
    %v2219 = vld [vmem:[%s2204 + $0x38] sm:$0xf]
    %v2220 = vld [vmem:[%s2204 + $0x3c] sm:$0xf]
    %s2221 = scalar_lea.vmem %s17, 1
    %v2222 = vld [vmem:[%s2221] sm:$0x1]
    %v2224 = vlaneseq
    %v2225 = vshrl.u32 %v2224, 7
    %v2226 = vsub.s32 0, %v2225
    %v2227 = vrot.slane %v2222, %v2226
    %v2245 = vunpack.c.l.b16 %v2205
    %v2246 = vunpack.c.l.b16 %v2206
    %v2247 = vunpack.c.l.b16 %v2207
    %v2248 = vunpack.c.l.b16 %v2208
    %v2249 = vunpack.c.l.b16 %v2209
    %v2250 = vunpack.c.l.b16 %v2210
    %v2251 = vunpack.c.l.b16 %v2211
    %v2252 = vunpack.c.l.b16 %v2212
    %v2253 = vunpack.c.l.b16 %v2213
    %v2254 = vunpack.c.l.b16 %v2214
    %v2255 = vunpack.c.l.b16 %v2215
    %v2256 = vunpack.c.l.b16 %v2216
    %v2257 = vunpack.c.l.b16 %v2217
    %v2258 = vunpack.c.l.b16 %v2218
    %v2259 = vunpack.c.l.b16 %v2219
    %v2260 = vunpack.c.l.b16 %v2220
    %v2261 = vpack.c.b16 %v2246, %v2245
    %v2262 = vpack.c.b16 %v2248, %v2247
    %v2263 = vpack.c.b16 %v2250, %v2249
    %v2264 = vpack.c.b16 %v2252, %v2251
    %v2265 = vpack.c.b16 %v2254, %v2253
    %v2266 = vpack.c.b16 %v2256, %v2255
    %v2267 = vpack.c.b16 %v2258, %v2257
    %v2268 = vpack.c.b16 %v2260, %v2259
    %2277 = vmatprep.subr.bf16.mxu0 0
    %2278 = vmatpush1.bf16.msra.mxu0 %v2268
    %2279 = vmatprep.subr.bf16.mxu0 0
    %2280 = vmatpush1.bf16.msra.mxu0 %v2267
    %2281 = vmatprep.subr.bf16.mxu0 0
    %2282 = vmatpush1.bf16.msra.mxu0 %v2266
    %2283 = vmatprep.subr.bf16.mxu0 0
    %2284 = vmatpush1.bf16.msra.mxu0 %v2265
    %2285 = vmatprep.subr.bf16.mxu0 0
    %2286 = vmatpush1.bf16.msra.mxu0 %v2264
    %2287 = vmatprep.subr.bf16.mxu0 0
    %2288 = vmatpush1.bf16.msra.mxu0 %v2263
    %2289 = vmatprep.subr.bf16.mxu0 0
    %2290 = vmatpush1.bf16.msra.mxu0 %v2262
    %2291 = vmatprep.subr.bf16.mxu0 0
    %2292 = vmatpush1.bf16.msra.mxu0 %v2261
    %2293 = vmatprep.subr.bf16.mxu0 0
    %2294 = vmatpush2.bf16.msra.mxu0 0
    %2295 = vmatprep.subr.bf16.mxu0 0
    %2296 = vmatpush2.bf16.msra.mxu0 0
    %2297 = vmatprep.subr.bf16.mxu0 0
    %2298 = vmatpush2.bf16.msra.mxu0 0
    %2299 = vmatprep.subr.bf16.mxu0 0
    %2300 = vmatpush2.bf16.msra.mxu0 0
    %2301 = vmatprep.subr.bf16.mxu0 0
    %2302 = vmatpush2.bf16.msra.mxu0 0
    %2303 = vmatprep.subr.bf16.mxu0 0
    %2304 = vmatpush2.bf16.msra.mxu0 0
    %2305 = vmatprep.subr.bf16.mxu0 0
    %2306 = vmatpush2.bf16.msra.mxu0 0
    %2307 = vmatprep.subr.bf16.mxu0 0
    %2308 = vmatpush2.bf16.msra.mxu0 0
    %2309 = vmatprep.mubr.bf16.mxu0 0
    %2310 = vmatmul.mubr.bf16.gmra.mxu0 %v2203
    %v2311 = vpop.f32.mrf.mxu0
    %v2312 = vadd.f32 %v2227, %v2311
    %v2313 = vpop.f32.mrf.mxu0
    %v2314 = vpop.f32.mrf.mxu0
    %v2315 = vadd.f32 %v2227, %v2314
    %v2316 = vpop.f32.mrf.mxu0
    %2317 = vdwg.mxu0
    %v2318 = vadd.f32 %v2312, %v2040
    %v2319 = vadd.f32 %v2315, %v2041
    %v2320 = vld [vmem:[%s2] sm:$0xf]
    %v2321 = vld [vmem:[%s2 + $0x4] sm:$0xf]
    %v2322 = vunpack.c.l.bf16 %v2320
    %v2323 = vunpack.c.l.bf16 %v2321
    %v2324 = vld [vmem:[%s3] sm:$0xf]
    %v2325 = vld [vmem:[%s3 + $0x4] sm:$0xf]
    %v2326 = vunpack.c.l.bf16 %v2324
    %v2327 = vunpack.c.l.bf16 %v2325
    %v2328 = vmul.f32 %v2318, %v2322
    %v2329 = vmul.f32 %v2319, %v2323
    %2330 = vadd.xlane.f32.xlu0 %v2328
    %v2331 = vpop.xlane.xlu0 %2330
    %2332 = vadd.xlane.f32.xlu0 %v2329
    %v2333 = vpop.xlane.xlu0 %2332
    %v2336 = vlaneseq
    %v2337 = vshrl.u32 %v2336, 7
    %v2338 = vsub.s32 %v65, %v2337
    %v2339 = vrot.slane %v2331, %v2338
    %v2340 = vlaneseq
    %v2341 = vshrl.u32 %v2340, 7
    %v2342 = vsub.s32 %v65, %v2341
    %v2343 = vrot.slane %v2333, %v2342
    %vm2344 = vcmask 1041409
    %v2345 = vsel %vm2344, %v2343, %v2339
    %vm2347 = vcmask 58368
    %2348 = vst.msk [vmem:[#allocation2] sm:$0x3] %vm2347, %v2345
    %v2349 = vmul.f32 %v2318, %v2326
    %v2350 = vmul.f32 %v2319, %v2327
    %2351 = vadd.xlane.f32.xlu0 %v2349
    %v2352 = vpop.xlane.xlu0 %2351
    %2353 = vadd.xlane.f32.xlu0 %v2350
    %v2354 = vpop.xlane.xlu0 %2353
    %v2357 = vlaneseq
    %v2358 = vshrl.u32 %v2357, 7
    %v2359 = vsub.s32 %v65, %v2358
    %v2360 = vrot.slane %v2352, %v2359
    %v2361 = vlaneseq
    %v2362 = vshrl.u32 %v2361, 7
    %v2363 = vsub.s32 %v65, %v2362
    %v2364 = vrot.slane %v2354, %v2363
    %v2365 = vsel %vm2344, %v2364, %v2360
    %2367 = vst.msk [vmem:[#allocation4] sm:$0x3] %vm2347, %v2365
    // Predicated region
    $region74: #{sasrec_forward.1} parent=1 // pred_check
      _
    $region75: #{sasrec_forward.1} parent=1 // pred_check_branch
      %2369 = sbr.rel (0) target = $region77
    $region76: #{sasrec_forward.1} parent=1 // pred_region
      %s2371 = ssub.s32 32, 32
      %2372 = vsyncadd [#allocation3], %s2371
      %s2374 = sshll.u32 [#allocation2], 4
      %s2375 = int_to_ptr.vmem [resolvable:$true] %s2374
      %2377 = dma.vmem_to_hbm [thread:$0]  %s2375, 32, %s18, [#allocation3]
    $region77: #{sasrec_forward.1} parent=1 // pred_fallthru
      _
    // Predicated region
    $region78: #{sasrec_forward.1} parent=1 // pred_check
      _
    $region79: #{sasrec_forward.1} parent=1 // pred_check_branch
      %2379 = sbr.rel (0) target = $region81
    $region80: #{sasrec_forward.1} parent=1 // pred_region
      %s2381 = ssub.s32 32, 32
      %2382 = vsyncadd [#allocation5], %s2381
      %s2384 = sshll.u32 [#allocation4], 4
      %s2385 = int_to_ptr.vmem [resolvable:$true] %s2384
      %2387 = dma.vmem_to_hbm [thread:$0]  %s2385, 32, %s19, [#allocation5]
    $region81: #{sasrec_forward.1} parent=1 // pred_fallthru
      _
    // Predicated region
    $region82: #{sasrec_forward.1} parent=1 // pred_check
      _
    $region83: #{sasrec_forward.1} parent=1 // pred_check_branch
      %2389 = sbr.rel (0) target = $region85
    $region84: #{sasrec_forward.1} parent=1 // pred_region
      %2390 = dma.done [#allocation3], 32
    $region85: #{sasrec_forward.1} parent=1 // pred_fallthru
      _
    // Predicated region
    $region86: #{sasrec_forward.1} parent=1 // pred_check
      _
    $region87: #{sasrec_forward.1} parent=1 // pred_check_branch
      %2392 = sbr.rel (0) target = $region89
    $region88: #{sasrec_forward.1} parent=1 // pred_region
      %2393 = dma.done [#allocation5], 32
    $region89: #{sasrec_forward.1} parent=1 // pred_fallthru
      _
    %2394 = vsyncpa [#allocation3], 1
    %2395 = vsyncpa [#allocation5], 1

</llo_original>
